<compile_context>
chip_gen: v7x
topology: tpu7x:2x2x1
jax: 0.10.0
libtpu: 0.0.40
codegen_flags: <defaults>
</compile_context>

<pallas_src>
import jax
import jax.numpy as jnp
from jax.experimental import pallas as pl
from jax.experimental.pallas import tpu as pltpu


def _resnet_region_kernel(x_ref, w1t_ref, b1_ref, w2t_ref, b2_ref, o_ref):
    # x_ref:   (N, C_in, HW)   — NCHW with H,W pre-flattened (free reshape)
    # w1t_ref: (C_feat, C_in)  — layer-1 weight, transposed ("kernel layout")
    # b1_ref:  (C_feat, 1)
    # w2t_ref: (C_feat, C_feat)
    # b2_ref:  (C_feat, 1)
    # o_ref:   (N, C_feat)     — per-image globally average-pooled features
    x = x_ref[...]                              # (N, C_in, HW), f32
    n = x.shape[0]
    hw = x.shape[2]

    # ---- "resnet" stand-in: 1x1 conv -> ReLU -> 1x1 conv + skip -> ReLU ----
    # Layer 1: batched MXU matmul per image, features on sublanes, pixels on
    # lanes.  K = C_in is tiny but the MXU is idle here and this avoids the
    # per-channel lane-broadcast pattern entirely.
    w1t_b = jnp.broadcast_to(w1t_ref[...], (n,) + w1t_ref.shape)   # (N, C_feat, C_in)
    h = jnp.einsum('nfc,ncp->nfp', w1t_b, x,
                   preferred_element_type=jnp.float32)             # (N, C_feat, HW)
    h = jnp.maximum(h + b1_ref[...], 0.0)

    # Layer 2: batched MXU matmul + bias + residual + ReLU, same layout.
    w2t_b = jnp.broadcast_to(w2t_ref[...], (n,) + w2t_ref.shape)   # (N, C_feat, C_feat)
    h2 = jnp.einsum('ngf,nfp->ngp', w2t_b, h,
                    preferred_element_type=jnp.float32)            # (N, C_feat, HW)
    h2 = jnp.maximum(h2 + b2_ref[...] + h, 0.0)

    # ---- F.avg_pool2d(x, pool_size).view(N, C): global mean over HW pixels ----
    # Lane-axis sum scaled by a hoisted 1/HW constant (exact for HW = 64).
    inv_hw = jnp.float32(1.0 / hw)
    o_ref[...] = (jnp.sum(h2, axis=-1) * inv_hw).astype(o_ref.dtype)   # (N, C_feat)


def resnet_with_regions_forward(x_nchw, params, *, att_size, pool_size,
                                fc_feat_size, att_feat_size):
    """x_nchw: (N, C_in, H, W) with N = batch_size * (att_size + 1)."""
    w1t, b1, w2t, b2 = params
    N, C_in, H, W = x_nchw.shape
    assert H == pool_size and W == pool_size, \
        "view(N, C) requires pooling over the full spatial extent"
    C_feat = w1t.shape[0]
    assert fc_feat_size == att_feat_size == C_feat
    HW = H * W

    # NCHW -> (N, C_in, H*W): contiguous reshape, zero HBM traffic.  The
    # channel handling happens inside the kernel (no separate transpose op).
    x3 = x_nchw.reshape(N, C_in, HW)

    # Single kernel invocation, every operand fully resident in VMEM once.
    vmem = pl.BlockSpec(memory_space=pltpu.MemorySpace.VMEM)
    fc_all = pl.pallas_call(
        _resnet_region_kernel,
        out_shape=jax.ShapeDtypeStruct((N, C_feat), jnp.float32),
        in_specs=[vmem, vmem, vmem, vmem, vmem],
        out_specs=vmem,
    )(x3, w1t, b1, w2t, b2)                                # (N, C_feat)

    # Region split: row i*(att_size+1) -> fc_feats, next att_size rows -> att_feats.
    batch_size = N // (att_size + 1)
    grouped = fc_all.reshape(batch_size, att_size + 1, C_feat)
    fc_feats = grouped[:, 0, :].reshape(batch_size, fc_feat_size)
    att_feats = grouped[:, 1:, :].reshape(batch_size, att_size, att_feat_size)
    return fc_feats, att_feats


def _ref_forward(x_nchw, params, *, att_size):
    """Pure-JAX reference mirroring the PyTorch forward."""
    w1t, b1, w2t, b2 = params
    N, C_in, H, W = x_nchw.shape
    x = jnp.transpose(x_nchw, (0, 2, 3, 1)).reshape(N, H * W, C_in)
    h = jax.nn.relu(x @ w1t.T + b1[:, 0])
    h2 = jax.nn.relu(h @ w2t.T + b2[:, 0] + h)
    fc_all = h2.mean(axis=1)
    B = N // (att_size + 1)
    grouped = fc_all.reshape(B, att_size + 1, -1)
    return grouped[:, 0, :], grouped[:, 1:, :]


if __name__ == "__main__":
    # Module hyper-parameters (opt): small, consistent with the forward pass.
    batch_size = 2
    att_size = 7                        # each group = 1 fc image + 7 region images
    C_in = 4
    H = W = pool_size = 8
    fc_feat_size = att_feat_size = 32   # backbone output channels
    N = batch_size * (att_size + 1)     # 16 stacked images

    key = jax.random.PRNGKey(0)
    kx, k1, k2, k3, k4 = jax.random.split(key, 5)
    x = jax.random.normal(kx, (N, C_in, H, W), dtype=jnp.float32)

    # Deterministic synthetic backbone weights, stored in kernel layout
    # (transposed weights, column biases).
    w1t = jax.random.normal(k1, (fc_feat_size, C_in), dtype=jnp.float32) * 0.1
    b1 = jax.random.normal(k2, (fc_feat_size, 1), dtype=jnp.float32) * 0.1
    w2t = jax.random.normal(k3, (fc_feat_size, fc_feat_size), dtype=jnp.float32) * 0.1
    b2 = jax.random.normal(k4, (fc_feat_size, 1), dtype=jnp.float32) * 0.1
    params = (w1t, b1, w2t, b2)

    fc_feats, att_feats = resnet_with_regions_forward(
        x, params, att_size=att_size, pool_size=pool_size,
        fc_feat_size=fc_feat_size, att_feat_size=att_feat_size)
    jax.block_until_ready((fc_feats, att_feats))

    fc_ref, att_ref = _ref_forward(x, params, att_size=att_size)
    assert fc_feats.shape == (batch_size, fc_feat_size)
    assert att_feats.shape == (batch_size, att_size, att_feat_size)
    assert jnp.allclose(fc_feats, fc_ref, atol=1e-5, rtol=1e-5)
    assert jnp.allclose(att_feats, att_ref, atol=1e-5, rtol=1e-5)

    print("KERNEL_OK")
</pallas_src>

<mosaic_0001>
module attributes {stable_mosaic.version = 11 : i64} {
  func.func @_resnet_region_kernel(%arg0: memref<16x4x64xf32, #tpu.memory_space<vmem>>, %arg1: memref<32x4xf32, #tpu.memory_space<vmem>>, %arg2: memref<32x1xf32, #tpu.memory_space<vmem>>, %arg3: memref<32x32xf32, #tpu.memory_space<vmem>>, %arg4: memref<32x1xf32, #tpu.memory_space<vmem>>, %arg5: memref<16x32xf32, #tpu.memory_space<vmem>>) attributes {dimension_semantics = [], scalar_prefetch = 0 : i64, scratch_operands = 0 : i64, tpu.core_type = #tpu.core_type<tc>} {
    %c0 = arith.constant 0 : index
    %c0_0 = arith.constant 0 : index
    %c0_1 = arith.constant 0 : index
    %0 = vector.load %arg0[%c0, %c0_0, %c0_1] : memref<16x4x64xf32, #tpu.memory_space<vmem>>, vector<16x4x64xf32>
    %c0_2 = arith.constant 0 : index
    %c0_3 = arith.constant 0 : index
    %1 = vector.load %arg1[%c0_2, %c0_3] : memref<32x4xf32, #tpu.memory_space<vmem>>, vector<32x4xf32>
    %2 = vector.shape_cast %1 : vector<32x4xf32> to vector<1x32x4xf32>
    %3 = vector.broadcast %2 : vector<1x32x4xf32> to vector<16x32x4xf32>
    "tpu.trace_start"() <{level = 10 : i32, message = "nfc,ncp->nfp"}> : () -> ()
    %cst = arith.constant dense<0.000000e+00> : vector<16x32x64xf32>
    %4 = tpu.matmul %3, %0, %cst {dimension_numbers = #tpu.dot_dimension_numbers<[2], [1], [1], [2], [0, 0, 0, 1, 1, 2], [0], [0]>} : vector<16x32x4xf32>, vector<16x4x64xf32>, vector<16x32x64xf32> -> vector<16x32x64xf32>
    "tpu.trace_stop"() : () -> ()
    %c0_4 = arith.constant 0 : index
    %c0_5 = arith.constant 0 : index
    %5 = vector.load %arg2[%c0_4, %c0_5] : memref<32x1xf32, #tpu.memory_space<vmem>>, vector<32x1xf32>
    %6 = vector.shape_cast %5 : vector<32x1xf32> to vector<1x32x1xf32>
    %7 = vector.broadcast %6 : vector<1x32x1xf32> to vector<16x32x64xf32>
    %8 = arith.addf %4, %7 : vector<16x32x64xf32>
    %cst_6 = arith.constant 0.000000e+00 : f32
    %9 = vector.broadcast %cst_6 : f32 to vector<16x32x64xf32>
    %10 = arith.maximumf %8, %9 : vector<16x32x64xf32>
    %c0_7 = arith.constant 0 : index
    %c0_8 = arith.constant 0 : index
    %11 = vector.load %arg3[%c0_7, %c0_8] : memref<32x32xf32, #tpu.memory_space<vmem>>, vector<32x32xf32>
    %12 = vector.shape_cast %11 : vector<32x32xf32> to vector<1x32x32xf32>
    %13 = vector.broadcast %12 : vector<1x32x32xf32> to vector<16x32x32xf32>
    "tpu.trace_start"() <{level = 10 : i32, message = "ngf,nfp->ngp"}> : () -> ()
    %cst_9 = arith.constant dense<0.000000e+00> : vector<16x32x64xf32>
    %14 = tpu.matmul %13, %10, %cst_9 {dimension_numbers = #tpu.dot_dimension_numbers<[2], [1], [1], [2], [0, 0, 0, 1, 1, 2], [0], [0]>} : vector<16x32x32xf32>, vector<16x32x64xf32>, vector<16x32x64xf32> -> vector<16x32x64xf32>
    "tpu.trace_stop"() : () -> ()
    %c0_10 = arith.constant 0 : index
    %c0_11 = arith.constant 0 : index
    %15 = vector.load %arg4[%c0_10, %c0_11] : memref<32x1xf32, #tpu.memory_space<vmem>>, vector<32x1xf32>
    %16 = vector.shape_cast %15 : vector<32x1xf32> to vector<1x32x1xf32>
    %17 = vector.broadcast %16 : vector<1x32x1xf32> to vector<16x32x64xf32>
    %18 = arith.addf %14, %17 : vector<16x32x64xf32>
    %19 = arith.addf %18, %10 : vector<16x32x64xf32>
    %cst_12 = arith.constant 0.000000e+00 : f32
    %20 = vector.broadcast %cst_12 : f32 to vector<16x32x64xf32>
    %21 = arith.maximumf %19, %20 : vector<16x32x64xf32>
    %cst_13 = arith.constant dense<0.000000e+00> : vector<16x32xf32>
    %22 = vector.multi_reduction <add>, %21, %cst_13 [2] : vector<16x32x64xf32> to vector<16x32xf32>
    %cst_14 = arith.constant 1.562500e-02 : f32
    %23 = vector.broadcast %cst_14 : f32 to vector<16x32xf32>
    %24 = arith.mulf %22, %23 : vector<16x32xf32>
    %c0_15 = arith.constant 0 : index
    %c0_16 = arith.constant 0 : index
    %25 = vector.load %arg5[%c0_15, %c0_16] : memref<16x32xf32, #tpu.memory_space<vmem>>, vector<16x32xf32>
    tpu.vector_store %arg5[%c0_15, %c0_16], %24 {strides = array<i32>} : memref<16x32xf32, #tpu.memory_space<vmem>>, vector<16x32xf32>,
    return
  }
}

</mosaic_0001>

<llo_original>
// kernel: tpu_custom_call.1
$region0: #{tpu_custom_call.1}
  #allocation0 [shape = 'u32[]', space=smem, size = 0x4, offset = 0x4, fixed_abs, tag = 'smem constant byte address 0x4 - core index']
  #allocation1 [shape = 'u32[144,128]{1,0:T(1,128)}', space=vmem, size = 0x12000, scoped, tag = 'internal scratch']
  %s0 = inlined_call_operand.vmem [shape: f32[16,4,64], index: 0, kind: input, shape index: {}]
  %s1 = inlined_call_operand.vmem [shape: f32[32,4], index: 1, kind: input, shape index: {}]
  %s2 = inlined_call_operand.vmem [shape: f32[32,1], index: 2, kind: input, shape index: {}]
  %s3 = inlined_call_operand.vmem [shape: f32[32,32], index: 3, kind: input, shape index: {}]
  %s4 = inlined_call_operand.vmem [shape: f32[32,1], index: 4, kind: input, shape index: {}]
  %s5 = inlined_call_operand.hbm [shape: f32[16,32], index: 5, kind: output, shape index: {}]
  %s6 = sld [smem:[#allocation0]]
  $region30: #{tpu_custom_call.1} parent=0
    _
  %s8 = ssub.s32 1, %s6
  %s9 = scalar_select 0, %s8, %s6
  $region1: #{tpu_custom_call.1} parent=0
    #allocation2 [shape = 'u8[8192]{0}', space=vmem, size = 0x2000, scoped, tag = 'output window, operand 0, single buffered']
    #allocation3 [shape = 's32[1]{0}', space=sflag, size = 0x4, scoped, tag = 'scoped memory for tpu_custom_call.1']
    %10 = vsyncpa [#allocation3], 0
    // Predicated region
    $region2: #{tpu_custom_call.1} parent=1 // pred_check
      _
    $region3: #{tpu_custom_call.1} parent=1 // pred_check_branch
      %12 = sbr.rel (0) target = $region5
    $region4: #{tpu_custom_call.1} parent=1 // pred_region
      _
    $region5: #{tpu_custom_call.1} parent=1 // pred_fallthru
      _
    // Predicated region
    $region6: #{tpu_custom_call.1} parent=1 // pred_check
      _
    $region7: #{tpu_custom_call.1} parent=1 // pred_check_branch
      %14 = sbr.rel (0) target = $region9
    $region8: #{tpu_custom_call.1} parent=1 // pred_region
      _
    $region9: #{tpu_custom_call.1} parent=1 // pred_fallthru
      _
    // Predicated region
    $region10: #{tpu_custom_call.1} parent=1 // pred_check
      _
    $region11: #{tpu_custom_call.1} parent=1 // pred_check_branch
      %16 = sbr.rel (0) target = $region13
    $region12: #{tpu_custom_call.1} parent=1 // pred_region
      _
    $region13: #{tpu_custom_call.1} parent=1 // pred_fallthru
      _
    // Predicated region
    $region14: #{tpu_custom_call.1} parent=1 // pred_check
      _
    $region15: #{tpu_custom_call.1} parent=1 // pred_check_branch
      %18 = sbr.rel (0) target = $region17
    $region16: #{tpu_custom_call.1} parent=1 // pred_region
      _
    $region17: #{tpu_custom_call.1} parent=1 // pred_fallthru
      _
    // Predicated region
    $region18: #{tpu_custom_call.1} parent=1 // pred_check
      _
    $region19: #{tpu_custom_call.1} parent=1 // pred_check_branch
      %20 = sbr.rel (0) target = $region21
    $region20: #{tpu_custom_call.1} parent=1 // pred_region
      _
    $region21: #{tpu_custom_call.1} parent=1 // pred_fallthru
      _
    %v21 = vld [vmem:[%s0] sm:$0xf]
    %v22 = vld [vmem:[%s0 + $0x4] sm:$0xf]
    %v23 = vld [vmem:[%s0 + $0x8] sm:$0xf]
    %v24 = vld [vmem:[%s0 + $0xc] sm:$0xf]
    %v25 = vld [vmem:[%s0 + $0x10] sm:$0xf]
    %v26 = vld [vmem:[%s0 + $0x14] sm:$0xf]
    %v27 = vld [vmem:[%s0 + $0x18] sm:$0xf]
    %v28 = vld [vmem:[%s0 + $0x1c] sm:$0xf]
    %v29 = vld [vmem:[%s0 + $0x20] sm:$0xf]
    %v30 = vld [vmem:[%s0 + $0x24] sm:$0xf]
    %v31 = vld [vmem:[%s0 + $0x28] sm:$0xf]
    %v32 = vld [vmem:[%s0 + $0x2c] sm:$0xf]
    %v33 = vld [vmem:[%s0 + $0x30] sm:$0xf]
    %v34 = vld [vmem:[%s0 + $0x34] sm:$0xf]
    %v35 = vld [vmem:[%s0 + $0x38] sm:$0xf]
    %v36 = vld [vmem:[%s0 + $0x3c] sm:$0xf]
    %v37 = vld [vmem:[%s1] sm:$0xff]
    %v38 = vld [vmem:[%s1 + $0x8] sm:$0xff]
    %v39 = vld [vmem:[%s1 + $0x10] sm:$0xff]
    %v40 = vld [vmem:[%s1 + $0x18] sm:$0xff]
    %v41 = vld [vmem:[%s2] sm:$0xff]
    %v42 = vld [vmem:[%s2 + $0x8] sm:$0xff]
    %v43 = vld [vmem:[%s2 + $0x10] sm:$0xff]
    %v44 = vld [vmem:[%s2 + $0x18] sm:$0xff]
    %46 = vset.pattern.permute.xlu0 0
    %47 = vperm.xlu0 %46, %v41
    %v48 = vpop.permute.xlu0 %47
    %51 = vset.pattern.permute.xlu0 0
    %52 = vperm.xlu0 %51, %v42
    %v53 = vpop.permute.xlu0 %52
    %56 = vset.pattern.permute.xlu0 0
    %57 = vperm.xlu0 %56, %v43
    %v58 = vpop.permute.xlu0 %57
    %61 = vset.pattern.permute.xlu0 0
    %62 = vperm.xlu0 %61, %v44
    %v63 = vpop.permute.xlu0 %62
    %vm65 = vcmask 31744
    %v67 = vsel %vm65, %v37, 0
    %v70 = vsel %vm65, %v38, 0
    %v73 = vsel %vm65, %v39, 0
    %v76 = vsel %vm65, %v40, 0
    %vm78 = vcmask 1043456
    %v80 = vsel %vm78, %v21, 0
    %82 = vmatprep.subr.mxu0 0.0
    %83 = vmatpush1.msra.mxu0 %v80
    %84 = vmatprep.subr.mxu0 0.0
    %85 = vmatpush1.msra.mxu0 0.0
    %86 = vmatprep.subr.mxu0 0.0
    %87 = vmatpush1.msra.mxu0 0.0
    %88 = vmatprep.subr.mxu0 0.0
    %89 = vmatpush1.msra.mxu0 0.0
    %90 = vmatprep.subr.mxu0 0.0
    %91 = vmatpush1.msra.mxu0 0.0
    %92 = vmatprep.subr.mxu0 0.0
    %93 = vmatpush1.msra.mxu0 0.0
    %94 = vmatprep.subr.mxu0 0.0
    %95 = vmatpush1.msra.mxu0 0.0
    %96 = vmatprep.subr.mxu0 0.0
    %97 = vmatpush1.msra.mxu0 0.0
    %98 = vmatprep.subr.mxu0 0.0
    %99 = vmatpush1.msra.mxu0 0.0
    %100 = vmatprep.subr.mxu0 0.0
    %101 = vmatpush1.msra.mxu0 0.0
    %102 = vmatprep.subr.mxu0 0.0
    %103 = vmatpush1.msra.mxu0 0.0
    %104 = vmatprep.subr.mxu0 0.0
    %105 = vmatpush1.msra.mxu0 0.0
    %106 = vmatprep.subr.mxu0 0.0
    %107 = vmatpush1.msra.mxu0 0.0
    %108 = vmatprep.subr.mxu0 0.0
    %109 = vmatpush1.msra.mxu0 0.0
    %110 = vmatprep.subr.mxu0 0.0
    %111 = vmatpush1.msra.mxu0 0.0
    %112 = vmatprep.subr.mxu0 0.0
    %113 = vmatpush1.msra.mxu0 0.0
    %114 = vmatprep.subr.mxu0 0.0
    %115 = vmatpush1.msra.mxu0 0.0
    %116 = vmatprep.subr.mxu0 0.0
    %117 = vmatpush1.msra.mxu0 0.0
    %118 = vmatprep.subr.mxu0 0.0
    %119 = vmatpush1.msra.mxu0 0.0
    %120 = vmatprep.subr.mxu0 0.0
    %121 = vmatpush1.msra.mxu0 0.0
    %122 = vmatprep.subr.mxu0 0.0
    %123 = vmatpush1.msra.mxu0 0.0
    %124 = vmatprep.subr.mxu0 0.0
    %125 = vmatpush1.msra.mxu0 0.0
    %126 = vmatprep.subr.mxu0 0.0
    %127 = vmatpush1.msra.mxu0 0.0
    %128 = vmatprep.subr.mxu0 0.0
    %129 = vmatpush1.msra.mxu0 0.0
    %130 = vmatprep.subr.mxu0 0.0
    %131 = vmatpush1.msra.mxu0 0.0
    %132 = vmatprep.subr.mxu0 0.0
    %133 = vmatpush1.msra.mxu0 0.0
    %134 = vmatprep.subr.mxu0 0.0
    %135 = vmatpush1.msra.mxu0 0.0
    %136 = vmatprep.subr.mxu0 0.0
    %137 = vmatpush1.msra.mxu0 0.0
    %138 = vmatprep.subr.mxu0 0.0
    %139 = vmatpush1.msra.mxu0 0.0
    %140 = vmatprep.subr.mxu0 0.0
    %141 = vmatpush1.msra.mxu0 0.0
    %142 = vmatprep.subr.mxu0 0.0
    %143 = vmatpush1.msra.mxu0 0.0
    %144 = vmatprep.subr.mxu0 0.0
    %145 = vmatpush1.msra.mxu0 0.0
    %146 = vmatprep.mubr.f32.mxu0 0.0
    %147 = vmatmul.mubr.f32.gmra.mrb[0].mxu0 %v67
    %v148 = vpop.f32.mrb[0].mxu0
    %v149 = vadd.f32 %v48, %v148
    %v150 = vpop.f32.mrb[0].mxu0
    %151 = vmatprep.mubr.f32.mxu0 0.0
    %152 = vmatmul.mubr.f32.gmra.mrb[0].mxu0 %v70
    %v153 = vpop.f32.mrb[0].mxu0
    %v154 = vadd.f32 %v53, %v153
    %v155 = vpop.f32.mrb[0].mxu0
    %156 = vmatprep.mubr.f32.mxu0 0.0
    %157 = vmatmul.mubr.f32.gmra.mrb[0].mxu0 %v73
    %v158 = vpop.f32.mrb[0].mxu0
    %v159 = vadd.f32 %v58, %v158
    %v160 = vpop.f32.mrb[0].mxu0
    %161 = vmatprep.mubr.f32.mxu0 0.0
    %162 = vmatmul.mubr.f32.gmra.mrb[0].mxu0 %v76
    %v163 = vpop.f32.mrb[0].mxu0
    %v164 = vadd.f32 %v63, %v163
    %v165 = vpop.f32.mrb[0].mxu0
    %166 = vdwg.mxu0
    %v168 = vsel %vm78, %v22, 0
    %170 = vmatprep.subr.mxu0 0.0
    %171 = vmatpush1.msra.mxu0 %v168
    %172 = vmatprep.subr.mxu0 0.0
    %173 = vmatpush1.msra.mxu0 0.0
    %174 = vmatprep.subr.mxu0 0.0
    %175 = vmatpush1.msra.mxu0 0.0
    %176 = vmatprep.subr.mxu0 0.0
    %177 = vmatpush1.msra.mxu0 0.0
    %178 = vmatprep.subr.mxu0 0.0
    %179 = vmatpush1.msra.mxu0 0.0
    %180 = vmatprep.subr.mxu0 0.0
    %181 = vmatpush1.msra.mxu0 0.0
    %182 = vmatprep.subr.mxu0 0.0
    %183 = vmatpush1.msra.mxu0 0.0
    %184 = vmatprep.subr.mxu0 0.0
    %185 = vmatpush1.msra.mxu0 0.0
    %186 = vmatprep.subr.mxu0 0.0
    %187 = vmatpush1.msra.mxu0 0.0
    %188 = vmatprep.subr.mxu0 0.0
    %189 = vmatpush1.msra.mxu0 0.0
    %190 = vmatprep.subr.mxu0 0.0
    %191 = vmatpush1.msra.mxu0 0.0
    %192 = vmatprep.subr.mxu0 0.0
    %193 = vmatpush1.msra.mxu0 0.0
    %194 = vmatprep.subr.mxu0 0.0
    %195 = vmatpush1.msra.mxu0 0.0
    %196 = vmatprep.subr.mxu0 0.0
    %197 = vmatpush1.msra.mxu0 0.0
    %198 = vmatprep.subr.mxu0 0.0
    %199 = vmatpush1.msra.mxu0 0.0
    %200 = vmatprep.subr.mxu0 0.0
    %201 = vmatpush1.msra.mxu0 0.0
    %202 = vmatprep.subr.mxu0 0.0
    %203 = vmatpush1.msra.mxu0 0.0
    %204 = vmatprep.subr.mxu0 0.0
    %205 = vmatpush1.msra.mxu0 0.0
    %206 = vmatprep.subr.mxu0 0.0
    %207 = vmatpush1.msra.mxu0 0.0
    %208 = vmatprep.subr.mxu0 0.0
    %209 = vmatpush1.msra.mxu0 0.0
    %210 = vmatprep.subr.mxu0 0.0
    %211 = vmatpush1.msra.mxu0 0.0
    %212 = vmatprep.subr.mxu0 0.0
    %213 = vmatpush1.msra.mxu0 0.0
    %214 = vmatprep.subr.mxu0 0.0
    %215 = vmatpush1.msra.mxu0 0.0
    %216 = vmatprep.subr.mxu0 0.0
    %217 = vmatpush1.msra.mxu0 0.0
    %218 = vmatprep.subr.mxu0 0.0
    %219 = vmatpush1.msra.mxu0 0.0
    %220 = vmatprep.subr.mxu0 0.0
    %221 = vmatpush1.msra.mxu0 0.0
    %222 = vmatprep.subr.mxu0 0.0
    %223 = vmatpush1.msra.mxu0 0.0
    %224 = vmatprep.subr.mxu0 0.0
    %225 = vmatpush1.msra.mxu0 0.0
    %226 = vmatprep.subr.mxu0 0.0
    %227 = vmatpush1.msra.mxu0 0.0
    %228 = vmatprep.subr.mxu0 0.0
    %229 = vmatpush1.msra.mxu0 0.0
    %230 = vmatprep.subr.mxu0 0.0
    %231 = vmatpush1.msra.mxu0 0.0
    %232 = vmatprep.subr.mxu0 0.0
    %233 = vmatpush1.msra.mxu0 0.0
    %234 = vmatprep.mubr.f32.mxu0 0.0
    %235 = vmatmul.mubr.f32.gmra.mrb[0].mxu0 %v67
    %v236 = vpop.f32.mrb[0].mxu0
    %v237 = vadd.f32 %v48, %v236
    %v238 = vpop.f32.mrb[0].mxu0
    %239 = vmatprep.mubr.f32.mxu0 0.0
    %240 = vmatmul.mubr.f32.gmra.mrb[0].mxu0 %v70
    %v241 = vpop.f32.mrb[0].mxu0
    %v242 = vadd.f32 %v53, %v241
    %v243 = vpop.f32.mrb[0].mxu0
    %244 = vmatprep.mubr.f32.mxu0 0.0
    %245 = vmatmul.mubr.f32.gmra.mrb[0].mxu0 %v73
    %v246 = vpop.f32.mrb[0].mxu0
    %v247 = vadd.f32 %v58, %v246
    %v248 = vpop.f32.mrb[0].mxu0
    %249 = vmatprep.mubr.f32.mxu0 0.0
    %250 = vmatmul.mubr.f32.gmra.mrb[0].mxu0 %v76
    %v251 = vpop.f32.mrb[0].mxu0
    %v252 = vadd.f32 %v63, %v251
    %v253 = vpop.f32.mrb[0].mxu0
    %254 = vdwg.mxu0
    %v256 = vsel %vm78, %v23, 0
    %258 = vmatprep.subr.mxu0 0.0
    %259 = vmatpush1.msra.mxu0 %v256
    %260 = vmatprep.subr.mxu0 0.0
    %261 = vmatpush1.msra.mxu0 0.0
    %262 = vmatprep.subr.mxu0 0.0
    %263 = vmatpush1.msra.mxu0 0.0
    %264 = vmatprep.subr.mxu0 0.0
    %265 = vmatpush1.msra.mxu0 0.0
    %266 = vmatprep.subr.mxu0 0.0
    %267 = vmatpush1.msra.mxu0 0.0
    %268 = vmatprep.subr.mxu0 0.0
    %269 = vmatpush1.msra.mxu0 0.0
    %270 = vmatprep.subr.mxu0 0.0
    %271 = vmatpush1.msra.mxu0 0.0
    %272 = vmatprep.subr.mxu0 0.0
    %273 = vmatpush1.msra.mxu0 0.0
    %274 = vmatprep.subr.mxu0 0.0
    %275 = vmatpush1.msra.mxu0 0.0
    %276 = vmatprep.subr.mxu0 0.0
    %277 = vmatpush1.msra.mxu0 0.0
    %278 = vmatprep.subr.mxu0 0.0
    %279 = vmatpush1.msra.mxu0 0.0
    %280 = vmatprep.subr.mxu0 0.0
    %281 = vmatpush1.msra.mxu0 0.0
    %282 = vmatprep.subr.mxu0 0.0
    %283 = vmatpush1.msra.mxu0 0.0
    %284 = vmatprep.subr.mxu0 0.0
    %285 = vmatpush1.msra.mxu0 0.0
    %286 = vmatprep.subr.mxu0 0.0
    %287 = vmatpush1.msra.mxu0 0.0
    %288 = vmatprep.subr.mxu0 0.0
    %289 = vmatpush1.msra.mxu0 0.0
    %290 = vmatprep.subr.mxu0 0.0
    %291 = vmatpush1.msra.mxu0 0.0
    %292 = vmatprep.subr.mxu0 0.0
    %293 = vmatpush1.msra.mxu0 0.0
    %294 = vmatprep.subr.mxu0 0.0
    %295 = vmatpush1.msra.mxu0 0.0
    %296 = vmatprep.subr.mxu0 0.0
    %297 = vmatpush1.msra.mxu0 0.0
    %298 = vmatprep.subr.mxu0 0.0
    %299 = vmatpush1.msra.mxu0 0.0
    %300 = vmatprep.subr.mxu0 0.0
    %301 = vmatpush1.msra.mxu0 0.0
    %302 = vmatprep.subr.mxu0 0.0
    %303 = vmatpush1.msra.mxu0 0.0
    %304 = vmatprep.subr.mxu0 0.0
    %305 = vmatpush1.msra.mxu0 0.0
    %306 = vmatprep.subr.mxu0 0.0
    %307 = vmatpush1.msra.mxu0 0.0
    %308 = vmatprep.subr.mxu0 0.0
    %309 = vmatpush1.msra.mxu0 0.0
    %310 = vmatprep.subr.mxu0 0.0
    %311 = vmatpush1.msra.mxu0 0.0
    %312 = vmatprep.subr.mxu0 0.0
    %313 = vmatpush1.msra.mxu0 0.0
    %314 = vmatprep.subr.mxu0 0.0
    %315 = vmatpush1.msra.mxu0 0.0
    %316 = vmatprep.subr.mxu0 0.0
    %317 = vmatpush1.msra.mxu0 0.0
    %318 = vmatprep.subr.mxu0 0.0
    %319 = vmatpush1.msra.mxu0 0.0
    %320 = vmatprep.subr.mxu0 0.0
    %321 = vmatpush1.msra.mxu0 0.0
    %322 = vmatprep.mubr.f32.mxu0 0.0
    %323 = vmatmul.mubr.f32.gmra.mrb[0].mxu0 %v67
    %v324 = vpop.f32.mrb[0].mxu0
    %v325 = vadd.f32 %v48, %v324
    %v326 = vpop.f32.mrb[0].mxu0
    %327 = vmatprep.mubr.f32.mxu0 0.0
    %328 = vmatmul.mubr.f32.gmra.mrb[0].mxu0 %v70
    %v329 = vpop.f32.mrb[0].mxu0
    %v330 = vadd.f32 %v53, %v329
    %v331 = vpop.f32.mrb[0].mxu0
    %332 = vmatprep.mubr.f32.mxu0 0.0
    %333 = vmatmul.mubr.f32.gmra.mrb[0].mxu0 %v73
    %v334 = vpop.f32.mrb[0].mxu0
    %v335 = vadd.f32 %v58, %v334
    %v336 = vpop.f32.mrb[0].mxu0
    %337 = vmatprep.mubr.f32.mxu0 0.0
    %338 = vmatmul.mubr.f32.gmra.mrb[0].mxu0 %v76
    %v339 = vpop.f32.mrb[0].mxu0
    %v340 = vadd.f32 %v63, %v339
    %v341 = vpop.f32.mrb[0].mxu0
    %342 = vdwg.mxu0
    %v344 = vsel %vm78, %v24, 0
    %346 = vmatprep.subr.mxu0 0.0
    %347 = vmatpush1.msra.mxu0 %v344
    %348 = vmatprep.subr.mxu0 0.0
    %349 = vmatpush1.msra.mxu0 0.0
    %350 = vmatprep.subr.mxu0 0.0
    %351 = vmatpush1.msra.mxu0 0.0
    %352 = vmatprep.subr.mxu0 0.0
    %353 = vmatpush1.msra.mxu0 0.0
    %354 = vmatprep.subr.mxu0 0.0
    %355 = vmatpush1.msra.mxu0 0.0
    %356 = vmatprep.subr.mxu0 0.0
    %357 = vmatpush1.msra.mxu0 0.0
    %358 = vmatprep.subr.mxu0 0.0
    %359 = vmatpush1.msra.mxu0 0.0
    %360 = vmatprep.subr.mxu0 0.0
    %361 = vmatpush1.msra.mxu0 0.0
    %362 = vmatprep.subr.mxu0 0.0
    %363 = vmatpush1.msra.mxu0 0.0
    %364 = vmatprep.subr.mxu0 0.0
    %365 = vmatpush1.msra.mxu0 0.0
    %366 = vmatprep.subr.mxu0 0.0
    %367 = vmatpush1.msra.mxu0 0.0
    %368 = vmatprep.subr.mxu0 0.0
    %369 = vmatpush1.msra.mxu0 0.0
    %370 = vmatprep.subr.mxu0 0.0
    %371 = vmatpush1.msra.mxu0 0.0
    %372 = vmatprep.subr.mxu0 0.0
    %373 = vmatpush1.msra.mxu0 0.0
    %374 = vmatprep.subr.mxu0 0.0
    %375 = vmatpush1.msra.mxu0 0.0
    %376 = vmatprep.subr.mxu0 0.0
    %377 = vmatpush1.msra.mxu0 0.0
    %378 = vmatprep.subr.mxu0 0.0
    %379 = vmatpush1.msra.mxu0 0.0
    %380 = vmatprep.subr.mxu0 0.0
    %381 = vmatpush1.msra.mxu0 0.0
    %382 = vmatprep.subr.mxu0 0.0
    %383 = vmatpush1.msra.mxu0 0.0
    %384 = vmatprep.subr.mxu0 0.0
    %385 = vmatpush1.msra.mxu0 0.0
    %386 = vmatprep.subr.mxu0 0.0
    %387 = vmatpush1.msra.mxu0 0.0
    %388 = vmatprep.subr.mxu0 0.0
    %389 = vmatpush1.msra.mxu0 0.0
    %390 = vmatprep.subr.mxu0 0.0
    %391 = vmatpush1.msra.mxu0 0.0
    %392 = vmatprep.subr.mxu0 0.0
    %393 = vmatpush1.msra.mxu0 0.0
    %394 = vmatprep.subr.mxu0 0.0
    %395 = vmatpush1.msra.mxu0 0.0
    %396 = vmatprep.subr.mxu0 0.0
    %397 = vmatpush1.msra.mxu0 0.0
    %398 = vmatprep.subr.mxu0 0.0
    %399 = vmatpush1.msra.mxu0 0.0
    %400 = vmatprep.subr.mxu0 0.0
    %401 = vmatpush1.msra.mxu0 0.0
    %402 = vmatprep.subr.mxu0 0.0
    %403 = vmatpush1.msra.mxu0 0.0
    %404 = vmatprep.subr.mxu0 0.0
    %405 = vmatpush1.msra.mxu0 0.0
    %406 = vmatprep.subr.mxu0 0.0
    %407 = vmatpush1.msra.mxu0 0.0
    %408 = vmatprep.subr.mxu0 0.0
    %409 = vmatpush1.msra.mxu0 0.0
    %410 = vmatprep.mubr.f32.mxu0 0.0
    %411 = vmatmul.mubr.f32.gmra.mrb[0].mxu0 %v67
    %v412 = vpop.f32.mrb[0].mxu0
    %v413 = vadd.f32 %v48, %v412
    %v414 = vpop.f32.mrb[0].mxu0
    %415 = vmatprep.mubr.f32.mxu0 0.0
    %416 = vmatmul.mubr.f32.gmra.mrb[0].mxu0 %v70
    %v417 = vpop.f32.mrb[0].mxu0
    %v418 = vadd.f32 %v53, %v417
    %v419 = vpop.f32.mrb[0].mxu0
    %420 = vmatprep.mubr.f32.mxu0 0.0
    %421 = vmatmul.mubr.f32.gmra.mrb[0].mxu0 %v73
    %v422 = vpop.f32.mrb[0].mxu0
    %v423 = vadd.f32 %v58, %v422
    %v424 = vpop.f32.mrb[0].mxu0
    %425 = vmatprep.mubr.f32.mxu0 0.0
    %426 = vmatmul.mubr.f32.gmra.mrb[0].mxu0 %v76
    %v427 = vpop.f32.mrb[0].mxu0
    %v428 = vadd.f32 %v63, %v427
    %v429 = vpop.f32.mrb[0].mxu0
    %430 = vdwg.mxu0
    %v432 = vsel %vm78, %v25, 0
    %434 = vmatprep.subr.mxu0 0.0
    %435 = vmatpush1.msra.mxu0 %v432
    %436 = vmatprep.subr.mxu0 0.0
    %437 = vmatpush1.msra.mxu0 0.0
    %438 = vmatprep.subr.mxu0 0.0
    %439 = vmatpush1.msra.mxu0 0.0
    %440 = vmatprep.subr.mxu0 0.0
    %441 = vmatpush1.msra.mxu0 0.0
    %442 = vmatprep.subr.mxu0 0.0
    %443 = vmatpush1.msra.mxu0 0.0
    %444 = vmatprep.subr.mxu0 0.0
    %445 = vmatpush1.msra.mxu0 0.0
    %446 = vmatprep.subr.mxu0 0.0
    %447 = vmatpush1.msra.mxu0 0.0
    %448 = vmatprep.subr.mxu0 0.0
    %449 = vmatpush1.msra.mxu0 0.0
    %450 = vmatprep.subr.mxu0 0.0
    %451 = vmatpush1.msra.mxu0 0.0
    %452 = vmatprep.subr.mxu0 0.0
    %453 = vmatpush1.msra.mxu0 0.0
    %454 = vmatprep.subr.mxu0 0.0
    %455 = vmatpush1.msra.mxu0 0.0
    %456 = vmatprep.subr.mxu0 0.0
    %457 = vmatpush1.msra.mxu0 0.0
    %458 = vmatprep.subr.mxu0 0.0
    %459 = vmatpush1.msra.mxu0 0.0
    %460 = vmatprep.subr.mxu0 0.0
    %461 = vmatpush1.msra.mxu0 0.0
    %462 = vmatprep.subr.mxu0 0.0
    %463 = vmatpush1.msra.mxu0 0.0
    %464 = vmatprep.subr.mxu0 0.0
    %465 = vmatpush1.msra.mxu0 0.0
    %466 = vmatprep.subr.mxu0 0.0
    %467 = vmatpush1.msra.mxu0 0.0
    %468 = vmatprep.subr.mxu0 0.0
    %469 = vmatpush1.msra.mxu0 0.0
    %470 = vmatprep.subr.mxu0 0.0
    %471 = vmatpush1.msra.mxu0 0.0
    %472 = vmatprep.subr.mxu0 0.0
    %473 = vmatpush1.msra.mxu0 0.0
    %474 = vmatprep.subr.mxu0 0.0
    %475 = vmatpush1.msra.mxu0 0.0
    %476 = vmatprep.subr.mxu0 0.0
    %477 = vmatpush1.msra.mxu0 0.0
    %478 = vmatprep.subr.mxu0 0.0
    %479 = vmatpush1.msra.mxu0 0.0
    %480 = vmatprep.subr.mxu0 0.0
    %481 = vmatpush1.msra.mxu0 0.0
    %482 = vmatprep.subr.mxu0 0.0
    %483 = vmatpush1.msra.mxu0 0.0
    %484 = vmatprep.subr.mxu0 0.0
    %485 = vmatpush1.msra.mxu0 0.0
    %486 = vmatprep.subr.mxu0 0.0
    %487 = vmatpush1.msra.mxu0 0.0
    %488 = vmatprep.subr.mxu0 0.0
    %489 = vmatpush1.msra.mxu0 0.0
    %490 = vmatprep.subr.mxu0 0.0
    %491 = vmatpush1.msra.mxu0 0.0
    %492 = vmatprep.subr.mxu0 0.0
    %493 = vmatpush1.msra.mxu0 0.0
    %494 = vmatprep.subr.mxu0 0.0
    %495 = vmatpush1.msra.mxu0 0.0
    %496 = vmatprep.subr.mxu0 0.0
    %497 = vmatpush1.msra.mxu0 0.0
    %498 = vmatprep.mubr.f32.mxu0 0.0
    %499 = vmatmul.mubr.f32.gmra.mrb[0].mxu0 %v67
    %v500 = vpop.f32.mrb[0].mxu0
    %v501 = vadd.f32 %v48, %v500
    %v502 = vpop.f32.mrb[0].mxu0
    %503 = vmatprep.mubr.f32.mxu0 0.0
    %504 = vmatmul.mubr.f32.gmra.mrb[0].mxu0 %v70
    %v505 = vpop.f32.mrb[0].mxu0
    %v506 = vadd.f32 %v53, %v505
    %v507 = vpop.f32.mrb[0].mxu0
    %508 = vmatprep.mubr.f32.mxu0 0.0
    %509 = vmatmul.mubr.f32.gmra.mrb[0].mxu0 %v73
    %v510 = vpop.f32.mrb[0].mxu0
    %v511 = vadd.f32 %v58, %v510
    %v512 = vpop.f32.mrb[0].mxu0
    %513 = vmatprep.mubr.f32.mxu0 0.0
    %514 = vmatmul.mubr.f32.gmra.mrb[0].mxu0 %v76
    %v515 = vpop.f32.mrb[0].mxu0
    %v516 = vadd.f32 %v63, %v515
    %v517 = vpop.f32.mrb[0].mxu0
    %518 = vdwg.mxu0
    %v520 = vsel %vm78, %v26, 0
    %522 = vmatprep.subr.mxu0 0.0
    %523 = vmatpush1.msra.mxu0 %v520
    %524 = vmatprep.subr.mxu0 0.0
    %525 = vmatpush1.msra.mxu0 0.0
    %526 = vmatprep.subr.mxu0 0.0
    %527 = vmatpush1.msra.mxu0 0.0
    %528 = vmatprep.subr.mxu0 0.0
    %529 = vmatpush1.msra.mxu0 0.0
    %530 = vmatprep.subr.mxu0 0.0
    %531 = vmatpush1.msra.mxu0 0.0
    %532 = vmatprep.subr.mxu0 0.0
    %533 = vmatpush1.msra.mxu0 0.0
    %534 = vmatprep.subr.mxu0 0.0
    %535 = vmatpush1.msra.mxu0 0.0
    %536 = vmatprep.subr.mxu0 0.0
    %537 = vmatpush1.msra.mxu0 0.0
    %538 = vmatprep.subr.mxu0 0.0
    %539 = vmatpush1.msra.mxu0 0.0
    %540 = vmatprep.subr.mxu0 0.0
    %541 = vmatpush1.msra.mxu0 0.0
    %542 = vmatprep.subr.mxu0 0.0
    %543 = vmatpush1.msra.mxu0 0.0
    %544 = vmatprep.subr.mxu0 0.0
    %545 = vmatpush1.msra.mxu0 0.0
    %546 = vmatprep.subr.mxu0 0.0
    %547 = vmatpush1.msra.mxu0 0.0
    %548 = vmatprep.subr.mxu0 0.0
    %549 = vmatpush1.msra.mxu0 0.0
    %550 = vmatprep.subr.mxu0 0.0
    %551 = vmatpush1.msra.mxu0 0.0
    %552 = vmatprep.subr.mxu0 0.0
    %553 = vmatpush1.msra.mxu0 0.0
    %554 = vmatprep.subr.mxu0 0.0
    %555 = vmatpush1.msra.mxu0 0.0
    %556 = vmatprep.subr.mxu0 0.0
    %557 = vmatpush1.msra.mxu0 0.0
    %558 = vmatprep.subr.mxu0 0.0
    %559 = vmatpush1.msra.mxu0 0.0
    %560 = vmatprep.subr.mxu0 0.0
    %561 = vmatpush1.msra.mxu0 0.0
    %562 = vmatprep.subr.mxu0 0.0
    %563 = vmatpush1.msra.mxu0 0.0
    %564 = vmatprep.subr.mxu0 0.0
    %565 = vmatpush1.msra.mxu0 0.0
    %566 = vmatprep.subr.mxu0 0.0
    %567 = vmatpush1.msra.mxu0 0.0
    %568 = vmatprep.subr.mxu0 0.0
    %569 = vmatpush1.msra.mxu0 0.0
    %570 = vmatprep.subr.mxu0 0.0
    %571 = vmatpush1.msra.mxu0 0.0
    %572 = vmatprep.subr.mxu0 0.0
    %573 = vmatpush1.msra.mxu0 0.0
    %574 = vmatprep.subr.mxu0 0.0
    %575 = vmatpush1.msra.mxu0 0.0
    %576 = vmatprep.subr.mxu0 0.0
    %577 = vmatpush1.msra.mxu0 0.0
    %578 = vmatprep.subr.mxu0 0.0
    %579 = vmatpush1.msra.mxu0 0.0
    %580 = vmatprep.subr.mxu0 0.0
    %581 = vmatpush1.msra.mxu0 0.0
    %582 = vmatprep.subr.mxu0 0.0
    %583 = vmatpush1.msra.mxu0 0.0
    %584 = vmatprep.subr.mxu0 0.0
    %585 = vmatpush1.msra.mxu0 0.0
    %586 = vmatprep.mubr.f32.mxu0 0.0
    %587 = vmatmul.mubr.f32.gmra.mrb[0].mxu0 %v67
    %v588 = vpop.f32.mrb[0].mxu0
    %v589 = vadd.f32 %v48, %v588
    %v590 = vpop.f32.mrb[0].mxu0
    %591 = vmatprep.mubr.f32.mxu0 0.0
    %592 = vmatmul.mubr.f32.gmra.mrb[0].mxu0 %v70
    %v593 = vpop.f32.mrb[0].mxu0
    %v594 = vadd.f32 %v53, %v593
    %v595 = vpop.f32.mrb[0].mxu0
    %596 = vmatprep.mubr.f32.mxu0 0.0
    %597 = vmatmul.mubr.f32.gmra.mrb[0].mxu0 %v73
    %v598 = vpop.f32.mrb[0].mxu0
    %v599 = vadd.f32 %v58, %v598
    %v600 = vpop.f32.mrb[0].mxu0
    %601 = vmatprep.mubr.f32.mxu0 0.0
    %602 = vmatmul.mubr.f32.gmra.mrb[0].mxu0 %v76
    %v603 = vpop.f32.mrb[0].mxu0
    %v604 = vadd.f32 %v63, %v603
    %v605 = vpop.f32.mrb[0].mxu0
    %606 = vdwg.mxu0
    %v608 = vsel %vm78, %v27, 0
    %610 = vmatprep.subr.mxu0 0.0
    %611 = vmatpush1.msra.mxu0 %v608
    %612 = vmatprep.subr.mxu0 0.0
    %613 = vmatpush1.msra.mxu0 0.0
    %614 = vmatprep.subr.mxu0 0.0
    %615 = vmatpush1.msra.mxu0 0.0
    %616 = vmatprep.subr.mxu0 0.0
    %617 = vmatpush1.msra.mxu0 0.0
    %618 = vmatprep.subr.mxu0 0.0
    %619 = vmatpush1.msra.mxu0 0.0
    %620 = vmatprep.subr.mxu0 0.0
    %621 = vmatpush1.msra.mxu0 0.0
    %622 = vmatprep.subr.mxu0 0.0
    %623 = vmatpush1.msra.mxu0 0.0
    %624 = vmatprep.subr.mxu0 0.0
    %625 = vmatpush1.msra.mxu0 0.0
    %626 = vmatprep.subr.mxu0 0.0
    %627 = vmatpush1.msra.mxu0 0.0
    %628 = vmatprep.subr.mxu0 0.0
    %629 = vmatpush1.msra.mxu0 0.0
    %630 = vmatprep.subr.mxu0 0.0
    %631 = vmatpush1.msra.mxu0 0.0
    %632 = vmatprep.subr.mxu0 0.0
    %633 = vmatpush1.msra.mxu0 0.0
    %634 = vmatprep.subr.mxu0 0.0
    %635 = vmatpush1.msra.mxu0 0.0
    %636 = vmatprep.subr.mxu0 0.0
    %637 = vmatpush1.msra.mxu0 0.0
    %638 = vmatprep.subr.mxu0 0.0
    %639 = vmatpush1.msra.mxu0 0.0
    %640 = vmatprep.subr.mxu0 0.0
    %641 = vmatpush1.msra.mxu0 0.0
    %642 = vmatprep.subr.mxu0 0.0
    %643 = vmatpush1.msra.mxu0 0.0
    %644 = vmatprep.subr.mxu0 0.0
    %645 = vmatpush1.msra.mxu0 0.0
    %646 = vmatprep.subr.mxu0 0.0
    %647 = vmatpush1.msra.mxu0 0.0
    %648 = vmatprep.subr.mxu0 0.0
    %649 = vmatpush1.msra.mxu0 0.0
    %650 = vmatprep.subr.mxu0 0.0
    %651 = vmatpush1.msra.mxu0 0.0
    %652 = vmatprep.subr.mxu0 0.0
    %653 = vmatpush1.msra.mxu0 0.0
    %654 = vmatprep.subr.mxu0 0.0
    %655 = vmatpush1.msra.mxu0 0.0
    %656 = vmatprep.subr.mxu0 0.0
    %657 = vmatpush1.msra.mxu0 0.0
    %658 = vmatprep.subr.mxu0 0.0
    %659 = vmatpush1.msra.mxu0 0.0
    %660 = vmatprep.subr.mxu0 0.0
    %661 = vmatpush1.msra.mxu0 0.0
    %662 = vmatprep.subr.mxu0 0.0
    %663 = vmatpush1.msra.mxu0 0.0
    %664 = vmatprep.subr.mxu0 0.0
    %665 = vmatpush1.msra.mxu0 0.0
    %666 = vmatprep.subr.mxu0 0.0
    %667 = vmatpush1.msra.mxu0 0.0
    %668 = vmatprep.subr.mxu0 0.0
    %669 = vmatpush1.msra.mxu0 0.0
    %670 = vmatprep.subr.mxu0 0.0
    %671 = vmatpush1.msra.mxu0 0.0
    %672 = vmatprep.subr.mxu0 0.0
    %673 = vmatpush1.msra.mxu0 0.0
    %674 = vmatprep.mubr.f32.mxu0 0.0
    %675 = vmatmul.mubr.f32.gmra.mrb[0].mxu0 %v67
    %v676 = vpop.f32.mrb[0].mxu0
    %v677 = vadd.f32 %v48, %v676
    %v678 = vpop.f32.mrb[0].mxu0
    %679 = vmatprep.mubr.f32.mxu0 0.0
    %680 = vmatmul.mubr.f32.gmra.mrb[0].mxu0 %v70
    %v681 = vpop.f32.mrb[0].mxu0
    %v682 = vadd.f32 %v53, %v681
    %v683 = vpop.f32.mrb[0].mxu0
    %684 = vmatprep.mubr.f32.mxu0 0.0
    %685 = vmatmul.mubr.f32.gmra.mrb[0].mxu0 %v73
    %v686 = vpop.f32.mrb[0].mxu0
    %v687 = vadd.f32 %v58, %v686
    %v688 = vpop.f32.mrb[0].mxu0
    %689 = vmatprep.mubr.f32.mxu0 0.0
    %690 = vmatmul.mubr.f32.gmra.mrb[0].mxu0 %v76
    %v691 = vpop.f32.mrb[0].mxu0
    %v692 = vadd.f32 %v63, %v691
    %v693 = vpop.f32.mrb[0].mxu0
    %694 = vdwg.mxu0
    %v696 = vsel %vm78, %v28, 0
    %698 = vmatprep.subr.mxu0 0.0
    %699 = vmatpush1.msra.mxu0 %v696
    %700 = vmatprep.subr.mxu0 0.0
    %701 = vmatpush1.msra.mxu0 0.0
    %702 = vmatprep.subr.mxu0 0.0
    %703 = vmatpush1.msra.mxu0 0.0
    %704 = vmatprep.subr.mxu0 0.0
    %705 = vmatpush1.msra.mxu0 0.0
    %706 = vmatprep.subr.mxu0 0.0
    %707 = vmatpush1.msra.mxu0 0.0
    %708 = vmatprep.subr.mxu0 0.0
    %709 = vmatpush1.msra.mxu0 0.0
    %710 = vmatprep.subr.mxu0 0.0
    %711 = vmatpush1.msra.mxu0 0.0
    %712 = vmatprep.subr.mxu0 0.0
    %713 = vmatpush1.msra.mxu0 0.0
    %714 = vmatprep.subr.mxu0 0.0
    %715 = vmatpush1.msra.mxu0 0.0
    %716 = vmatprep.subr.mxu0 0.0
    %717 = vmatpush1.msra.mxu0 0.0
    %718 = vmatprep.subr.mxu0 0.0
    %719 = vmatpush1.msra.mxu0 0.0
    %720 = vmatprep.subr.mxu0 0.0
    %721 = vmatpush1.msra.mxu0 0.0
    %722 = vmatprep.subr.mxu0 0.0
    %723 = vmatpush1.msra.mxu0 0.0
    %724 = vmatprep.subr.mxu0 0.0
    %725 = vmatpush1.msra.mxu0 0.0
    %726 = vmatprep.subr.mxu0 0.0
    %727 = vmatpush1.msra.mxu0 0.0
    %728 = vmatprep.subr.mxu0 0.0
    %729 = vmatpush1.msra.mxu0 0.0
    %730 = vmatprep.subr.mxu0 0.0
    %731 = vmatpush1.msra.mxu0 0.0
    %732 = vmatprep.subr.mxu0 0.0
    %733 = vmatpush1.msra.mxu0 0.0
    %734 = vmatprep.subr.mxu0 0.0
    %735 = vmatpush1.msra.mxu0 0.0
    %736 = vmatprep.subr.mxu0 0.0
    %737 = vmatpush1.msra.mxu0 0.0
    %738 = vmatprep.subr.mxu0 0.0
    %739 = vmatpush1.msra.mxu0 0.0
    %740 = vmatprep.subr.mxu0 0.0
    %741 = vmatpush1.msra.mxu0 0.0
    %742 = vmatprep.subr.mxu0 0.0
    %743 = vmatpush1.msra.mxu0 0.0
    %744 = vmatprep.subr.mxu0 0.0
    %745 = vmatpush1.msra.mxu0 0.0
    %746 = vmatprep.subr.mxu0 0.0
    %747 = vmatpush1.msra.mxu0 0.0
    %748 = vmatprep.subr.mxu0 0.0
    %749 = vmatpush1.msra.mxu0 0.0
    %750 = vmatprep.subr.mxu0 0.0
    %751 = vmatpush1.msra.mxu0 0.0
    %752 = vmatprep.subr.mxu0 0.0
    %753 = vmatpush1.msra.mxu0 0.0
    %754 = vmatprep.subr.mxu0 0.0
    %755 = vmatpush1.msra.mxu0 0.0
    %756 = vmatprep.subr.mxu0 0.0
    %757 = vmatpush1.msra.mxu0 0.0
    %758 = vmatprep.subr.mxu0 0.0
    %759 = vmatpush1.msra.mxu0 0.0
    %760 = vmatprep.subr.mxu0 0.0
    %761 = vmatpush1.msra.mxu0 0.0
    %762 = vmatprep.mubr.f32.mxu0 0.0
    %763 = vmatmul.mubr.f32.gmra.mrb[0].mxu0 %v67
    %v764 = vpop.f32.mrb[0].mxu0
    %v765 = vadd.f32 %v48, %v764
    %v766 = vpop.f32.mrb[0].mxu0
    %767 = vmatprep.mubr.f32.mxu0 0.0
    %768 = vmatmul.mubr.f32.gmra.mrb[0].mxu0 %v70
    %v769 = vpop.f32.mrb[0].mxu0
    %v770 = vadd.f32 %v53, %v769
    %v771 = vpop.f32.mrb[0].mxu0
    %772 = vmatprep.mubr.f32.mxu0 0.0
    %773 = vmatmul.mubr.f32.gmra.mrb[0].mxu0 %v73
    %v774 = vpop.f32.mrb[0].mxu0
    %v775 = vadd.f32 %v58, %v774
    %v776 = vpop.f32.mrb[0].mxu0
    %777 = vmatprep.mubr.f32.mxu0 0.0
    %778 = vmatmul.mubr.f32.gmra.mrb[0].mxu0 %v76
    %v779 = vpop.f32.mrb[0].mxu0
    %v780 = vadd.f32 %v63, %v779
    %v781 = vpop.f32.mrb[0].mxu0
    %782 = vdwg.mxu0
    %v784 = vsel %vm78, %v29, 0
    %786 = vmatprep.subr.mxu0 0.0
    %787 = vmatpush1.msra.mxu0 %v784
    %788 = vmatprep.subr.mxu0 0.0
    %789 = vmatpush1.msra.mxu0 0.0
    %790 = vmatprep.subr.mxu0 0.0
    %791 = vmatpush1.msra.mxu0 0.0
    %792 = vmatprep.subr.mxu0 0.0
    %793 = vmatpush1.msra.mxu0 0.0
    %794 = vmatprep.subr.mxu0 0.0
    %795 = vmatpush1.msra.mxu0 0.0
    %796 = vmatprep.subr.mxu0 0.0
    %797 = vmatpush1.msra.mxu0 0.0
    %798 = vmatprep.subr.mxu0 0.0
    %799 = vmatpush1.msra.mxu0 0.0
    %800 = vmatprep.subr.mxu0 0.0
    %801 = vmatpush1.msra.mxu0 0.0
    %802 = vmatprep.subr.mxu0 0.0
    %803 = vmatpush1.msra.mxu0 0.0
    %804 = vmatprep.subr.mxu0 0.0
    %805 = vmatpush1.msra.mxu0 0.0
    %806 = vmatprep.subr.mxu0 0.0
    %807 = vmatpush1.msra.mxu0 0.0
    %808 = vmatprep.subr.mxu0 0.0
    %809 = vmatpush1.msra.mxu0 0.0
    %810 = vmatprep.subr.mxu0 0.0
    %811 = vmatpush1.msra.mxu0 0.0
    %812 = vmatprep.subr.mxu0 0.0
    %813 = vmatpush1.msra.mxu0 0.0
    %814 = vmatprep.subr.mxu0 0.0
    %815 = vmatpush1.msra.mxu0 0.0
    %816 = vmatprep.subr.mxu0 0.0
    %817 = vmatpush1.msra.mxu0 0.0
    %818 = vmatprep.subr.mxu0 0.0
    %819 = vmatpush1.msra.mxu0 0.0
    %820 = vmatprep.subr.mxu0 0.0
    %821 = vmatpush1.msra.mxu0 0.0
    %822 = vmatprep.subr.mxu0 0.0
    %823 = vmatpush1.msra.mxu0 0.0
    %824 = vmatprep.subr.mxu0 0.0
    %825 = vmatpush1.msra.mxu0 0.0
    %826 = vmatprep.subr.mxu0 0.0
    %827 = vmatpush1.msra.mxu0 0.0
    %828 = vmatprep.subr.mxu0 0.0
    %829 = vmatpush1.msra.mxu0 0.0
    %830 = vmatprep.subr.mxu0 0.0
    %831 = vmatpush1.msra.mxu0 0.0
    %832 = vmatprep.subr.mxu0 0.0
    %833 = vmatpush1.msra.mxu0 0.0
    %834 = vmatprep.subr.mxu0 0.0
    %835 = vmatpush1.msra.mxu0 0.0
    %836 = vmatprep.subr.mxu0 0.0
    %837 = vmatpush1.msra.mxu0 0.0
    %838 = vmatprep.subr.mxu0 0.0
    %839 = vmatpush1.msra.mxu0 0.0
    %840 = vmatprep.subr.mxu0 0.0
    %841 = vmatpush1.msra.mxu0 0.0
    %842 = vmatprep.subr.mxu0 0.0
    %843 = vmatpush1.msra.mxu0 0.0
    %844 = vmatprep.subr.mxu0 0.0
    %845 = vmatpush1.msra.mxu0 0.0
    %846 = vmatprep.subr.mxu0 0.0
    %847 = vmatpush1.msra.mxu0 0.0
    %848 = vmatprep.subr.mxu0 0.0
    %849 = vmatpush1.msra.mxu0 0.0
    %850 = vmatprep.mubr.f32.mxu0 0.0
    %851 = vmatmul.mubr.f32.gmra.mrb[0].mxu0 %v67
    %v852 = vpop.f32.mrb[0].mxu0
    %v853 = vadd.f32 %v48, %v852
    %v854 = vpop.f32.mrb[0].mxu0
    %855 = vmatprep.mubr.f32.mxu0 0.0
    %856 = vmatmul.mubr.f32.gmra.mrb[0].mxu0 %v70
    %v857 = vpop.f32.mrb[0].mxu0
    %v858 = vadd.f32 %v53, %v857
    %v859 = vpop.f32.mrb[0].mxu0
    %860 = vmatprep.mubr.f32.mxu0 0.0
    %861 = vmatmul.mubr.f32.gmra.mrb[0].mxu0 %v73
    %v862 = vpop.f32.mrb[0].mxu0
    %v863 = vadd.f32 %v58, %v862
    %v864 = vpop.f32.mrb[0].mxu0
    %865 = vmatprep.mubr.f32.mxu0 0.0
    %866 = vmatmul.mubr.f32.gmra.mrb[0].mxu0 %v76
    %v867 = vpop.f32.mrb[0].mxu0
    %v868 = vadd.f32 %v63, %v867
    %v869 = vpop.f32.mrb[0].mxu0
    %870 = vdwg.mxu0
    %v872 = vsel %vm78, %v30, 0
    %874 = vmatprep.subr.mxu0 0.0
    %875 = vmatpush1.msra.mxu0 %v872
    %876 = vmatprep.subr.mxu0 0.0
    %877 = vmatpush1.msra.mxu0 0.0
    %878 = vmatprep.subr.mxu0 0.0
    %879 = vmatpush1.msra.mxu0 0.0
    %880 = vmatprep.subr.mxu0 0.0
    %881 = vmatpush1.msra.mxu0 0.0
    %882 = vmatprep.subr.mxu0 0.0
    %883 = vmatpush1.msra.mxu0 0.0
    %884 = vmatprep.subr.mxu0 0.0
    %885 = vmatpush1.msra.mxu0 0.0
    %886 = vmatprep.subr.mxu0 0.0
    %887 = vmatpush1.msra.mxu0 0.0
    %888 = vmatprep.subr.mxu0 0.0
    %889 = vmatpush1.msra.mxu0 0.0
    %890 = vmatprep.subr.mxu0 0.0
    %891 = vmatpush1.msra.mxu0 0.0
    %892 = vmatprep.subr.mxu0 0.0
    %893 = vmatpush1.msra.mxu0 0.0
    %894 = vmatprep.subr.mxu0 0.0
    %895 = vmatpush1.msra.mxu0 0.0
    %896 = vmatprep.subr.mxu0 0.0
    %897 = vmatpush1.msra.mxu0 0.0
    %898 = vmatprep.subr.mxu0 0.0
    %899 = vmatpush1.msra.mxu0 0.0
    %900 = vmatprep.subr.mxu0 0.0
    %901 = vmatpush1.msra.mxu0 0.0
    %902 = vmatprep.subr.mxu0 0.0
    %903 = vmatpush1.msra.mxu0 0.0
    %904 = vmatprep.subr.mxu0 0.0
    %905 = vmatpush1.msra.mxu0 0.0
    %906 = vmatprep.subr.mxu0 0.0
    %907 = vmatpush1.msra.mxu0 0.0
    %908 = vmatprep.subr.mxu0 0.0
    %909 = vmatpush1.msra.mxu0 0.0
    %910 = vmatprep.subr.mxu0 0.0
    %911 = vmatpush1.msra.mxu0 0.0
    %912 = vmatprep.subr.mxu0 0.0
    %913 = vmatpush1.msra.mxu0 0.0
    %914 = vmatprep.subr.mxu0 0.0
    %915 = vmatpush1.msra.mxu0 0.0
    %916 = vmatprep.subr.mxu0 0.0
    %917 = vmatpush1.msra.mxu0 0.0
    %918 = vmatprep.subr.mxu0 0.0
    %919 = vmatpush1.msra.mxu0 0.0
    %920 = vmatprep.subr.mxu0 0.0
    %921 = vmatpush1.msra.mxu0 0.0
    %922 = vmatprep.subr.mxu0 0.0
    %923 = vmatpush1.msra.mxu0 0.0
    %924 = vmatprep.subr.mxu0 0.0
    %925 = vmatpush1.msra.mxu0 0.0
    %926 = vmatprep.subr.mxu0 0.0
    %927 = vmatpush1.msra.mxu0 0.0
    %928 = vmatprep.subr.mxu0 0.0
    %929 = vmatpush1.msra.mxu0 0.0
    %930 = vmatprep.subr.mxu0 0.0
    %931 = vmatpush1.msra.mxu0 0.0
    %932 = vmatprep.subr.mxu0 0.0
    %933 = vmatpush1.msra.mxu0 0.0
    %934 = vmatprep.subr.mxu0 0.0
    %935 = vmatpush1.msra.mxu0 0.0
    %936 = vmatprep.subr.mxu0 0.0
    %937 = vmatpush1.msra.mxu0 0.0
    %938 = vmatprep.mubr.f32.mxu0 0.0
    %939 = vmatmul.mubr.f32.gmra.mrb[0].mxu0 %v67
    %v940 = vpop.f32.mrb[0].mxu0
    %v941 = vadd.f32 %v48, %v940
    %v942 = vpop.f32.mrb[0].mxu0
    %943 = vmatprep.mubr.f32.mxu0 0.0
    %944 = vmatmul.mubr.f32.gmra.mrb[0].mxu0 %v70
    %v945 = vpop.f32.mrb[0].mxu0
    %v946 = vadd.f32 %v53, %v945
    %v947 = vpop.f32.mrb[0].mxu0
    %948 = vmatprep.mubr.f32.mxu0 0.0
    %949 = vmatmul.mubr.f32.gmra.mrb[0].mxu0 %v73
    %v950 = vpop.f32.mrb[0].mxu0
    %v951 = vadd.f32 %v58, %v950
    %v952 = vpop.f32.mrb[0].mxu0
    %953 = vmatprep.mubr.f32.mxu0 0.0
    %954 = vmatmul.mubr.f32.gmra.mrb[0].mxu0 %v76
    %v955 = vpop.f32.mrb[0].mxu0
    %v956 = vadd.f32 %v63, %v955
    %v957 = vpop.f32.mrb[0].mxu0
    %958 = vdwg.mxu0
    %v960 = vsel %vm78, %v31, 0
    %962 = vmatprep.subr.mxu0 0.0
    %963 = vmatpush1.msra.mxu0 %v960
    %964 = vmatprep.subr.mxu0 0.0
    %965 = vmatpush1.msra.mxu0 0.0
    %966 = vmatprep.subr.mxu0 0.0
    %967 = vmatpush1.msra.mxu0 0.0
    %968 = vmatprep.subr.mxu0 0.0
    %969 = vmatpush1.msra.mxu0 0.0
    %970 = vmatprep.subr.mxu0 0.0
    %971 = vmatpush1.msra.mxu0 0.0
    %972 = vmatprep.subr.mxu0 0.0
    %973 = vmatpush1.msra.mxu0 0.0
    %974 = vmatprep.subr.mxu0 0.0
    %975 = vmatpush1.msra.mxu0 0.0
    %976 = vmatprep.subr.mxu0 0.0
    %977 = vmatpush1.msra.mxu0 0.0
    %978 = vmatprep.subr.mxu0 0.0
    %979 = vmatpush1.msra.mxu0 0.0
    %980 = vmatprep.subr.mxu0 0.0
    %981 = vmatpush1.msra.mxu0 0.0
    %982 = vmatprep.subr.mxu0 0.0
    %983 = vmatpush1.msra.mxu0 0.0
    %984 = vmatprep.subr.mxu0 0.0
    %985 = vmatpush1.msra.mxu0 0.0
    %986 = vmatprep.subr.mxu0 0.0
    %987 = vmatpush1.msra.mxu0 0.0
    %988 = vmatprep.subr.mxu0 0.0
    %989 = vmatpush1.msra.mxu0 0.0
    %990 = vmatprep.subr.mxu0 0.0
    %991 = vmatpush1.msra.mxu0 0.0
    %992 = vmatprep.subr.mxu0 0.0
    %993 = vmatpush1.msra.mxu0 0.0
    %994 = vmatprep.subr.mxu0 0.0
    %995 = vmatpush1.msra.mxu0 0.0
    %996 = vmatprep.subr.mxu0 0.0
    %997 = vmatpush1.msra.mxu0 0.0
    %998 = vmatprep.subr.mxu0 0.0
    %999 = vmatpush1.msra.mxu0 0.0
    %1000 = vmatprep.subr.mxu0 0.0
    %1001 = vmatpush1.msra.mxu0 0.0
    %1002 = vmatprep.subr.mxu0 0.0
    %1003 = vmatpush1.msra.mxu0 0.0
    %1004 = vmatprep.subr.mxu0 0.0
    %1005 = vmatpush1.msra.mxu0 0.0
    %1006 = vmatprep.subr.mxu0 0.0
    %1007 = vmatpush1.msra.mxu0 0.0
    %1008 = vmatprep.subr.mxu0 0.0
    %1009 = vmatpush1.msra.mxu0 0.0
    %1010 = vmatprep.subr.mxu0 0.0
    %1011 = vmatpush1.msra.mxu0 0.0
    %1012 = vmatprep.subr.mxu0 0.0
    %1013 = vmatpush1.msra.mxu0 0.0
    %1014 = vmatprep.subr.mxu0 0.0
    %1015 = vmatpush1.msra.mxu0 0.0
    %1016 = vmatprep.subr.mxu0 0.0
    %1017 = vmatpush1.msra.mxu0 0.0
    %1018 = vmatprep.subr.mxu0 0.0
    %1019 = vmatpush1.msra.mxu0 0.0
    %1020 = vmatprep.subr.mxu0 0.0
    %1021 = vmatpush1.msra.mxu0 0.0
    %1022 = vmatprep.subr.mxu0 0.0
    %1023 = vmatpush1.msra.mxu0 0.0
    %1024 = vmatprep.subr.mxu0 0.0
    %1025 = vmatpush1.msra.mxu0 0.0
    %1026 = vmatprep.mubr.f32.mxu0 0.0
    %1027 = vmatmul.mubr.f32.gmra.mrb[0].mxu0 %v67
    %v1028 = vpop.f32.mrb[0].mxu0
    %v1029 = vadd.f32 %v48, %v1028
    %v1030 = vpop.f32.mrb[0].mxu0
    %1031 = vmatprep.mubr.f32.mxu0 0.0
    %1032 = vmatmul.mubr.f32.gmra.mrb[0].mxu0 %v70
    %v1033 = vpop.f32.mrb[0].mxu0
    %v1034 = vadd.f32 %v53, %v1033
    %v1035 = vpop.f32.mrb[0].mxu0
    %1036 = vmatprep.mubr.f32.mxu0 0.0
    %1037 = vmatmul.mubr.f32.gmra.mrb[0].mxu0 %v73
    %v1038 = vpop.f32.mrb[0].mxu0
    %v1039 = vadd.f32 %v58, %v1038
    %v1040 = vpop.f32.mrb[0].mxu0
    %1041 = vmatprep.mubr.f32.mxu0 0.0
    %1042 = vmatmul.mubr.f32.gmra.mrb[0].mxu0 %v76
    %v1043 = vpop.f32.mrb[0].mxu0
    %v1044 = vadd.f32 %v63, %v1043
    %v1045 = vpop.f32.mrb[0].mxu0
    %1046 = vdwg.mxu0
    %v1048 = vsel %vm78, %v32, 0
    %1050 = vmatprep.subr.mxu0 0.0
    %1051 = vmatpush1.msra.mxu0 %v1048
    %1052 = vmatprep.subr.mxu0 0.0
    %1053 = vmatpush1.msra.mxu0 0.0
    %1054 = vmatprep.subr.mxu0 0.0
    %1055 = vmatpush1.msra.mxu0 0.0
    %1056 = vmatprep.subr.mxu0 0.0
    %1057 = vmatpush1.msra.mxu0 0.0
    %1058 = vmatprep.subr.mxu0 0.0
    %1059 = vmatpush1.msra.mxu0 0.0
    %1060 = vmatprep.subr.mxu0 0.0
    %1061 = vmatpush1.msra.mxu0 0.0
    %1062 = vmatprep.subr.mxu0 0.0
    %1063 = vmatpush1.msra.mxu0 0.0
    %1064 = vmatprep.subr.mxu0 0.0
    %1065 = vmatpush1.msra.mxu0 0.0
    %1066 = vmatprep.subr.mxu0 0.0
    %1067 = vmatpush1.msra.mxu0 0.0
    %1068 = vmatprep.subr.mxu0 0.0
    %1069 = vmatpush1.msra.mxu0 0.0
    %1070 = vmatprep.subr.mxu0 0.0
    %1071 = vmatpush1.msra.mxu0 0.0
    %1072 = vmatprep.subr.mxu0 0.0
    %1073 = vmatpush1.msra.mxu0 0.0
    %1074 = vmatprep.subr.mxu0 0.0
    %1075 = vmatpush1.msra.mxu0 0.0
    %1076 = vmatprep.subr.mxu0 0.0
    %1077 = vmatpush1.msra.mxu0 0.0
    %1078 = vmatprep.subr.mxu0 0.0
    %1079 = vmatpush1.msra.mxu0 0.0
    %1080 = vmatprep.subr.mxu0 0.0
    %1081 = vmatpush1.msra.mxu0 0.0
    %1082 = vmatprep.subr.mxu0 0.0
    %1083 = vmatpush1.msra.mxu0 0.0
    %1084 = vmatprep.subr.mxu0 0.0
    %1085 = vmatpush1.msra.mxu0 0.0
    %1086 = vmatprep.subr.mxu0 0.0
    %1087 = vmatpush1.msra.mxu0 0.0
    %1088 = vmatprep.subr.mxu0 0.0
    %1089 = vmatpush1.msra.mxu0 0.0
    %1090 = vmatprep.subr.mxu0 0.0
    %1091 = vmatpush1.msra.mxu0 0.0
    %1092 = vmatprep.subr.mxu0 0.0
    %1093 = vmatpush1.msra.mxu0 0.0
    %1094 = vmatprep.subr.mxu0 0.0
    %1095 = vmatpush1.msra.mxu0 0.0
    %1096 = vmatprep.subr.mxu0 0.0
    %1097 = vmatpush1.msra.mxu0 0.0
    %1098 = vmatprep.subr.mxu0 0.0
    %1099 = vmatpush1.msra.mxu0 0.0
    %1100 = vmatprep.subr.mxu0 0.0
    %1101 = vmatpush1.msra.mxu0 0.0
    %1102 = vmatprep.subr.mxu0 0.0
    %1103 = vmatpush1.msra.mxu0 0.0
    %1104 = vmatprep.subr.mxu0 0.0
    %1105 = vmatpush1.msra.mxu0 0.0
    %1106 = vmatprep.subr.mxu0 0.0
    %1107 = vmatpush1.msra.mxu0 0.0
    %1108 = vmatprep.subr.mxu0 0.0
    %1109 = vmatpush1.msra.mxu0 0.0
    %1110 = vmatprep.subr.mxu0 0.0
    %1111 = vmatpush1.msra.mxu0 0.0
    %1112 = vmatprep.subr.mxu0 0.0
    %1113 = vmatpush1.msra.mxu0 0.0
    %1114 = vmatprep.mubr.f32.mxu0 0.0
    %1115 = vmatmul.mubr.f32.gmra.mrb[0].mxu0 %v67
    %v1116 = vpop.f32.mrb[0].mxu0
    %v1117 = vadd.f32 %v48, %v1116
    %v1118 = vpop.f32.mrb[0].mxu0
    %1119 = vmatprep.mubr.f32.mxu0 0.0
    %1120 = vmatmul.mubr.f32.gmra.mrb[0].mxu0 %v70
    %v1121 = vpop.f32.mrb[0].mxu0
    %v1122 = vadd.f32 %v53, %v1121
    %v1123 = vpop.f32.mrb[0].mxu0
    %1124 = vmatprep.mubr.f32.mxu0 0.0
    %1125 = vmatmul.mubr.f32.gmra.mrb[0].mxu0 %v73
    %v1126 = vpop.f32.mrb[0].mxu0
    %v1127 = vadd.f32 %v58, %v1126
    %v1128 = vpop.f32.mrb[0].mxu0
    %1129 = vmatprep.mubr.f32.mxu0 0.0
    %1130 = vmatmul.mubr.f32.gmra.mrb[0].mxu0 %v76
    %v1131 = vpop.f32.mrb[0].mxu0
    %v1132 = vadd.f32 %v63, %v1131
    %v1133 = vpop.f32.mrb[0].mxu0
    %1134 = vdwg.mxu0
    %v1136 = vsel %vm78, %v33, 0
    %1138 = vmatprep.subr.mxu0 0.0
    %1139 = vmatpush1.msra.mxu0 %v1136
    %1140 = vmatprep.subr.mxu0 0.0
    %1141 = vmatpush1.msra.mxu0 0.0
    %1142 = vmatprep.subr.mxu0 0.0
    %1143 = vmatpush1.msra.mxu0 0.0
    %1144 = vmatprep.subr.mxu0 0.0
    %1145 = vmatpush1.msra.mxu0 0.0
    %1146 = vmatprep.subr.mxu0 0.0
    %1147 = vmatpush1.msra.mxu0 0.0
    %1148 = vmatprep.subr.mxu0 0.0
    %1149 = vmatpush1.msra.mxu0 0.0
    %1150 = vmatprep.subr.mxu0 0.0
    %1151 = vmatpush1.msra.mxu0 0.0
    %1152 = vmatprep.subr.mxu0 0.0
    %1153 = vmatpush1.msra.mxu0 0.0
    %1154 = vmatprep.subr.mxu0 0.0
    %1155 = vmatpush1.msra.mxu0 0.0
    %1156 = vmatprep.subr.mxu0 0.0
    %1157 = vmatpush1.msra.mxu0 0.0
    %1158 = vmatprep.subr.mxu0 0.0
    %1159 = vmatpush1.msra.mxu0 0.0
    %1160 = vmatprep.subr.mxu0 0.0
    %1161 = vmatpush1.msra.mxu0 0.0
    %1162 = vmatprep.subr.mxu0 0.0
    %1163 = vmatpush1.msra.mxu0 0.0
    %1164 = vmatprep.subr.mxu0 0.0
    %1165 = vmatpush1.msra.mxu0 0.0
    %1166 = vmatprep.subr.mxu0 0.0
    %1167 = vmatpush1.msra.mxu0 0.0
    %1168 = vmatprep.subr.mxu0 0.0
    %1169 = vmatpush1.msra.mxu0 0.0
    %1170 = vmatprep.subr.mxu0 0.0
    %1171 = vmatpush1.msra.mxu0 0.0
    %1172 = vmatprep.subr.mxu0 0.0
    %1173 = vmatpush1.msra.mxu0 0.0
    %1174 = vmatprep.subr.mxu0 0.0
    %1175 = vmatpush1.msra.mxu0 0.0
    %1176 = vmatprep.subr.mxu0 0.0
    %1177 = vmatpush1.msra.mxu0 0.0
    %1178 = vmatprep.subr.mxu0 0.0
    %1179 = vmatpush1.msra.mxu0 0.0
    %1180 = vmatprep.subr.mxu0 0.0
    %1181 = vmatpush1.msra.mxu0 0.0
    %1182 = vmatprep.subr.mxu0 0.0
    %1183 = vmatpush1.msra.mxu0 0.0
    %1184 = vmatprep.subr.mxu0 0.0
    %1185 = vmatpush1.msra.mxu0 0.0
    %1186 = vmatprep.subr.mxu0 0.0
    %1187 = vmatpush1.msra.mxu0 0.0
    %1188 = vmatprep.subr.mxu0 0.0
    %1189 = vmatpush1.msra.mxu0 0.0
    %1190 = vmatprep.subr.mxu0 0.0
    %1191 = vmatpush1.msra.mxu0 0.0
    %1192 = vmatprep.subr.mxu0 0.0
    %1193 = vmatpush1.msra.mxu0 0.0
    %1194 = vmatprep.subr.mxu0 0.0
    %1195 = vmatpush1.msra.mxu0 0.0
    %1196 = vmatprep.subr.mxu0 0.0
    %1197 = vmatpush1.msra.mxu0 0.0
    %1198 = vmatprep.subr.mxu0 0.0
    %1199 = vmatpush1.msra.mxu0 0.0
    %1200 = vmatprep.subr.mxu0 0.0
    %1201 = vmatpush1.msra.mxu0 0.0
    %1202 = vmatprep.mubr.f32.mxu0 0.0
    %1203 = vmatmul.mubr.f32.gmra.mrb[0].mxu0 %v67
    %v1204 = vpop.f32.mrb[0].mxu0
    %v1205 = vadd.f32 %v48, %v1204
    %v1206 = vpop.f32.mrb[0].mxu0
    %1207 = vmatprep.mubr.f32.mxu0 0.0
    %1208 = vmatmul.mubr.f32.gmra.mrb[0].mxu0 %v70
    %v1209 = vpop.f32.mrb[0].mxu0
    %v1210 = vadd.f32 %v53, %v1209
    %v1211 = vpop.f32.mrb[0].mxu0
    %1212 = vmatprep.mubr.f32.mxu0 0.0
    %1213 = vmatmul.mubr.f32.gmra.mrb[0].mxu0 %v73
    %v1214 = vpop.f32.mrb[0].mxu0
    %v1215 = vadd.f32 %v58, %v1214
    %v1216 = vpop.f32.mrb[0].mxu0
    %1217 = vmatprep.mubr.f32.mxu0 0.0
    %1218 = vmatmul.mubr.f32.gmra.mrb[0].mxu0 %v76
    %v1219 = vpop.f32.mrb[0].mxu0
    %v1220 = vadd.f32 %v63, %v1219
    %v1221 = vpop.f32.mrb[0].mxu0
    %1222 = vdwg.mxu0
    %v1224 = vsel %vm78, %v34, 0
    %1226 = vmatprep.subr.mxu0 0.0
    %1227 = vmatpush1.msra.mxu0 %v1224
    %1228 = vmatprep.subr.mxu0 0.0
    %1229 = vmatpush1.msra.mxu0 0.0
    %1230 = vmatprep.subr.mxu0 0.0
    %1231 = vmatpush1.msra.mxu0 0.0
    %1232 = vmatprep.subr.mxu0 0.0
    %1233 = vmatpush1.msra.mxu0 0.0
    %1234 = vmatprep.subr.mxu0 0.0
    %1235 = vmatpush1.msra.mxu0 0.0
    %1236 = vmatprep.subr.mxu0 0.0
    %1237 = vmatpush1.msra.mxu0 0.0
    %1238 = vmatprep.subr.mxu0 0.0
    %1239 = vmatpush1.msra.mxu0 0.0
    %1240 = vmatprep.subr.mxu0 0.0
    %1241 = vmatpush1.msra.mxu0 0.0
    %1242 = vmatprep.subr.mxu0 0.0
    %1243 = vmatpush1.msra.mxu0 0.0
    %1244 = vmatprep.subr.mxu0 0.0
    %1245 = vmatpush1.msra.mxu0 0.0
    %1246 = vmatprep.subr.mxu0 0.0
    %1247 = vmatpush1.msra.mxu0 0.0
    %1248 = vmatprep.subr.mxu0 0.0
    %1249 = vmatpush1.msra.mxu0 0.0
    %1250 = vmatprep.subr.mxu0 0.0
    %1251 = vmatpush1.msra.mxu0 0.0
    %1252 = vmatprep.subr.mxu0 0.0
    %1253 = vmatpush1.msra.mxu0 0.0
    %1254 = vmatprep.subr.mxu0 0.0
    %1255 = vmatpush1.msra.mxu0 0.0
    %1256 = vmatprep.subr.mxu0 0.0
    %1257 = vmatpush1.msra.mxu0 0.0
    %1258 = vmatprep.subr.mxu0 0.0
    %1259 = vmatpush1.msra.mxu0 0.0
    %1260 = vmatprep.subr.mxu0 0.0
    %1261 = vmatpush1.msra.mxu0 0.0
    %1262 = vmatprep.subr.mxu0 0.0
    %1263 = vmatpush1.msra.mxu0 0.0
    %1264 = vmatprep.subr.mxu0 0.0
    %1265 = vmatpush1.msra.mxu0 0.0
    %1266 = vmatprep.subr.mxu0 0.0
    %1267 = vmatpush1.msra.mxu0 0.0
    %1268 = vmatprep.subr.mxu0 0.0
    %1269 = vmatpush1.msra.mxu0 0.0
    %1270 = vmatprep.subr.mxu0 0.0
    %1271 = vmatpush1.msra.mxu0 0.0
    %1272 = vmatprep.subr.mxu0 0.0
    %1273 = vmatpush1.msra.mxu0 0.0
    %1274 = vmatprep.subr.mxu0 0.0
    %1275 = vmatpush1.msra.mxu0 0.0
    %1276 = vmatprep.subr.mxu0 0.0
    %1277 = vmatpush1.msra.mxu0 0.0
    %1278 = vmatprep.subr.mxu0 0.0
    %1279 = vmatpush1.msra.mxu0 0.0
    %1280 = vmatprep.subr.mxu0 0.0
    %1281 = vmatpush1.msra.mxu0 0.0
    %1282 = vmatprep.subr.mxu0 0.0
    %1283 = vmatpush1.msra.mxu0 0.0
    %1284 = vmatprep.subr.mxu0 0.0
    %1285 = vmatpush1.msra.mxu0 0.0
    %1286 = vmatprep.subr.mxu0 0.0
    %1287 = vmatpush1.msra.mxu0 0.0
    %1288 = vmatprep.subr.mxu0 0.0
    %1289 = vmatpush1.msra.mxu0 0.0
    %1290 = vmatprep.mubr.f32.mxu0 0.0
    %1291 = vmatmul.mubr.f32.gmra.mrb[0].mxu0 %v67
    %v1292 = vpop.f32.mrb[0].mxu0
    %v1293 = vadd.f32 %v48, %v1292
    %v1294 = vpop.f32.mrb[0].mxu0
    %1295 = vmatprep.mubr.f32.mxu0 0.0
    %1296 = vmatmul.mubr.f32.gmra.mrb[0].mxu0 %v70
    %v1297 = vpop.f32.mrb[0].mxu0
    %v1298 = vadd.f32 %v53, %v1297
    %v1299 = vpop.f32.mrb[0].mxu0
    %1300 = vmatprep.mubr.f32.mxu0 0.0
    %1301 = vmatmul.mubr.f32.gmra.mrb[0].mxu0 %v73
    %v1302 = vpop.f32.mrb[0].mxu0
    %v1303 = vadd.f32 %v58, %v1302
    %v1304 = vpop.f32.mrb[0].mxu0
    %1305 = vmatprep.mubr.f32.mxu0 0.0
    %1306 = vmatmul.mubr.f32.gmra.mrb[0].mxu0 %v76
    %v1307 = vpop.f32.mrb[0].mxu0
    %v1308 = vadd.f32 %v63, %v1307
    %v1309 = vpop.f32.mrb[0].mxu0
    %1310 = vdwg.mxu0
    %v1312 = vsel %vm78, %v35, 0
    %1314 = vmatprep.subr.mxu0 0.0
    %1315 = vmatpush1.msra.mxu0 %v1312
    %1316 = vmatprep.subr.mxu0 0.0
    %1317 = vmatpush1.msra.mxu0 0.0
    %1318 = vmatprep.subr.mxu0 0.0
    %1319 = vmatpush1.msra.mxu0 0.0
    %1320 = vmatprep.subr.mxu0 0.0
    %1321 = vmatpush1.msra.mxu0 0.0
    %1322 = vmatprep.subr.mxu0 0.0
    %1323 = vmatpush1.msra.mxu0 0.0
    %1324 = vmatprep.subr.mxu0 0.0
    %1325 = vmatpush1.msra.mxu0 0.0
    %1326 = vmatprep.subr.mxu0 0.0
    %1327 = vmatpush1.msra.mxu0 0.0
    %1328 = vmatprep.subr.mxu0 0.0
    %1329 = vmatpush1.msra.mxu0 0.0
    %1330 = vmatprep.subr.mxu0 0.0
    %1331 = vmatpush1.msra.mxu0 0.0
    %1332 = vmatprep.subr.mxu0 0.0
    %1333 = vmatpush1.msra.mxu0 0.0
    %1334 = vmatprep.subr.mxu0 0.0
    %1335 = vmatpush1.msra.mxu0 0.0
    %1336 = vmatprep.subr.mxu0 0.0
    %1337 = vmatpush1.msra.mxu0 0.0
    %1338 = vmatprep.subr.mxu0 0.0
    %1339 = vmatpush1.msra.mxu0 0.0
    %1340 = vmatprep.subr.mxu0 0.0
    %1341 = vmatpush1.msra.mxu0 0.0
    %1342 = vmatprep.subr.mxu0 0.0
    %1343 = vmatpush1.msra.mxu0 0.0
    %1344 = vmatprep.subr.mxu0 0.0
    %1345 = vmatpush1.msra.mxu0 0.0
    %1346 = vmatprep.subr.mxu0 0.0
    %1347 = vmatpush1.msra.mxu0 0.0
    %1348 = vmatprep.subr.mxu0 0.0
    %1349 = vmatpush1.msra.mxu0 0.0
    %1350 = vmatprep.subr.mxu0 0.0
    %1351 = vmatpush1.msra.mxu0 0.0
    %1352 = vmatprep.subr.mxu0 0.0
    %1353 = vmatpush1.msra.mxu0 0.0
    %1354 = vmatprep.subr.mxu0 0.0
    %1355 = vmatpush1.msra.mxu0 0.0
    %1356 = vmatprep.subr.mxu0 0.0
    %1357 = vmatpush1.msra.mxu0 0.0
    %1358 = vmatprep.subr.mxu0 0.0
    %1359 = vmatpush1.msra.mxu0 0.0
    %1360 = vmatprep.subr.mxu0 0.0
    %1361 = vmatpush1.msra.mxu0 0.0
    %1362 = vmatprep.subr.mxu0 0.0
    %1363 = vmatpush1.msra.mxu0 0.0
    %1364 = vmatprep.subr.mxu0 0.0
    %1365 = vmatpush1.msra.mxu0 0.0
    %1366 = vmatprep.subr.mxu0 0.0
    %1367 = vmatpush1.msra.mxu0 0.0
    %1368 = vmatprep.subr.mxu0 0.0
    %1369 = vmatpush1.msra.mxu0 0.0
    %1370 = vmatprep.subr.mxu0 0.0
    %1371 = vmatpush1.msra.mxu0 0.0
    %1372 = vmatprep.subr.mxu0 0.0
    %1373 = vmatpush1.msra.mxu0 0.0
    %1374 = vmatprep.subr.mxu0 0.0
    %1375 = vmatpush1.msra.mxu0 0.0
    %1376 = vmatprep.subr.mxu0 0.0
    %1377 = vmatpush1.msra.mxu0 0.0
    %1378 = vmatprep.mubr.f32.mxu0 0.0
    %1379 = vmatmul.mubr.f32.gmra.mrb[0].mxu0 %v67
    %v1380 = vpop.f32.mrb[0].mxu0
    %v1381 = vadd.f32 %v48, %v1380
    %v1382 = vpop.f32.mrb[0].mxu0
    %1383 = vmatprep.mubr.f32.mxu0 0.0
    %1384 = vmatmul.mubr.f32.gmra.mrb[0].mxu0 %v70
    %v1385 = vpop.f32.mrb[0].mxu0
    %v1386 = vadd.f32 %v53, %v1385
    %v1387 = vpop.f32.mrb[0].mxu0
    %1388 = vmatprep.mubr.f32.mxu0 0.0
    %1389 = vmatmul.mubr.f32.gmra.mrb[0].mxu0 %v73
    %v1390 = vpop.f32.mrb[0].mxu0
    %v1391 = vadd.f32 %v58, %v1390
    %v1392 = vpop.f32.mrb[0].mxu0
    %1393 = vmatprep.mubr.f32.mxu0 0.0
    %1394 = vmatmul.mubr.f32.gmra.mrb[0].mxu0 %v76
    %v1395 = vpop.f32.mrb[0].mxu0
    %v1396 = vadd.f32 %v63, %v1395
    %v1397 = vpop.f32.mrb[0].mxu0
    %1398 = vdwg.mxu0
    %v1400 = vsel %vm78, %v36, 0
    %1402 = vmatprep.subr.mxu0 0.0
    %1403 = vmatpush1.msra.mxu0 %v1400
    %1404 = vmatprep.subr.mxu0 0.0
    %1405 = vmatpush1.msra.mxu0 0.0
    %1406 = vmatprep.subr.mxu0 0.0
    %1407 = vmatpush1.msra.mxu0 0.0
    %1408 = vmatprep.subr.mxu0 0.0
    %1409 = vmatpush1.msra.mxu0 0.0
    %1410 = vmatprep.subr.mxu0 0.0
    %1411 = vmatpush1.msra.mxu0 0.0
    %1412 = vmatprep.subr.mxu0 0.0
    %1413 = vmatpush1.msra.mxu0 0.0
    %1414 = vmatprep.subr.mxu0 0.0
    %1415 = vmatpush1.msra.mxu0 0.0
    %1416 = vmatprep.subr.mxu0 0.0
    %1417 = vmatpush1.msra.mxu0 0.0
    %1418 = vmatprep.subr.mxu0 0.0
    %1419 = vmatpush1.msra.mxu0 0.0
    %1420 = vmatprep.subr.mxu0 0.0
    %1421 = vmatpush1.msra.mxu0 0.0
    %1422 = vmatprep.subr.mxu0 0.0
    %1423 = vmatpush1.msra.mxu0 0.0
    %1424 = vmatprep.subr.mxu0 0.0
    %1425 = vmatpush1.msra.mxu0 0.0
    %1426 = vmatprep.subr.mxu0 0.0
    %1427 = vmatpush1.msra.mxu0 0.0
    %1428 = vmatprep.subr.mxu0 0.0
    %1429 = vmatpush1.msra.mxu0 0.0
    %1430 = vmatprep.subr.mxu0 0.0
    %1431 = vmatpush1.msra.mxu0 0.0
    %1432 = vmatprep.subr.mxu0 0.0
    %1433 = vmatpush1.msra.mxu0 0.0
    %1434 = vmatprep.subr.mxu0 0.0
    %1435 = vmatpush1.msra.mxu0 0.0
    %1436 = vmatprep.subr.mxu0 0.0
    %1437 = vmatpush1.msra.mxu0 0.0
    %1438 = vmatprep.subr.mxu0 0.0
    %1439 = vmatpush1.msra.mxu0 0.0
    %1440 = vmatprep.subr.mxu0 0.0
    %1441 = vmatpush1.msra.mxu0 0.0
    %1442 = vmatprep.subr.mxu0 0.0
    %1443 = vmatpush1.msra.mxu0 0.0
    %1444 = vmatprep.subr.mxu0 0.0
    %1445 = vmatpush1.msra.mxu0 0.0
    %1446 = vmatprep.subr.mxu0 0.0
    %1447 = vmatpush1.msra.mxu0 0.0
    %1448 = vmatprep.subr.mxu0 0.0
    %1449 = vmatpush1.msra.mxu0 0.0
    %1450 = vmatprep.subr.mxu0 0.0
    %1451 = vmatpush1.msra.mxu0 0.0
    %1452 = vmatprep.subr.mxu0 0.0
    %1453 = vmatpush1.msra.mxu0 0.0
    %1454 = vmatprep.subr.mxu0 0.0
    %1455 = vmatpush1.msra.mxu0 0.0
    %1456 = vmatprep.subr.mxu0 0.0
    %1457 = vmatpush1.msra.mxu0 0.0
    %1458 = vmatprep.subr.mxu0 0.0
    %1459 = vmatpush1.msra.mxu0 0.0
    %1460 = vmatprep.subr.mxu0 0.0
    %1461 = vmatpush1.msra.mxu0 0.0
    %1462 = vmatprep.subr.mxu0 0.0
    %1463 = vmatpush1.msra.mxu0 0.0
    %1464 = vmatprep.subr.mxu0 0.0
    %1465 = vmatpush1.msra.mxu0 0.0
    %1466 = vmatprep.mubr.f32.mxu0 0.0
    %1467 = vmatmul.mubr.f32.gmra.mrb[0].mxu0 %v67
    %v1468 = vpop.f32.mrb[0].mxu0
    %v1469 = vadd.f32 %v48, %v1468
    %v1470 = vpop.f32.mrb[0].mxu0
    %1471 = vmatprep.mubr.f32.mxu0 0.0
    %1472 = vmatmul.mubr.f32.gmra.mrb[0].mxu0 %v70
    %v1473 = vpop.f32.mrb[0].mxu0
    %v1474 = vadd.f32 %v53, %v1473
    %v1475 = vpop.f32.mrb[0].mxu0
    %1476 = vmatprep.mubr.f32.mxu0 0.0
    %1477 = vmatmul.mubr.f32.gmra.mrb[0].mxu0 %v73
    %v1478 = vpop.f32.mrb[0].mxu0
    %v1479 = vadd.f32 %v58, %v1478
    %v1480 = vpop.f32.mrb[0].mxu0
    %1481 = vmatprep.mubr.f32.mxu0 0.0
    %1482 = vmatmul.mubr.f32.gmra.mrb[0].mxu0 %v76
    %v1483 = vpop.f32.mrb[0].mxu0
    %v1484 = vadd.f32 %v63, %v1483
    %v1485 = vpop.f32.mrb[0].mxu0
    %1486 = vdwg.mxu0
    %v1487 = vmax.f32 %v149, 0.0
    %v1488 = vmax.f32 %v154, 0.0
    %v1489 = vmax.f32 %v159, 0.0
    %v1490 = vmax.f32 %v164, 0.0
    %v1491 = vmax.f32 %v237, 0.0
    %v1492 = vmax.f32 %v242, 0.0
    %v1493 = vmax.f32 %v247, 0.0
    %v1494 = vmax.f32 %v252, 0.0
    %v1495 = vmax.f32 %v325, 0.0
    %v1496 = vmax.f32 %v330, 0.0
    %v1497 = vmax.f32 %v335, 0.0
    %v1498 = vmax.f32 %v340, 0.0
    %v1499 = vmax.f32 %v413, 0.0
    %v1500 = vmax.f32 %v418, 0.0
    %v1501 = vmax.f32 %v423, 0.0
    %v1502 = vmax.f32 %v428, 0.0
    %v1503 = vmax.f32 %v501, 0.0
    %v1504 = vmax.f32 %v506, 0.0
    %v1505 = vmax.f32 %v511, 0.0
    %v1506 = vmax.f32 %v516, 0.0
    %v1507 = vmax.f32 %v589, 0.0
    %v1508 = vmax.f32 %v594, 0.0
    %v1509 = vmax.f32 %v599, 0.0
    %v1510 = vmax.f32 %v604, 0.0
    %v1511 = vmax.f32 %v677, 0.0
    %v1512 = vmax.f32 %v682, 0.0
    %v1513 = vmax.f32 %v687, 0.0
    %v1514 = vmax.f32 %v692, 0.0
    %v1515 = vmax.f32 %v765, 0.0
    %v1516 = vmax.f32 %v770, 0.0
    %v1517 = vmax.f32 %v775, 0.0
    %v1518 = vmax.f32 %v780, 0.0
    %v1519 = vmax.f32 %v853, 0.0
    %v1520 = vmax.f32 %v858, 0.0
    %v1521 = vmax.f32 %v863, 0.0
    %v1522 = vmax.f32 %v868, 0.0
    %v1523 = vmax.f32 %v941, 0.0
    %v1524 = vmax.f32 %v946, 0.0
    %v1525 = vmax.f32 %v951, 0.0
    %v1526 = vmax.f32 %v956, 0.0
    %v1527 = vmax.f32 %v1029, 0.0
    %v1528 = vmax.f32 %v1034, 0.0
    %v1529 = vmax.f32 %v1039, 0.0
    %v1530 = vmax.f32 %v1044, 0.0
    %v1531 = vmax.f32 %v1117, 0.0
    %v1532 = vmax.f32 %v1122, 0.0
    %v1533 = vmax.f32 %v1127, 0.0
    %v1534 = vmax.f32 %v1132, 0.0
    %v1535 = vmax.f32 %v1205, 0.0
    %v1536 = vmax.f32 %v1210, 0.0
    %v1537 = vmax.f32 %v1215, 0.0
    %v1538 = vmax.f32 %v1220, 0.0
    %v1539 = vmax.f32 %v1293, 0.0
    %v1540 = vmax.f32 %v1298, 0.0
    %v1541 = vmax.f32 %v1303, 0.0
    %v1542 = vmax.f32 %v1308, 0.0
    %v1543 = vmax.f32 %v1381, 0.0
    %v1544 = vmax.f32 %v1386, 0.0
    %v1545 = vmax.f32 %v1391, 0.0
    %v1546 = vmax.f32 %v1396, 0.0
    %v1547 = vmax.f32 %v1469, 0.0
    %v1548 = vmax.f32 %v1474, 0.0
    %v1549 = vmax.f32 %v1479, 0.0
    %v1550 = vmax.f32 %v1484, 0.0
    %v1551 = vld [vmem:[%s3] sm:$0xff]
    %v1552 = vld [vmem:[%s3 + $0x8] sm:$0xff]
    %v1553 = vld [vmem:[%s3 + $0x10] sm:$0xff]
    %v1554 = vld [vmem:[%s3 + $0x18] sm:$0xff]
    %v1555 = vld [vmem:[%s4] sm:$0xff]
    %v1556 = vld [vmem:[%s4 + $0x8] sm:$0xff]
    %v1557 = vld [vmem:[%s4 + $0x10] sm:$0xff]
    %v1558 = vld [vmem:[%s4 + $0x18] sm:$0xff]
    %1560 = vset.pattern.permute.xlu0 0
    %1561 = vperm.xlu0 %1560, %v1555
    %v1562 = vpop.permute.xlu0 %1561
    %1565 = vset.pattern.permute.xlu0 0
    %1566 = vperm.xlu0 %1565, %v1556
    %v1567 = vpop.permute.xlu0 %1566
    %1570 = vset.pattern.permute.xlu0 0
    %1571 = vperm.xlu0 %1570, %v1557
    %v1572 = vpop.permute.xlu0 %1571
    %1575 = vset.pattern.permute.xlu0 0
    %1576 = vperm.xlu0 %1575, %v1558
    %v1577 = vpop.permute.xlu0 %1576
    %vm1579 = vcmask 261120
    %v1581 = vsel %vm1579, %v1551, 0
    %v1584 = vsel %vm1579, %v1552, 0
    %v1587 = vsel %vm1579, %v1553, 0
    %v1590 = vsel %vm1579, %v1554, 0
    %1592 = vmatprep.subr.mxu0 0.0
    %1593 = vmatpush1.msra.mxu0 %v1487
    %1594 = vmatprep.subr.mxu0 0.0
    %1595 = vmatpush1.msra.mxu0 %v1488
    %1596 = vmatprep.subr.mxu0 0.0
    %1597 = vmatpush1.msra.mxu0 %v1489
    %1598 = vmatprep.subr.mxu0 0.0
    %1599 = vmatpush1.msra.mxu0 %v1490
    %1600 = vmatprep.subr.mxu0 0.0
    %1601 = vmatpush1.msra.mxu0 0.0
    %1602 = vmatprep.subr.mxu0 0.0
    %1603 = vmatpush1.msra.mxu0 0.0
    %1604 = vmatprep.subr.mxu0 0.0
    %1605 = vmatpush1.msra.mxu0 0.0
    %1606 = vmatprep.subr.mxu0 0.0
    %1607 = vmatpush1.msra.mxu0 0.0
    %1608 = vmatprep.subr.mxu0 0.0
    %1609 = vmatpush1.msra.mxu0 0.0
    %1610 = vmatprep.subr.mxu0 0.0
    %1611 = vmatpush1.msra.mxu0 0.0
    %1612 = vmatprep.subr.mxu0 0.0
    %1613 = vmatpush1.msra.mxu0 0.0
    %1614 = vmatprep.subr.mxu0 0.0
    %1615 = vmatpush1.msra.mxu0 0.0
    %1616 = vmatprep.subr.mxu0 0.0
    %1617 = vmatpush1.msra.mxu0 0.0
    %1618 = vmatprep.subr.mxu0 0.0
    %1619 = vmatpush1.msra.mxu0 0.0
    %1620 = vmatprep.subr.mxu0 0.0
    %1621 = vmatpush1.msra.mxu0 0.0
    %1622 = vmatprep.subr.mxu0 0.0
    %1623 = vmatpush1.msra.mxu0 0.0
    %1624 = vmatprep.subr.mxu0 0.0
    %1625 = vmatpush1.msra.mxu0 0.0
    %1626 = vmatprep.subr.mxu0 0.0
    %1627 = vmatpush1.msra.mxu0 0.0
    %1628 = vmatprep.subr.mxu0 0.0
    %1629 = vmatpush1.msra.mxu0 0.0
    %1630 = vmatprep.subr.mxu0 0.0
    %1631 = vmatpush1.msra.mxu0 0.0
    %1632 = vmatprep.subr.mxu0 0.0
    %1633 = vmatpush1.msra.mxu0 0.0
    %1634 = vmatprep.subr.mxu0 0.0
    %1635 = vmatpush1.msra.mxu0 0.0
    %1636 = vmatprep.subr.mxu0 0.0
    %1637 = vmatpush1.msra.mxu0 0.0
    %1638 = vmatprep.subr.mxu0 0.0
    %1639 = vmatpush1.msra.mxu0 0.0
    %1640 = vmatprep.subr.mxu0 0.0
    %1641 = vmatpush1.msra.mxu0 0.0
    %1642 = vmatprep.subr.mxu0 0.0
    %1643 = vmatpush1.msra.mxu0 0.0
    %1644 = vmatprep.subr.mxu0 0.0
    %1645 = vmatpush1.msra.mxu0 0.0
    %1646 = vmatprep.subr.mxu0 0.0
    %1647 = vmatpush1.msra.mxu0 0.0
    %1648 = vmatprep.subr.mxu0 0.0
    %1649 = vmatpush1.msra.mxu0 0.0
    %1650 = vmatprep.subr.mxu0 0.0
    %1651 = vmatpush1.msra.mxu0 0.0
    %1652 = vmatprep.subr.mxu0 0.0
    %1653 = vmatpush1.msra.mxu0 0.0
    %1654 = vmatprep.subr.mxu0 0.0
    %1655 = vmatpush1.msra.mxu0 0.0
    %1656 = vmatprep.mubr.f32.mxu0 0.0
    %1657 = vmatmul.mubr.f32.gmra.mrb[0].mxu0 %v1581
    %v1658 = vpop.f32.mrb[0].mxu0
    %v1659 = vadd.f32 %v1562, %v1658
    %v1660 = vpop.f32.mrb[0].mxu0
    %1661 = vmatprep.mubr.f32.mxu0 0.0
    %1662 = vmatmul.mubr.f32.gmra.mrb[0].mxu0 %v1584
    %v1663 = vpop.f32.mrb[0].mxu0
    %v1664 = vadd.f32 %v1567, %v1663
    %v1665 = vpop.f32.mrb[0].mxu0
    %1666 = vmatprep.mubr.f32.mxu0 0.0
    %1667 = vmatmul.mubr.f32.gmra.mrb[0].mxu0 %v1587
    %v1668 = vpop.f32.mrb[0].mxu0
    %v1669 = vadd.f32 %v1572, %v1668
    %v1670 = vpop.f32.mrb[0].mxu0
    %1671 = vmatprep.mubr.f32.mxu0 0.0
    %1672 = vmatmul.mubr.f32.gmra.mrb[0].mxu0 %v1590
    %v1673 = vpop.f32.mrb[0].mxu0
    %v1674 = vadd.f32 %v1577, %v1673
    %v1675 = vpop.f32.mrb[0].mxu0
    %1676 = vdwg.mxu0
    %1677 = vmatprep.subr.mxu0 0.0
    %1678 = vmatpush1.msra.mxu0 %v1491
    %1679 = vmatprep.subr.mxu0 0.0
    %1680 = vmatpush1.msra.mxu0 %v1492
    %1681 = vmatprep.subr.mxu0 0.0
    %1682 = vmatpush1.msra.mxu0 %v1493
    %1683 = vmatprep.subr.mxu0 0.0
    %1684 = vmatpush1.msra.mxu0 %v1494
    %1685 = vmatprep.subr.mxu0 0.0
    %1686 = vmatpush1.msra.mxu0 0.0
    %1687 = vmatprep.subr.mxu0 0.0
    %1688 = vmatpush1.msra.mxu0 0.0
    %1689 = vmatprep.subr.mxu0 0.0
    %1690 = vmatpush1.msra.mxu0 0.0
    %1691 = vmatprep.subr.mxu0 0.0
    %1692 = vmatpush1.msra.mxu0 0.0
    %1693 = vmatprep.subr.mxu0 0.0
    %1694 = vmatpush1.msra.mxu0 0.0
    %1695 = vmatprep.subr.mxu0 0.0
    %1696 = vmatpush1.msra.mxu0 0.0
    %1697 = vmatprep.subr.mxu0 0.0
    %1698 = vmatpush1.msra.mxu0 0.0
    %1699 = vmatprep.subr.mxu0 0.0
    %1700 = vmatpush1.msra.mxu0 0.0
    %1701 = vmatprep.subr.mxu0 0.0
    %1702 = vmatpush1.msra.mxu0 0.0
    %1703 = vmatprep.subr.mxu0 0.0
    %1704 = vmatpush1.msra.mxu0 0.0
    %1705 = vmatprep.subr.mxu0 0.0
    %1706 = vmatpush1.msra.mxu0 0.0
    %1707 = vmatprep.subr.mxu0 0.0
    %1708 = vmatpush1.msra.mxu0 0.0
    %1709 = vmatprep.subr.mxu0 0.0
    %1710 = vmatpush1.msra.mxu0 0.0
    %1711 = vmatprep.subr.mxu0 0.0
    %1712 = vmatpush1.msra.mxu0 0.0
    %1713 = vmatprep.subr.mxu0 0.0
    %1714 = vmatpush1.msra.mxu0 0.0
    %1715 = vmatprep.subr.mxu0 0.0
    %1716 = vmatpush1.msra.mxu0 0.0
    %1717 = vmatprep.subr.mxu0 0.0
    %1718 = vmatpush1.msra.mxu0 0.0
    %1719 = vmatprep.subr.mxu0 0.0
    %1720 = vmatpush1.msra.mxu0 0.0
    %1721 = vmatprep.subr.mxu0 0.0
    %1722 = vmatpush1.msra.mxu0 0.0
    %1723 = vmatprep.subr.mxu0 0.0
    %1724 = vmatpush1.msra.mxu0 0.0
    %1725 = vmatprep.subr.mxu0 0.0
    %1726 = vmatpush1.msra.mxu0 0.0
    %1727 = vmatprep.subr.mxu0 0.0
    %1728 = vmatpush1.msra.mxu0 0.0
    %1729 = vmatprep.subr.mxu0 0.0
    %1730 = vmatpush1.msra.mxu0 0.0
    %1731 = vmatprep.subr.mxu0 0.0
    %1732 = vmatpush1.msra.mxu0 0.0
    %1733 = vmatprep.subr.mxu0 0.0
    %1734 = vmatpush1.msra.mxu0 0.0
    %1735 = vmatprep.subr.mxu0 0.0
    %1736 = vmatpush1.msra.mxu0 0.0
    %1737 = vmatprep.subr.mxu0 0.0
    %1738 = vmatpush1.msra.mxu0 0.0
    %1739 = vmatprep.subr.mxu0 0.0
    %1740 = vmatpush1.msra.mxu0 0.0
    %1741 = vmatprep.mubr.f32.mxu0 0.0
    %1742 = vmatmul.mubr.f32.gmra.mrb[0].mxu0 %v1581
    %v1743 = vpop.f32.mrb[0].mxu0
    %v1744 = vadd.f32 %v1562, %v1743
    %v1745 = vpop.f32.mrb[0].mxu0
    %1746 = vmatprep.mubr.f32.mxu0 0.0
    %1747 = vmatmul.mubr.f32.gmra.mrb[0].mxu0 %v1584
    %v1748 = vpop.f32.mrb[0].mxu0
    %v1749 = vadd.f32 %v1567, %v1748
    %v1750 = vpop.f32.mrb[0].mxu0
    %1751 = vmatprep.mubr.f32.mxu0 0.0
    %1752 = vmatmul.mubr.f32.gmra.mrb[0].mxu0 %v1587
    %v1753 = vpop.f32.mrb[0].mxu0
    %v1754 = vadd.f32 %v1572, %v1753
    %v1755 = vpop.f32.mrb[0].mxu0
    %1756 = vmatprep.mubr.f32.mxu0 0.0
    %1757 = vmatmul.mubr.f32.gmra.mrb[0].mxu0 %v1590
    %v1758 = vpop.f32.mrb[0].mxu0
    %v1759 = vadd.f32 %v1577, %v1758
    %v1760 = vpop.f32.mrb[0].mxu0
    %1761 = vdwg.mxu0
    %1762 = vmatprep.subr.mxu0 0.0
    %1763 = vmatpush1.msra.mxu0 %v1495
    %1764 = vmatprep.subr.mxu0 0.0
    %1765 = vmatpush1.msra.mxu0 %v1496
    %1766 = vmatprep.subr.mxu0 0.0
    %1767 = vmatpush1.msra.mxu0 %v1497
    %1768 = vmatprep.subr.mxu0 0.0
    %1769 = vmatpush1.msra.mxu0 %v1498
    %1770 = vmatprep.subr.mxu0 0.0
    %1771 = vmatpush1.msra.mxu0 0.0
    %1772 = vmatprep.subr.mxu0 0.0
    %1773 = vmatpush1.msra.mxu0 0.0
    %1774 = vmatprep.subr.mxu0 0.0
    %1775 = vmatpush1.msra.mxu0 0.0
    %1776 = vmatprep.subr.mxu0 0.0
    %1777 = vmatpush1.msra.mxu0 0.0
    %1778 = vmatprep.subr.mxu0 0.0
    %1779 = vmatpush1.msra.mxu0 0.0
    %1780 = vmatprep.subr.mxu0 0.0
    %1781 = vmatpush1.msra.mxu0 0.0
    %1782 = vmatprep.subr.mxu0 0.0
    %1783 = vmatpush1.msra.mxu0 0.0
    %1784 = vmatprep.subr.mxu0 0.0
    %1785 = vmatpush1.msra.mxu0 0.0
    %1786 = vmatprep.subr.mxu0 0.0
    %1787 = vmatpush1.msra.mxu0 0.0
    %1788 = vmatprep.subr.mxu0 0.0
    %1789 = vmatpush1.msra.mxu0 0.0
    %1790 = vmatprep.subr.mxu0 0.0
    %1791 = vmatpush1.msra.mxu0 0.0
    %1792 = vmatprep.subr.mxu0 0.0
    %1793 = vmatpush1.msra.mxu0 0.0
    %1794 = vmatprep.subr.mxu0 0.0
    %1795 = vmatpush1.msra.mxu0 0.0
    %1796 = vmatprep.subr.mxu0 0.0
    %1797 = vmatpush1.msra.mxu0 0.0
    %1798 = vmatprep.subr.mxu0 0.0
    %1799 = vmatpush1.msra.mxu0 0.0
    %1800 = vmatprep.subr.mxu0 0.0
    %1801 = vmatpush1.msra.mxu0 0.0
    %1802 = vmatprep.subr.mxu0 0.0
    %1803 = vmatpush1.msra.mxu0 0.0
    %1804 = vmatprep.subr.mxu0 0.0
    %1805 = vmatpush1.msra.mxu0 0.0
    %1806 = vmatprep.subr.mxu0 0.0
    %1807 = vmatpush1.msra.mxu0 0.0
    %1808 = vmatprep.subr.mxu0 0.0
    %1809 = vmatpush1.msra.mxu0 0.0
    %1810 = vmatprep.subr.mxu0 0.0
    %1811 = vmatpush1.msra.mxu0 0.0
    %1812 = vmatprep.subr.mxu0 0.0
    %1813 = vmatpush1.msra.mxu0 0.0
    %1814 = vmatprep.subr.mxu0 0.0
    %1815 = vmatpush1.msra.mxu0 0.0
    %1816 = vmatprep.subr.mxu0 0.0
    %1817 = vmatpush1.msra.mxu0 0.0
    %1818 = vmatprep.subr.mxu0 0.0
    %1819 = vmatpush1.msra.mxu0 0.0
    %1820 = vmatprep.subr.mxu0 0.0
    %1821 = vmatpush1.msra.mxu0 0.0
    %1822 = vmatprep.subr.mxu0 0.0
    %1823 = vmatpush1.msra.mxu0 0.0
    %1824 = vmatprep.subr.mxu0 0.0
    %1825 = vmatpush1.msra.mxu0 0.0
    %1826 = vmatprep.mubr.f32.mxu0 0.0
    %1827 = vmatmul.mubr.f32.gmra.mrb[0].mxu0 %v1581
    %v1828 = vpop.f32.mrb[0].mxu0
    %v1829 = vadd.f32 %v1562, %v1828
    %v1830 = vpop.f32.mrb[0].mxu0
    %1831 = vmatprep.mubr.f32.mxu0 0.0
    %1832 = vmatmul.mubr.f32.gmra.mrb[0].mxu0 %v1584
    %v1833 = vpop.f32.mrb[0].mxu0
    %v1834 = vadd.f32 %v1567, %v1833
    %v1835 = vpop.f32.mrb[0].mxu0
    %1836 = vmatprep.mubr.f32.mxu0 0.0
    %1837 = vmatmul.mubr.f32.gmra.mrb[0].mxu0 %v1587
    %v1838 = vpop.f32.mrb[0].mxu0
    %v1839 = vadd.f32 %v1572, %v1838
    %v1840 = vpop.f32.mrb[0].mxu0
    %1841 = vmatprep.mubr.f32.mxu0 0.0
    %1842 = vmatmul.mubr.f32.gmra.mrb[0].mxu0 %v1590
    %v1843 = vpop.f32.mrb[0].mxu0
    %v1844 = vadd.f32 %v1577, %v1843
    %v1845 = vpop.f32.mrb[0].mxu0
    %1846 = vdwg.mxu0
    %1847 = vmatprep.subr.mxu0 0.0
    %1848 = vmatpush1.msra.mxu0 %v1499
    %1849 = vmatprep.subr.mxu0 0.0
    %1850 = vmatpush1.msra.mxu0 %v1500
    %1851 = vmatprep.subr.mxu0 0.0
    %1852 = vmatpush1.msra.mxu0 %v1501
    %1853 = vmatprep.subr.mxu0 0.0
    %1854 = vmatpush1.msra.mxu0 %v1502
    %1855 = vmatprep.subr.mxu0 0.0
    %1856 = vmatpush1.msra.mxu0 0.0
    %1857 = vmatprep.subr.mxu0 0.0
    %1858 = vmatpush1.msra.mxu0 0.0
    %1859 = vmatprep.subr.mxu0 0.0
    %1860 = vmatpush1.msra.mxu0 0.0
    %1861 = vmatprep.subr.mxu0 0.0
    %1862 = vmatpush1.msra.mxu0 0.0
    %1863 = vmatprep.subr.mxu0 0.0
    %1864 = vmatpush1.msra.mxu0 0.0
    %1865 = vmatprep.subr.mxu0 0.0
    %1866 = vmatpush1.msra.mxu0 0.0
    %1867 = vmatprep.subr.mxu0 0.0
    %1868 = vmatpush1.msra.mxu0 0.0
    %1869 = vmatprep.subr.mxu0 0.0
    %1870 = vmatpush1.msra.mxu0 0.0
    %1871 = vmatprep.subr.mxu0 0.0
    %1872 = vmatpush1.msra.mxu0 0.0
    %1873 = vmatprep.subr.mxu0 0.0
    %1874 = vmatpush1.msra.mxu0 0.0
    %1875 = vmatprep.subr.mxu0 0.0
    %1876 = vmatpush1.msra.mxu0 0.0
    %1877 = vmatprep.subr.mxu0 0.0
    %1878 = vmatpush1.msra.mxu0 0.0
    %1879 = vmatprep.subr.mxu0 0.0
    %1880 = vmatpush1.msra.mxu0 0.0
    %1881 = vmatprep.subr.mxu0 0.0
    %1882 = vmatpush1.msra.mxu0 0.0
    %1883 = vmatprep.subr.mxu0 0.0
    %1884 = vmatpush1.msra.mxu0 0.0
    %1885 = vmatprep.subr.mxu0 0.0
    %1886 = vmatpush1.msra.mxu0 0.0
    %1887 = vmatprep.subr.mxu0 0.0
    %1888 = vmatpush1.msra.mxu0 0.0
    %1889 = vmatprep.subr.mxu0 0.0
    %1890 = vmatpush1.msra.mxu0 0.0
    %1891 = vmatprep.subr.mxu0 0.0
    %1892 = vmatpush1.msra.mxu0 0.0
    %1893 = vmatprep.subr.mxu0 0.0
    %1894 = vmatpush1.msra.mxu0 0.0
    %1895 = vmatprep.subr.mxu0 0.0
    %1896 = vmatpush1.msra.mxu0 0.0
    %1897 = vmatprep.subr.mxu0 0.0
    %1898 = vmatpush1.msra.mxu0 0.0
    %1899 = vmatprep.subr.mxu0 0.0
    %1900 = vmatpush1.msra.mxu0 0.0
    %1901 = vmatprep.subr.mxu0 0.0
    %1902 = vmatpush1.msra.mxu0 0.0
    %1903 = vmatprep.subr.mxu0 0.0
    %1904 = vmatpush1.msra.mxu0 0.0
    %1905 = vmatprep.subr.mxu0 0.0
    %1906 = vmatpush1.msra.mxu0 0.0
    %1907 = vmatprep.subr.mxu0 0.0
    %1908 = vmatpush1.msra.mxu0 0.0
    %1909 = vmatprep.subr.mxu0 0.0
    %1910 = vmatpush1.msra.mxu0 0.0
    %1911 = vmatprep.mubr.f32.mxu0 0.0
    %1912 = vmatmul.mubr.f32.gmra.mrb[0].mxu0 %v1581
    %v1913 = vpop.f32.mrb[0].mxu0
    %v1914 = vadd.f32 %v1562, %v1913
    %v1915 = vpop.f32.mrb[0].mxu0
    %1916 = vmatprep.mubr.f32.mxu0 0.0
    %1917 = vmatmul.mubr.f32.gmra.mrb[0].mxu0 %v1584
    %v1918 = vpop.f32.mrb[0].mxu0
    %v1919 = vadd.f32 %v1567, %v1918
    %v1920 = vpop.f32.mrb[0].mxu0
    %1921 = vmatprep.mubr.f32.mxu0 0.0
    %1922 = vmatmul.mubr.f32.gmra.mrb[0].mxu0 %v1587
    %v1923 = vpop.f32.mrb[0].mxu0
    %v1924 = vadd.f32 %v1572, %v1923
    %v1925 = vpop.f32.mrb[0].mxu0
    %1926 = vmatprep.mubr.f32.mxu0 0.0
    %1927 = vmatmul.mubr.f32.gmra.mrb[0].mxu0 %v1590
    %v1928 = vpop.f32.mrb[0].mxu0
    %v1929 = vadd.f32 %v1577, %v1928
    %v1930 = vpop.f32.mrb[0].mxu0
    %1931 = vdwg.mxu0
    %1932 = vmatprep.subr.mxu0 0.0
    %1933 = vmatpush1.msra.mxu0 %v1503
    %1934 = vmatprep.subr.mxu0 0.0
    %1935 = vmatpush1.msra.mxu0 %v1504
    %1936 = vmatprep.subr.mxu0 0.0
    %1937 = vmatpush1.msra.mxu0 %v1505
    %1938 = vmatprep.subr.mxu0 0.0
    %1939 = vmatpush1.msra.mxu0 %v1506
    %1940 = vmatprep.subr.mxu0 0.0
    %1941 = vmatpush1.msra.mxu0 0.0
    %1942 = vmatprep.subr.mxu0 0.0
    %1943 = vmatpush1.msra.mxu0 0.0
    %1944 = vmatprep.subr.mxu0 0.0
    %1945 = vmatpush1.msra.mxu0 0.0
    %1946 = vmatprep.subr.mxu0 0.0
    %1947 = vmatpush1.msra.mxu0 0.0
    %1948 = vmatprep.subr.mxu0 0.0
    %1949 = vmatpush1.msra.mxu0 0.0
    %1950 = vmatprep.subr.mxu0 0.0
    %1951 = vmatpush1.msra.mxu0 0.0
    %1952 = vmatprep.subr.mxu0 0.0
    %1953 = vmatpush1.msra.mxu0 0.0
    %1954 = vmatprep.subr.mxu0 0.0
    %1955 = vmatpush1.msra.mxu0 0.0
    %1956 = vmatprep.subr.mxu0 0.0
    %1957 = vmatpush1.msra.mxu0 0.0
    %1958 = vmatprep.subr.mxu0 0.0
    %1959 = vmatpush1.msra.mxu0 0.0
    %1960 = vmatprep.subr.mxu0 0.0
    %1961 = vmatpush1.msra.mxu0 0.0
    %1962 = vmatprep.subr.mxu0 0.0
    %1963 = vmatpush1.msra.mxu0 0.0
    %1964 = vmatprep.subr.mxu0 0.0
    %1965 = vmatpush1.msra.mxu0 0.0
    %1966 = vmatprep.subr.mxu0 0.0
    %1967 = vmatpush1.msra.mxu0 0.0
    %1968 = vmatprep.subr.mxu0 0.0
    %1969 = vmatpush1.msra.mxu0 0.0
    %1970 = vmatprep.subr.mxu0 0.0
    %1971 = vmatpush1.msra.mxu0 0.0
    %1972 = vmatprep.subr.mxu0 0.0
    %1973 = vmatpush1.msra.mxu0 0.0
    %1974 = vmatprep.subr.mxu0 0.0
    %1975 = vmatpush1.msra.mxu0 0.0
    %1976 = vmatprep.subr.mxu0 0.0
    %1977 = vmatpush1.msra.mxu0 0.0
    %1978 = vmatprep.subr.mxu0 0.0
    %1979 = vmatpush1.msra.mxu0 0.0
    %1980 = vmatprep.subr.mxu0 0.0
    %1981 = vmatpush1.msra.mxu0 0.0
    %1982 = vmatprep.subr.mxu0 0.0
    %1983 = vmatpush1.msra.mxu0 0.0
    %1984 = vmatprep.subr.mxu0 0.0
    %1985 = vmatpush1.msra.mxu0 0.0
    %1986 = vmatprep.subr.mxu0 0.0
    %1987 = vmatpush1.msra.mxu0 0.0
    %1988 = vmatprep.subr.mxu0 0.0
    %1989 = vmatpush1.msra.mxu0 0.0
    %1990 = vmatprep.subr.mxu0 0.0
    %1991 = vmatpush1.msra.mxu0 0.0
    %1992 = vmatprep.subr.mxu0 0.0
    %1993 = vmatpush1.msra.mxu0 0.0
    %1994 = vmatprep.subr.mxu0 0.0
    %1995 = vmatpush1.msra.mxu0 0.0
    %1996 = vmatprep.mubr.f32.mxu0 0.0
    %1997 = vmatmul.mubr.f32.gmra.mrb[0].mxu0 %v1581
    %v1998 = vpop.f32.mrb[0].mxu0
    %v1999 = vadd.f32 %v1562, %v1998
    %v2000 = vpop.f32.mrb[0].mxu0
    %2001 = vmatprep.mubr.f32.mxu0 0.0
    %2002 = vmatmul.mubr.f32.gmra.mrb[0].mxu0 %v1584
    %v2003 = vpop.f32.mrb[0].mxu0
    %v2004 = vadd.f32 %v1567, %v2003
    %v2005 = vpop.f32.mrb[0].mxu0
    %2006 = vmatprep.mubr.f32.mxu0 0.0
    %2007 = vmatmul.mubr.f32.gmra.mrb[0].mxu0 %v1587
    %v2008 = vpop.f32.mrb[0].mxu0
    %v2009 = vadd.f32 %v1572, %v2008
    %v2010 = vpop.f32.mrb[0].mxu0
    %2011 = vmatprep.mubr.f32.mxu0 0.0
    %2012 = vmatmul.mubr.f32.gmra.mrb[0].mxu0 %v1590
    %v2013 = vpop.f32.mrb[0].mxu0
    %v2014 = vadd.f32 %v1577, %v2013
    %v2015 = vpop.f32.mrb[0].mxu0
    %2016 = vdwg.mxu0
    %2017 = vmatprep.subr.mxu0 0.0
    %2018 = vmatpush1.msra.mxu0 %v1507
    %2019 = vmatprep.subr.mxu0 0.0
    %2020 = vmatpush1.msra.mxu0 %v1508
    %2021 = vmatprep.subr.mxu0 0.0
    %2022 = vmatpush1.msra.mxu0 %v1509
    %2023 = vmatprep.subr.mxu0 0.0
    %2024 = vmatpush1.msra.mxu0 %v1510
    %2025 = vmatprep.subr.mxu0 0.0
    %2026 = vmatpush1.msra.mxu0 0.0
    %2027 = vmatprep.subr.mxu0 0.0
    %2028 = vmatpush1.msra.mxu0 0.0
    %2029 = vmatprep.subr.mxu0 0.0
    %2030 = vmatpush1.msra.mxu0 0.0
    %2031 = vmatprep.subr.mxu0 0.0
    %2032 = vmatpush1.msra.mxu0 0.0
    %2033 = vmatprep.subr.mxu0 0.0
    %2034 = vmatpush1.msra.mxu0 0.0
    %2035 = vmatprep.subr.mxu0 0.0
    %2036 = vmatpush1.msra.mxu0 0.0
    %2037 = vmatprep.subr.mxu0 0.0
    %2038 = vmatpush1.msra.mxu0 0.0
    %2039 = vmatprep.subr.mxu0 0.0
    %2040 = vmatpush1.msra.mxu0 0.0
    %2041 = vmatprep.subr.mxu0 0.0
    %2042 = vmatpush1.msra.mxu0 0.0
    %2043 = vmatprep.subr.mxu0 0.0
    %2044 = vmatpush1.msra.mxu0 0.0
    %2045 = vmatprep.subr.mxu0 0.0
    %2046 = vmatpush1.msra.mxu0 0.0
    %2047 = vmatprep.subr.mxu0 0.0
    %2048 = vmatpush1.msra.mxu0 0.0
    %2049 = vmatprep.subr.mxu0 0.0
    %2050 = vmatpush1.msra.mxu0 0.0
    %2051 = vmatprep.subr.mxu0 0.0
    %2052 = vmatpush1.msra.mxu0 0.0
    %2053 = vmatprep.subr.mxu0 0.0
    %2054 = vmatpush1.msra.mxu0 0.0
    %2055 = vmatprep.subr.mxu0 0.0
    %2056 = vmatpush1.msra.mxu0 0.0
    %2057 = vmatprep.subr.mxu0 0.0
    %2058 = vmatpush1.msra.mxu0 0.0
    %2059 = vmatprep.subr.mxu0 0.0
    %2060 = vmatpush1.msra.mxu0 0.0
    %2061 = vmatprep.subr.mxu0 0.0
    %2062 = vmatpush1.msra.mxu0 0.0
    %2063 = vmatprep.subr.mxu0 0.0
    %2064 = vmatpush1.msra.mxu0 0.0
    %2065 = vmatprep.subr.mxu0 0.0
    %2066 = vmatpush1.msra.mxu0 0.0
    %2067 = vmatprep.subr.mxu0 0.0
    %2068 = vmatpush1.msra.mxu0 0.0
    %2069 = vmatprep.subr.mxu0 0.0
    %2070 = vmatpush1.msra.mxu0 0.0
    %2071 = vmatprep.subr.mxu0 0.0
    %2072 = vmatpush1.msra.mxu0 0.0
    %2073 = vmatprep.subr.mxu0 0.0
    %2074 = vmatpush1.msra.mxu0 0.0
    %2075 = vmatprep.subr.mxu0 0.0
    %2076 = vmatpush1.msra.mxu0 0.0
    %2077 = vmatprep.subr.mxu0 0.0
    %2078 = vmatpush1.msra.mxu0 0.0
    %2079 = vmatprep.subr.mxu0 0.0
    %2080 = vmatpush1.msra.mxu0 0.0
    %2081 = vmatprep.mubr.f32.mxu0 0.0
    %2082 = vmatmul.mubr.f32.gmra.mrb[0].mxu0 %v1581
    %v2083 = vpop.f32.mrb[0].mxu0
    %v2084 = vadd.f32 %v1562, %v2083
    %v2085 = vpop.f32.mrb[0].mxu0
    %2086 = vmatprep.mubr.f32.mxu0 0.0
    %2087 = vmatmul.mubr.f32.gmra.mrb[0].mxu0 %v1584
    %v2088 = vpop.f32.mrb[0].mxu0
    %v2089 = vadd.f32 %v1567, %v2088
    %v2090 = vpop.f32.mrb[0].mxu0
    %2091 = vmatprep.mubr.f32.mxu0 0.0
    %2092 = vmatmul.mubr.f32.gmra.mrb[0].mxu0 %v1587
    %v2093 = vpop.f32.mrb[0].mxu0
    %v2094 = vadd.f32 %v1572, %v2093
    %v2095 = vpop.f32.mrb[0].mxu0
    %2096 = vmatprep.mubr.f32.mxu0 0.0
    %2097 = vmatmul.mubr.f32.gmra.mrb[0].mxu0 %v1590
    %v2098 = vpop.f32.mrb[0].mxu0
    %v2099 = vadd.f32 %v1577, %v2098
    %v2100 = vpop.f32.mrb[0].mxu0
    %2101 = vdwg.mxu0
    %2102 = vmatprep.subr.mxu0 0.0
    %2103 = vmatpush1.msra.mxu0 %v1511
    %2104 = vmatprep.subr.mxu0 0.0
    %2105 = vmatpush1.msra.mxu0 %v1512
    %2106 = vmatprep.subr.mxu0 0.0
    %2107 = vmatpush1.msra.mxu0 %v1513
    %2108 = vmatprep.subr.mxu0 0.0
    %2109 = vmatpush1.msra.mxu0 %v1514
    %2110 = vmatprep.subr.mxu0 0.0
    %2111 = vmatpush1.msra.mxu0 0.0
    %2112 = vmatprep.subr.mxu0 0.0
    %2113 = vmatpush1.msra.mxu0 0.0
    %2114 = vmatprep.subr.mxu0 0.0
    %2115 = vmatpush1.msra.mxu0 0.0
    %2116 = vmatprep.subr.mxu0 0.0
    %2117 = vmatpush1.msra.mxu0 0.0
    %2118 = vmatprep.subr.mxu0 0.0
    %2119 = vmatpush1.msra.mxu0 0.0
    %2120 = vmatprep.subr.mxu0 0.0
    %2121 = vmatpush1.msra.mxu0 0.0
    %2122 = vmatprep.subr.mxu0 0.0
    %2123 = vmatpush1.msra.mxu0 0.0
    %2124 = vmatprep.subr.mxu0 0.0
    %2125 = vmatpush1.msra.mxu0 0.0
    %2126 = vmatprep.subr.mxu0 0.0
    %2127 = vmatpush1.msra.mxu0 0.0
    %2128 = vmatprep.subr.mxu0 0.0
    %2129 = vmatpush1.msra.mxu0 0.0
    %2130 = vmatprep.subr.mxu0 0.0
    %2131 = vmatpush1.msra.mxu0 0.0
    %2132 = vmatprep.subr.mxu0 0.0
    %2133 = vmatpush1.msra.mxu0 0.0
    %2134 = vmatprep.subr.mxu0 0.0
    %2135 = vmatpush1.msra.mxu0 0.0
    %2136 = vmatprep.subr.mxu0 0.0
    %2137 = vmatpush1.msra.mxu0 0.0
    %2138 = vmatprep.subr.mxu0 0.0
    %2139 = vmatpush1.msra.mxu0 0.0
    %2140 = vmatprep.subr.mxu0 0.0
    %2141 = vmatpush1.msra.mxu0 0.0
    %2142 = vmatprep.subr.mxu0 0.0
    %2143 = vmatpush1.msra.mxu0 0.0
    %2144 = vmatprep.subr.mxu0 0.0
    %2145 = vmatpush1.msra.mxu0 0.0
    %2146 = vmatprep.subr.mxu0 0.0
    %2147 = vmatpush1.msra.mxu0 0.0
    %2148 = vmatprep.subr.mxu0 0.0
    %2149 = vmatpush1.msra.mxu0 0.0
    %2150 = vmatprep.subr.mxu0 0.0
    %2151 = vmatpush1.msra.mxu0 0.0
    %2152 = vmatprep.subr.mxu0 0.0
    %2153 = vmatpush1.msra.mxu0 0.0
    %2154 = vmatprep.subr.mxu0 0.0
    %2155 = vmatpush1.msra.mxu0 0.0
    %2156 = vmatprep.subr.mxu0 0.0
    %2157 = vmatpush1.msra.mxu0 0.0
    %2158 = vmatprep.subr.mxu0 0.0
    %2159 = vmatpush1.msra.mxu0 0.0
    %2160 = vmatprep.subr.mxu0 0.0
    %2161 = vmatpush1.msra.mxu0 0.0
    %2162 = vmatprep.subr.mxu0 0.0
    %2163 = vmatpush1.msra.mxu0 0.0
    %2164 = vmatprep.subr.mxu0 0.0
    %2165 = vmatpush1.msra.mxu0 0.0
    %2166 = vmatprep.mubr.f32.mxu0 0.0
    %2167 = vmatmul.mubr.f32.gmra.mrb[0].mxu0 %v1581
    %v2168 = vpop.f32.mrb[0].mxu0
    %v2169 = vadd.f32 %v1562, %v2168
    %v2170 = vpop.f32.mrb[0].mxu0
    %2171 = vmatprep.mubr.f32.mxu0 0.0
    %2172 = vmatmul.mubr.f32.gmra.mrb[0].mxu0 %v1584
    %v2173 = vpop.f32.mrb[0].mxu0
    %v2174 = vadd.f32 %v1567, %v2173
    %v2175 = vpop.f32.mrb[0].mxu0
    %2176 = vmatprep.mubr.f32.mxu0 0.0
    %2177 = vmatmul.mubr.f32.gmra.mrb[0].mxu0 %v1587
    %v2178 = vpop.f32.mrb[0].mxu0
    %v2179 = vadd.f32 %v1572, %v2178
    %v2180 = vpop.f32.mrb[0].mxu0
    %2181 = vmatprep.mubr.f32.mxu0 0.0
    %2182 = vmatmul.mubr.f32.gmra.mrb[0].mxu0 %v1590
    %v2183 = vpop.f32.mrb[0].mxu0
    %v2184 = vadd.f32 %v1577, %v2183
    %v2185 = vpop.f32.mrb[0].mxu0
    %2186 = vdwg.mxu0
    %2187 = vmatprep.subr.mxu0 0.0
    %2188 = vmatpush1.msra.mxu0 %v1515
    %2189 = vmatprep.subr.mxu0 0.0
    %2190 = vmatpush1.msra.mxu0 %v1516
    %2191 = vmatprep.subr.mxu0 0.0
    %2192 = vmatpush1.msra.mxu0 %v1517
    %2193 = vmatprep.subr.mxu0 0.0
    %2194 = vmatpush1.msra.mxu0 %v1518
    %2195 = vmatprep.subr.mxu0 0.0
    %2196 = vmatpush1.msra.mxu0 0.0
    %2197 = vmatprep.subr.mxu0 0.0
    %2198 = vmatpush1.msra.mxu0 0.0
    %2199 = vmatprep.subr.mxu0 0.0
    %2200 = vmatpush1.msra.mxu0 0.0
    %2201 = vmatprep.subr.mxu0 0.0
    %2202 = vmatpush1.msra.mxu0 0.0
    %2203 = vmatprep.subr.mxu0 0.0
    %2204 = vmatpush1.msra.mxu0 0.0
    %2205 = vmatprep.subr.mxu0 0.0
    %2206 = vmatpush1.msra.mxu0 0.0
    %2207 = vmatprep.subr.mxu0 0.0
    %2208 = vmatpush1.msra.mxu0 0.0
    %2209 = vmatprep.subr.mxu0 0.0
    %2210 = vmatpush1.msra.mxu0 0.0
    %2211 = vmatprep.subr.mxu0 0.0
    %2212 = vmatpush1.msra.mxu0 0.0
    %2213 = vmatprep.subr.mxu0 0.0
    %2214 = vmatpush1.msra.mxu0 0.0
    %2215 = vmatprep.subr.mxu0 0.0
    %2216 = vmatpush1.msra.mxu0 0.0
    %2217 = vmatprep.subr.mxu0 0.0
    %2218 = vmatpush1.msra.mxu0 0.0
    %2219 = vmatprep.subr.mxu0 0.0
    %2220 = vmatpush1.msra.mxu0 0.0
    %2221 = vmatprep.subr.mxu0 0.0
    %2222 = vmatpush1.msra.mxu0 0.0
    %2223 = vmatprep.subr.mxu0 0.0
    %2224 = vmatpush1.msra.mxu0 0.0
    %2225 = vmatprep.subr.mxu0 0.0
    %2226 = vmatpush1.msra.mxu0 0.0
    %2227 = vmatprep.subr.mxu0 0.0
    %2228 = vmatpush1.msra.mxu0 0.0
    %2229 = vmatprep.subr.mxu0 0.0
    %2230 = vmatpush1.msra.mxu0 0.0
    %2231 = vmatprep.subr.mxu0 0.0
    %2232 = vmatpush1.msra.mxu0 0.0
    %2233 = vmatprep.subr.mxu0 0.0
    %2234 = vmatpush1.msra.mxu0 0.0
    %2235 = vmatprep.subr.mxu0 0.0
    %2236 = vmatpush1.msra.mxu0 0.0
    %2237 = vmatprep.subr.mxu0 0.0
    %2238 = vmatpush1.msra.mxu0 0.0
    %2239 = vmatprep.subr.mxu0 0.0
    %2240 = vmatpush1.msra.mxu0 0.0
    %2241 = vmatprep.subr.mxu0 0.0
    %2242 = vmatpush1.msra.mxu0 0.0
    %2243 = vmatprep.subr.mxu0 0.0
    %2244 = vmatpush1.msra.mxu0 0.0
    %2245 = vmatprep.subr.mxu0 0.0
    %2246 = vmatpush1.msra.mxu0 0.0
    %2247 = vmatprep.subr.mxu0 0.0
    %2248 = vmatpush1.msra.mxu0 0.0
    %2249 = vmatprep.subr.mxu0 0.0
    %2250 = vmatpush1.msra.mxu0 0.0
    %2251 = vmatprep.mubr.f32.mxu0 0.0
    %2252 = vmatmul.mubr.f32.gmra.mrb[0].mxu0 %v1581
    %v2253 = vpop.f32.mrb[0].mxu0
    %v2254 = vadd.f32 %v1562, %v2253
    %v2255 = vpop.f32.mrb[0].mxu0
    %2256 = vmatprep.mubr.f32.mxu0 0.0
    %2257 = vmatmul.mubr.f32.gmra.mrb[0].mxu0 %v1584
    %v2258 = vpop.f32.mrb[0].mxu0
    %v2259 = vadd.f32 %v1567, %v2258
    %v2260 = vpop.f32.mrb[0].mxu0
    %2261 = vmatprep.mubr.f32.mxu0 0.0
    %2262 = vmatmul.mubr.f32.gmra.mrb[0].mxu0 %v1587
    %v2263 = vpop.f32.mrb[0].mxu0
    %v2264 = vadd.f32 %v1572, %v2263
    %v2265 = vpop.f32.mrb[0].mxu0
    %2266 = vmatprep.mubr.f32.mxu0 0.0
    %2267 = vmatmul.mubr.f32.gmra.mrb[0].mxu0 %v1590
    %v2268 = vpop.f32.mrb[0].mxu0
    %v2269 = vadd.f32 %v1577, %v2268
    %v2270 = vpop.f32.mrb[0].mxu0
    %2271 = vdwg.mxu0
    %2272 = vmatprep.subr.mxu0 0.0
    %2273 = vmatpush1.msra.mxu0 %v1519
    %2274 = vmatprep.subr.mxu0 0.0
    %2275 = vmatpush1.msra.mxu0 %v1520
    %2276 = vmatprep.subr.mxu0 0.0
    %2277 = vmatpush1.msra.mxu0 %v1521
    %2278 = vmatprep.subr.mxu0 0.0
    %2279 = vmatpush1.msra.mxu0 %v1522
    %2280 = vmatprep.subr.mxu0 0.0
    %2281 = vmatpush1.msra.mxu0 0.0
    %2282 = vmatprep.subr.mxu0 0.0
    %2283 = vmatpush1.msra.mxu0 0.0
    %2284 = vmatprep.subr.mxu0 0.0
    %2285 = vmatpush1.msra.mxu0 0.0
    %2286 = vmatprep.subr.mxu0 0.0
    %2287 = vmatpush1.msra.mxu0 0.0
    %2288 = vmatprep.subr.mxu0 0.0
    %2289 = vmatpush1.msra.mxu0 0.0
    %2290 = vmatprep.subr.mxu0 0.0
    %2291 = vmatpush1.msra.mxu0 0.0
    %2292 = vmatprep.subr.mxu0 0.0
    %2293 = vmatpush1.msra.mxu0 0.0
    %2294 = vmatprep.subr.mxu0 0.0
    %2295 = vmatpush1.msra.mxu0 0.0
    %2296 = vmatprep.subr.mxu0 0.0
    %2297 = vmatpush1.msra.mxu0 0.0
    %2298 = vmatprep.subr.mxu0 0.0
    %2299 = vmatpush1.msra.mxu0 0.0
    %2300 = vmatprep.subr.mxu0 0.0
    %2301 = vmatpush1.msra.mxu0 0.0
    %2302 = vmatprep.subr.mxu0 0.0
    %2303 = vmatpush1.msra.mxu0 0.0
    %2304 = vmatprep.subr.mxu0 0.0
    %2305 = vmatpush1.msra.mxu0 0.0
    %2306 = vmatprep.subr.mxu0 0.0
    %2307 = vmatpush1.msra.mxu0 0.0
    %2308 = vmatprep.subr.mxu0 0.0
    %2309 = vmatpush1.msra.mxu0 0.0
    %2310 = vmatprep.subr.mxu0 0.0
    %2311 = vmatpush1.msra.mxu0 0.0
    %2312 = vmatprep.subr.mxu0 0.0
    %2313 = vmatpush1.msra.mxu0 0.0
    %2314 = vmatprep.subr.mxu0 0.0
    %2315 = vmatpush1.msra.mxu0 0.0
    %2316 = vmatprep.subr.mxu0 0.0
    %2317 = vmatpush1.msra.mxu0 0.0
    %2318 = vmatprep.subr.mxu0 0.0
    %2319 = vmatpush1.msra.mxu0 0.0
    %2320 = vmatprep.subr.mxu0 0.0
    %2321 = vmatpush1.msra.mxu0 0.0
    %2322 = vmatprep.subr.mxu0 0.0
    %2323 = vmatpush1.msra.mxu0 0.0
    %2324 = vmatprep.subr.mxu0 0.0
    %2325 = vmatpush1.msra.mxu0 0.0
    %2326 = vmatprep.subr.mxu0 0.0
    %2327 = vmatpush1.msra.mxu0 0.0
    %2328 = vmatprep.subr.mxu0 0.0
    %2329 = vmatpush1.msra.mxu0 0.0
    %2330 = vmatprep.subr.mxu0 0.0
    %2331 = vmatpush1.msra.mxu0 0.0
    %2332 = vmatprep.subr.mxu0 0.0
    %2333 = vmatpush1.msra.mxu0 0.0
    %2334 = vmatprep.subr.mxu0 0.0
    %2335 = vmatpush1.msra.mxu0 0.0
    %2336 = vmatprep.mubr.f32.mxu0 0.0
    %2337 = vmatmul.mubr.f32.gmra.mrb[0].mxu0 %v1581
    %v2338 = vpop.f32.mrb[0].mxu0
    %v2339 = vadd.f32 %v1562, %v2338
    %v2340 = vpop.f32.mrb[0].mxu0
    %2341 = vmatprep.mubr.f32.mxu0 0.0
    %2342 = vmatmul.mubr.f32.gmra.mrb[0].mxu0 %v1584
    %v2343 = vpop.f32.mrb[0].mxu0
    %v2344 = vadd.f32 %v1567, %v2343
    %v2345 = vpop.f32.mrb[0].mxu0
    %2346 = vmatprep.mubr.f32.mxu0 0.0
    %2347 = vmatmul.mubr.f32.gmra.mrb[0].mxu0 %v1587
    %v2348 = vpop.f32.mrb[0].mxu0
    %v2349 = vadd.f32 %v1572, %v2348
    %v2350 = vpop.f32.mrb[0].mxu0
    %2351 = vmatprep.mubr.f32.mxu0 0.0
    %2352 = vmatmul.mubr.f32.gmra.mrb[0].mxu0 %v1590
    %v2353 = vpop.f32.mrb[0].mxu0
    %v2354 = vadd.f32 %v1577, %v2353
    %v2355 = vpop.f32.mrb[0].mxu0
    %2356 = vdwg.mxu0
    %2357 = vmatprep.subr.mxu0 0.0
    %2358 = vmatpush1.msra.mxu0 %v1523
    %2359 = vmatprep.subr.mxu0 0.0
    %2360 = vmatpush1.msra.mxu0 %v1524
    %2361 = vmatprep.subr.mxu0 0.0
    %2362 = vmatpush1.msra.mxu0 %v1525
    %2363 = vmatprep.subr.mxu0 0.0
    %2364 = vmatpush1.msra.mxu0 %v1526
    %2365 = vmatprep.subr.mxu0 0.0
    %2366 = vmatpush1.msra.mxu0 0.0
    %2367 = vmatprep.subr.mxu0 0.0
    %2368 = vmatpush1.msra.mxu0 0.0
    %2369 = vmatprep.subr.mxu0 0.0
    %2370 = vmatpush1.msra.mxu0 0.0
    %2371 = vmatprep.subr.mxu0 0.0
    %2372 = vmatpush1.msra.mxu0 0.0
    %2373 = vmatprep.subr.mxu0 0.0
    %2374 = vmatpush1.msra.mxu0 0.0
    %2375 = vmatprep.subr.mxu0 0.0
    %2376 = vmatpush1.msra.mxu0 0.0
    %2377 = vmatprep.subr.mxu0 0.0
    %2378 = vmatpush1.msra.mxu0 0.0
    %2379 = vmatprep.subr.mxu0 0.0
    %2380 = vmatpush1.msra.mxu0 0.0
    %2381 = vmatprep.subr.mxu0 0.0
    %2382 = vmatpush1.msra.mxu0 0.0
    %2383 = vmatprep.subr.mxu0 0.0
    %2384 = vmatpush1.msra.mxu0 0.0
    %2385 = vmatprep.subr.mxu0 0.0
    %2386 = vmatpush1.msra.mxu0 0.0
    %2387 = vmatprep.subr.mxu0 0.0
    %2388 = vmatpush1.msra.mxu0 0.0
    %2389 = vmatprep.subr.mxu0 0.0
    %2390 = vmatpush1.msra.mxu0 0.0
    %2391 = vmatprep.subr.mxu0 0.0
    %2392 = vmatpush1.msra.mxu0 0.0
    %2393 = vmatprep.subr.mxu0 0.0
    %2394 = vmatpush1.msra.mxu0 0.0
    %2395 = vmatprep.subr.mxu0 0.0
    %2396 = vmatpush1.msra.mxu0 0.0
    %2397 = vmatprep.subr.mxu0 0.0
    %2398 = vmatpush1.msra.mxu0 0.0
    %2399 = vmatprep.subr.mxu0 0.0
    %2400 = vmatpush1.msra.mxu0 0.0
    %2401 = vmatprep.subr.mxu0 0.0
    %2402 = vmatpush1.msra.mxu0 0.0
    %2403 = vmatprep.subr.mxu0 0.0
    %2404 = vmatpush1.msra.mxu0 0.0
    %2405 = vmatprep.subr.mxu0 0.0
    %2406 = vmatpush1.msra.mxu0 0.0
    %2407 = vmatprep.subr.mxu0 0.0
    %2408 = vmatpush1.msra.mxu0 0.0
    %2409 = vmatprep.subr.mxu0 0.0
    %2410 = vmatpush1.msra.mxu0 0.0
    %2411 = vmatprep.subr.mxu0 0.0
    %2412 = vmatpush1.msra.mxu0 0.0
    %2413 = vmatprep.subr.mxu0 0.0
    %2414 = vmatpush1.msra.mxu0 0.0
    %2415 = vmatprep.subr.mxu0 0.0
    %2416 = vmatpush1.msra.mxu0 0.0
    %2417 = vmatprep.subr.mxu0 0.0
    %2418 = vmatpush1.msra.mxu0 0.0
    %2419 = vmatprep.subr.mxu0 0.0
    %2420 = vmatpush1.msra.mxu0 0.0
    %2421 = vmatprep.mubr.f32.mxu0 0.0
    %2422 = vmatmul.mubr.f32.gmra.mrb[0].mxu0 %v1581
    %v2423 = vpop.f32.mrb[0].mxu0
    %v2424 = vadd.f32 %v1562, %v2423
    %v2425 = vpop.f32.mrb[0].mxu0
    %2426 = vmatprep.mubr.f32.mxu0 0.0
    %2427 = vmatmul.mubr.f32.gmra.mrb[0].mxu0 %v1584
    %v2428 = vpop.f32.mrb[0].mxu0
    %v2429 = vadd.f32 %v1567, %v2428
    %v2430 = vpop.f32.mrb[0].mxu0
    %2431 = vmatprep.mubr.f32.mxu0 0.0
    %2432 = vmatmul.mubr.f32.gmra.mrb[0].mxu0 %v1587
    %v2433 = vpop.f32.mrb[0].mxu0
    %v2434 = vadd.f32 %v1572, %v2433
    %v2435 = vpop.f32.mrb[0].mxu0
    %2436 = vmatprep.mubr.f32.mxu0 0.0
    %2437 = vmatmul.mubr.f32.gmra.mrb[0].mxu0 %v1590
    %v2438 = vpop.f32.mrb[0].mxu0
    %v2439 = vadd.f32 %v1577, %v2438
    %v2440 = vpop.f32.mrb[0].mxu0
    %2441 = vdwg.mxu0
    %2442 = vmatprep.subr.mxu0 0.0
    %2443 = vmatpush1.msra.mxu0 %v1527
    %2444 = vmatprep.subr.mxu0 0.0
    %2445 = vmatpush1.msra.mxu0 %v1528
    %2446 = vmatprep.subr.mxu0 0.0
    %2447 = vmatpush1.msra.mxu0 %v1529
    %2448 = vmatprep.subr.mxu0 0.0
    %2449 = vmatpush1.msra.mxu0 %v1530
    %2450 = vmatprep.subr.mxu0 0.0
    %2451 = vmatpush1.msra.mxu0 0.0
    %2452 = vmatprep.subr.mxu0 0.0
    %2453 = vmatpush1.msra.mxu0 0.0
    %2454 = vmatprep.subr.mxu0 0.0
    %2455 = vmatpush1.msra.mxu0 0.0
    %2456 = vmatprep.subr.mxu0 0.0
    %2457 = vmatpush1.msra.mxu0 0.0
    %2458 = vmatprep.subr.mxu0 0.0
    %2459 = vmatpush1.msra.mxu0 0.0
    %2460 = vmatprep.subr.mxu0 0.0
    %2461 = vmatpush1.msra.mxu0 0.0
    %2462 = vmatprep.subr.mxu0 0.0
    %2463 = vmatpush1.msra.mxu0 0.0
    %2464 = vmatprep.subr.mxu0 0.0
    %2465 = vmatpush1.msra.mxu0 0.0
    %2466 = vmatprep.subr.mxu0 0.0
    %2467 = vmatpush1.msra.mxu0 0.0
    %2468 = vmatprep.subr.mxu0 0.0
    %2469 = vmatpush1.msra.mxu0 0.0
    %2470 = vmatprep.subr.mxu0 0.0
    %2471 = vmatpush1.msra.mxu0 0.0
    %2472 = vmatprep.subr.mxu0 0.0
    %2473 = vmatpush1.msra.mxu0 0.0
    %2474 = vmatprep.subr.mxu0 0.0
    %2475 = vmatpush1.msra.mxu0 0.0
    %2476 = vmatprep.subr.mxu0 0.0
    %2477 = vmatpush1.msra.mxu0 0.0
    %2478 = vmatprep.subr.mxu0 0.0
    %2479 = vmatpush1.msra.mxu0 0.0
    %2480 = vmatprep.subr.mxu0 0.0
    %2481 = vmatpush1.msra.mxu0 0.0
    %2482 = vmatprep.subr.mxu0 0.0
    %2483 = vmatpush1.msra.mxu0 0.0
    %2484 = vmatprep.subr.mxu0 0.0
    %2485 = vmatpush1.msra.mxu0 0.0
    %2486 = vmatprep.subr.mxu0 0.0
    %2487 = vmatpush1.msra.mxu0 0.0
    %2488 = vmatprep.subr.mxu0 0.0
    %2489 = vmatpush1.msra.mxu0 0.0
    %2490 = vmatprep.subr.mxu0 0.0
    %2491 = vmatpush1.msra.mxu0 0.0
    %2492 = vmatprep.subr.mxu0 0.0
    %2493 = vmatpush1.msra.mxu0 0.0
    %2494 = vmatprep.subr.mxu0 0.0
    %2495 = vmatpush1.msra.mxu0 0.0
    %2496 = vmatprep.subr.mxu0 0.0
    %2497 = vmatpush1.msra.mxu0 0.0
    %2498 = vmatprep.subr.mxu0 0.0
    %2499 = vmatpush1.msra.mxu0 0.0
    %2500 = vmatprep.subr.mxu0 0.0
    %2501 = vmatpush1.msra.mxu0 0.0
    %2502 = vmatprep.subr.mxu0 0.0
    %2503 = vmatpush1.msra.mxu0 0.0
    %2504 = vmatprep.subr.mxu0 0.0
    %2505 = vmatpush1.msra.mxu0 0.0
    %2506 = vmatprep.mubr.f32.mxu0 0.0
    %2507 = vmatmul.mubr.f32.gmra.mrb[0].mxu0 %v1581
    %v2508 = vpop.f32.mrb[0].mxu0
    %v2509 = vadd.f32 %v1562, %v2508
    %v2510 = vpop.f32.mrb[0].mxu0
    %2511 = vmatprep.mubr.f32.mxu0 0.0
    %2512 = vmatmul.mubr.f32.gmra.mrb[0].mxu0 %v1584
    %v2513 = vpop.f32.mrb[0].mxu0
    %v2514 = vadd.f32 %v1567, %v2513
    %v2515 = vpop.f32.mrb[0].mxu0
    %2516 = vmatprep.mubr.f32.mxu0 0.0
    %2517 = vmatmul.mubr.f32.gmra.mrb[0].mxu0 %v1587
    %v2518 = vpop.f32.mrb[0].mxu0
    %v2519 = vadd.f32 %v1572, %v2518
    %v2520 = vpop.f32.mrb[0].mxu0
    %2521 = vmatprep.mubr.f32.mxu0 0.0
    %2522 = vmatmul.mubr.f32.gmra.mrb[0].mxu0 %v1590
    %v2523 = vpop.f32.mrb[0].mxu0
    %v2524 = vadd.f32 %v1577, %v2523
    %v2525 = vpop.f32.mrb[0].mxu0
    %2526 = vdwg.mxu0
    %2527 = vmatprep.subr.mxu0 0.0
    %2528 = vmatpush1.msra.mxu0 %v1531
    %2529 = vmatprep.subr.mxu0 0.0
    %2530 = vmatpush1.msra.mxu0 %v1532
    %2531 = vmatprep.subr.mxu0 0.0
    %2532 = vmatpush1.msra.mxu0 %v1533
    %2533 = vmatprep.subr.mxu0 0.0
    %2534 = vmatpush1.msra.mxu0 %v1534
    %2535 = vmatprep.subr.mxu0 0.0
    %2536 = vmatpush1.msra.mxu0 0.0
    %2537 = vmatprep.subr.mxu0 0.0
    %2538 = vmatpush1.msra.mxu0 0.0
    %2539 = vmatprep.subr.mxu0 0.0
    %2540 = vmatpush1.msra.mxu0 0.0
    %2541 = vmatprep.subr.mxu0 0.0
    %2542 = vmatpush1.msra.mxu0 0.0
    %2543 = vmatprep.subr.mxu0 0.0
    %2544 = vmatpush1.msra.mxu0 0.0
    %2545 = vmatprep.subr.mxu0 0.0
    %2546 = vmatpush1.msra.mxu0 0.0
    %2547 = vmatprep.subr.mxu0 0.0
    %2548 = vmatpush1.msra.mxu0 0.0
    %2549 = vmatprep.subr.mxu0 0.0
    %2550 = vmatpush1.msra.mxu0 0.0
    %2551 = vmatprep.subr.mxu0 0.0
    %2552 = vmatpush1.msra.mxu0 0.0
    %2553 = vmatprep.subr.mxu0 0.0
    %2554 = vmatpush1.msra.mxu0 0.0
    %2555 = vmatprep.subr.mxu0 0.0
    %2556 = vmatpush1.msra.mxu0 0.0
    %2557 = vmatprep.subr.mxu0 0.0
    %2558 = vmatpush1.msra.mxu0 0.0
    %2559 = vmatprep.subr.mxu0 0.0
    %2560 = vmatpush1.msra.mxu0 0.0
    %2561 = vmatprep.subr.mxu0 0.0
    %2562 = vmatpush1.msra.mxu0 0.0
    %2563 = vmatprep.subr.mxu0 0.0
    %2564 = vmatpush1.msra.mxu0 0.0
    %2565 = vmatprep.subr.mxu0 0.0
    %2566 = vmatpush1.msra.mxu0 0.0
    %2567 = vmatprep.subr.mxu0 0.0
    %2568 = vmatpush1.msra.mxu0 0.0
    %2569 = vmatprep.subr.mxu0 0.0
    %2570 = vmatpush1.msra.mxu0 0.0
    %2571 = vmatprep.subr.mxu0 0.0
    %2572 = vmatpush1.msra.mxu0 0.0
    %2573 = vmatprep.subr.mxu0 0.0
    %2574 = vmatpush1.msra.mxu0 0.0
    %2575 = vmatprep.subr.mxu0 0.0
    %2576 = vmatpush1.msra.mxu0 0.0
    %2577 = vmatprep.subr.mxu0 0.0
    %2578 = vmatpush1.msra.mxu0 0.0
    %2579 = vmatprep.subr.mxu0 0.0
    %2580 = vmatpush1.msra.mxu0 0.0
    %2581 = vmatprep.subr.mxu0 0.0
    %2582 = vmatpush1.msra.mxu0 0.0
    %2583 = vmatprep.subr.mxu0 0.0
    %2584 = vmatpush1.msra.mxu0 0.0
    %2585 = vmatprep.subr.mxu0 0.0
    %2586 = vmatpush1.msra.mxu0 0.0
    %2587 = vmatprep.subr.mxu0 0.0
    %2588 = vmatpush1.msra.mxu0 0.0
    %2589 = vmatprep.subr.mxu0 0.0
    %2590 = vmatpush1.msra.mxu0 0.0
    %2591 = vmatprep.mubr.f32.mxu0 0.0
    %2592 = vmatmul.mubr.f32.gmra.mrb[0].mxu0 %v1581
    %v2593 = vpop.f32.mrb[0].mxu0
    %v2594 = vadd.f32 %v1562, %v2593
    %v2595 = vpop.f32.mrb[0].mxu0
    %2596 = vmatprep.mubr.f32.mxu0 0.0
    %2597 = vmatmul.mubr.f32.gmra.mrb[0].mxu0 %v1584
    %v2598 = vpop.f32.mrb[0].mxu0
    %v2599 = vadd.f32 %v1567, %v2598
    %v2600 = vpop.f32.mrb[0].mxu0
    %2601 = vmatprep.mubr.f32.mxu0 0.0
    %2602 = vmatmul.mubr.f32.gmra.mrb[0].mxu0 %v1587
    %v2603 = vpop.f32.mrb[0].mxu0
    %v2604 = vadd.f32 %v1572, %v2603
    %v2605 = vpop.f32.mrb[0].mxu0
    %2606 = vmatprep.mubr.f32.mxu0 0.0
    %2607 = vmatmul.mubr.f32.gmra.mrb[0].mxu0 %v1590
    %v2608 = vpop.f32.mrb[0].mxu0
    %v2609 = vadd.f32 %v1577, %v2608
    %v2610 = vpop.f32.mrb[0].mxu0
    %2611 = vdwg.mxu0
    %2612 = vmatprep.subr.mxu0 0.0
    %2613 = vmatpush1.msra.mxu0 %v1535
    %2614 = vmatprep.subr.mxu0 0.0
    %2615 = vmatpush1.msra.mxu0 %v1536
    %2616 = vmatprep.subr.mxu0 0.0
    %2617 = vmatpush1.msra.mxu0 %v1537
    %2618 = vmatprep.subr.mxu0 0.0
    %2619 = vmatpush1.msra.mxu0 %v1538
    %2620 = vmatprep.subr.mxu0 0.0
    %2621 = vmatpush1.msra.mxu0 0.0
    %2622 = vmatprep.subr.mxu0 0.0
    %2623 = vmatpush1.msra.mxu0 0.0
    %2624 = vmatprep.subr.mxu0 0.0
    %2625 = vmatpush1.msra.mxu0 0.0
    %2626 = vmatprep.subr.mxu0 0.0
    %2627 = vmatpush1.msra.mxu0 0.0
    %2628 = vmatprep.subr.mxu0 0.0
    %2629 = vmatpush1.msra.mxu0 0.0
    %2630 = vmatprep.subr.mxu0 0.0
    %2631 = vmatpush1.msra.mxu0 0.0
    %2632 = vmatprep.subr.mxu0 0.0
    %2633 = vmatpush1.msra.mxu0 0.0
    %2634 = vmatprep.subr.mxu0 0.0
    %2635 = vmatpush1.msra.mxu0 0.0
    %2636 = vmatprep.subr.mxu0 0.0
    %2637 = vmatpush1.msra.mxu0 0.0
    %2638 = vmatprep.subr.mxu0 0.0
    %2639 = vmatpush1.msra.mxu0 0.0
    %2640 = vmatprep.subr.mxu0 0.0
    %2641 = vmatpush1.msra.mxu0 0.0
    %2642 = vmatprep.subr.mxu0 0.0
    %2643 = vmatpush1.msra.mxu0 0.0
    %2644 = vmatprep.subr.mxu0 0.0
    %2645 = vmatpush1.msra.mxu0 0.0
    %2646 = vmatprep.subr.mxu0 0.0
    %2647 = vmatpush1.msra.mxu0 0.0
    %2648 = vmatprep.subr.mxu0 0.0
    %2649 = vmatpush1.msra.mxu0 0.0
    %2650 = vmatprep.subr.mxu0 0.0
    %2651 = vmatpush1.msra.mxu0 0.0
    %2652 = vmatprep.subr.mxu0 0.0
    %2653 = vmatpush1.msra.mxu0 0.0
    %2654 = vmatprep.subr.mxu0 0.0
    %2655 = vmatpush1.msra.mxu0 0.0
    %2656 = vmatprep.subr.mxu0 0.0
    %2657 = vmatpush1.msra.mxu0 0.0
    %2658 = vmatprep.subr.mxu0 0.0
    %2659 = vmatpush1.msra.mxu0 0.0
    %2660 = vmatprep.subr.mxu0 0.0
    %2661 = vmatpush1.msra.mxu0 0.0
    %2662 = vmatprep.subr.mxu0 0.0
    %2663 = vmatpush1.msra.mxu0 0.0
    %2664 = vmatprep.subr.mxu0 0.0
    %2665 = vmatpush1.msra.mxu0 0.0
    %2666 = vmatprep.subr.mxu0 0.0
    %2667 = vmatpush1.msra.mxu0 0.0
    %2668 = vmatprep.subr.mxu0 0.0
    %2669 = vmatpush1.msra.mxu0 0.0
    %2670 = vmatprep.subr.mxu0 0.0
    %2671 = vmatpush1.msra.mxu0 0.0
    %2672 = vmatprep.subr.mxu0 0.0
    %2673 = vmatpush1.msra.mxu0 0.0
    %2674 = vmatprep.subr.mxu0 0.0
    %2675 = vmatpush1.msra.mxu0 0.0
    %2676 = vmatprep.mubr.f32.mxu0 0.0
    %2677 = vmatmul.mubr.f32.gmra.mrb[0].mxu0 %v1581
    %v2678 = vpop.f32.mrb[0].mxu0
    %v2679 = vadd.f32 %v1562, %v2678
    %v2680 = vpop.f32.mrb[0].mxu0
    %2681 = vmatprep.mubr.f32.mxu0 0.0
    %2682 = vmatmul.mubr.f32.gmra.mrb[0].mxu0 %v1584
    %v2683 = vpop.f32.mrb[0].mxu0
    %v2684 = vadd.f32 %v1567, %v2683
    %v2685 = vpop.f32.mrb[0].mxu0
    %2686 = vmatprep.mubr.f32.mxu0 0.0
    %2687 = vmatmul.mubr.f32.gmra.mrb[0].mxu0 %v1587
    %v2688 = vpop.f32.mrb[0].mxu0
    %v2689 = vadd.f32 %v1572, %v2688
    %v2690 = vpop.f32.mrb[0].mxu0
    %2691 = vmatprep.mubr.f32.mxu0 0.0
    %2692 = vmatmul.mubr.f32.gmra.mrb[0].mxu0 %v1590
    %v2693 = vpop.f32.mrb[0].mxu0
    %v2694 = vadd.f32 %v1577, %v2693
    %v2695 = vpop.f32.mrb[0].mxu0
    %2696 = vdwg.mxu0
    %2697 = vmatprep.subr.mxu0 0.0
    %2698 = vmatpush1.msra.mxu0 %v1539
    %2699 = vmatprep.subr.mxu0 0.0
    %2700 = vmatpush1.msra.mxu0 %v1540
    %2701 = vmatprep.subr.mxu0 0.0
    %2702 = vmatpush1.msra.mxu0 %v1541
    %2703 = vmatprep.subr.mxu0 0.0
    %2704 = vmatpush1.msra.mxu0 %v1542
    %2705 = vmatprep.subr.mxu0 0.0
    %2706 = vmatpush1.msra.mxu0 0.0
    %2707 = vmatprep.subr.mxu0 0.0
    %2708 = vmatpush1.msra.mxu0 0.0
    %2709 = vmatprep.subr.mxu0 0.0
    %2710 = vmatpush1.msra.mxu0 0.0
    %2711 = vmatprep.subr.mxu0 0.0
    %2712 = vmatpush1.msra.mxu0 0.0
    %2713 = vmatprep.subr.mxu0 0.0
    %2714 = vmatpush1.msra.mxu0 0.0
    %2715 = vmatprep.subr.mxu0 0.0
    %2716 = vmatpush1.msra.mxu0 0.0
    %2717 = vmatprep.subr.mxu0 0.0
    %2718 = vmatpush1.msra.mxu0 0.0
    %2719 = vmatprep.subr.mxu0 0.0
    %2720 = vmatpush1.msra.mxu0 0.0
    %2721 = vmatprep.subr.mxu0 0.0
    %2722 = vmatpush1.msra.mxu0 0.0
    %2723 = vmatprep.subr.mxu0 0.0
    %2724 = vmatpush1.msra.mxu0 0.0
    %2725 = vmatprep.subr.mxu0 0.0
    %2726 = vmatpush1.msra.mxu0 0.0
    %2727 = vmatprep.subr.mxu0 0.0
    %2728 = vmatpush1.msra.mxu0 0.0
    %2729 = vmatprep.subr.mxu0 0.0
    %2730 = vmatpush1.msra.mxu0 0.0
    %2731 = vmatprep.subr.mxu0 0.0
    %2732 = vmatpush1.msra.mxu0 0.0
    %2733 = vmatprep.subr.mxu0 0.0
    %2734 = vmatpush1.msra.mxu0 0.0
    %2735 = vmatprep.subr.mxu0 0.0
    %2736 = vmatpush1.msra.mxu0 0.0
    %2737 = vmatprep.subr.mxu0 0.0
    %2738 = vmatpush1.msra.mxu0 0.0
    %2739 = vmatprep.subr.mxu0 0.0
    %2740 = vmatpush1.msra.mxu0 0.0
    %2741 = vmatprep.subr.mxu0 0.0
    %2742 = vmatpush1.msra.mxu0 0.0
    %2743 = vmatprep.subr.mxu0 0.0
    %2744 = vmatpush1.msra.mxu0 0.0
    %2745 = vmatprep.subr.mxu0 0.0
    %2746 = vmatpush1.msra.mxu0 0.0
    %2747 = vmatprep.subr.mxu0 0.0
    %2748 = vmatpush1.msra.mxu0 0.0
    %2749 = vmatprep.subr.mxu0 0.0
    %2750 = vmatpush1.msra.mxu0 0.0
    %2751 = vmatprep.subr.mxu0 0.0
    %2752 = vmatpush1.msra.mxu0 0.0
    %2753 = vmatprep.subr.mxu0 0.0
    %2754 = vmatpush1.msra.mxu0 0.0
    %2755 = vmatprep.subr.mxu0 0.0
    %2756 = vmatpush1.msra.mxu0 0.0
    %2757 = vmatprep.subr.mxu0 0.0
    %2758 = vmatpush1.msra.mxu0 0.0
    %2759 = vmatprep.subr.mxu0 0.0
    %2760 = vmatpush1.msra.mxu0 0.0
    %2761 = vmatprep.mubr.f32.mxu0 0.0
    %2762 = vmatmul.mubr.f32.gmra.mrb[0].mxu0 %v1581
    %v2763 = vpop.f32.mrb[0].mxu0
    %v2764 = vadd.f32 %v1562, %v2763
    %v2765 = vpop.f32.mrb[0].mxu0
    %2766 = vmatprep.mubr.f32.mxu0 0.0
    %2767 = vmatmul.mubr.f32.gmra.mrb[0].mxu0 %v1584
    %v2768 = vpop.f32.mrb[0].mxu0
    %v2769 = vadd.f32 %v1567, %v2768
    %v2770 = vpop.f32.mrb[0].mxu0
    %2771 = vmatprep.mubr.f32.mxu0 0.0
    %2772 = vmatmul.mubr.f32.gmra.mrb[0].mxu0 %v1587
    %v2773 = vpop.f32.mrb[0].mxu0
    %v2774 = vadd.f32 %v1572, %v2773
    %v2775 = vpop.f32.mrb[0].mxu0
    %2776 = vmatprep.mubr.f32.mxu0 0.0
    %2777 = vmatmul.mubr.f32.gmra.mrb[0].mxu0 %v1590
    %v2778 = vpop.f32.mrb[0].mxu0
    %v2779 = vadd.f32 %v1577, %v2778
    %v2780 = vpop.f32.mrb[0].mxu0
    %2781 = vdwg.mxu0
    %2782 = vmatprep.subr.mxu0 0.0
    %2783 = vmatpush1.msra.mxu0 %v1543
    %2784 = vmatprep.subr.mxu0 0.0
    %2785 = vmatpush1.msra.mxu0 %v1544
    %2786 = vmatprep.subr.mxu0 0.0
    %2787 = vmatpush1.msra.mxu0 %v1545
    %2788 = vmatprep.subr.mxu0 0.0
    %2789 = vmatpush1.msra.mxu0 %v1546
    %2790 = vmatprep.subr.mxu0 0.0
    %2791 = vmatpush1.msra.mxu0 0.0
    %2792 = vmatprep.subr.mxu0 0.0
    %2793 = vmatpush1.msra.mxu0 0.0
    %2794 = vmatprep.subr.mxu0 0.0
    %2795 = vmatpush1.msra.mxu0 0.0
    %2796 = vmatprep.subr.mxu0 0.0
    %2797 = vmatpush1.msra.mxu0 0.0
    %2798 = vmatprep.subr.mxu0 0.0
    %2799 = vmatpush1.msra.mxu0 0.0
    %2800 = vmatprep.subr.mxu0 0.0
    %2801 = vmatpush1.msra.mxu0 0.0
    %2802 = vmatprep.subr.mxu0 0.0
    %2803 = vmatpush1.msra.mxu0 0.0
    %2804 = vmatprep.subr.mxu0 0.0
    %2805 = vmatpush1.msra.mxu0 0.0
    %2806 = vmatprep.subr.mxu0 0.0
    %2807 = vmatpush1.msra.mxu0 0.0
    %2808 = vmatprep.subr.mxu0 0.0
    %2809 = vmatpush1.msra.mxu0 0.0
    %2810 = vmatprep.subr.mxu0 0.0
    %2811 = vmatpush1.msra.mxu0 0.0
    %2812 = vmatprep.subr.mxu0 0.0
    %2813 = vmatpush1.msra.mxu0 0.0
    %2814 = vmatprep.subr.mxu0 0.0
    %2815 = vmatpush1.msra.mxu0 0.0
    %2816 = vmatprep.subr.mxu0 0.0
    %2817 = vmatpush1.msra.mxu0 0.0
    %2818 = vmatprep.subr.mxu0 0.0
    %2819 = vmatpush1.msra.mxu0 0.0
    %2820 = vmatprep.subr.mxu0 0.0
    %2821 = vmatpush1.msra.mxu0 0.0
    %2822 = vmatprep.subr.mxu0 0.0
    %2823 = vmatpush1.msra.mxu0 0.0
    %2824 = vmatprep.subr.mxu0 0.0
    %2825 = vmatpush1.msra.mxu0 0.0
    %2826 = vmatprep.subr.mxu0 0.0
    %2827 = vmatpush1.msra.mxu0 0.0
    %2828 = vmatprep.subr.mxu0 0.0
    %2829 = vmatpush1.msra.mxu0 0.0
    %2830 = vmatprep.subr.mxu0 0.0
    %2831 = vmatpush1.msra.mxu0 0.0
    %2832 = vmatprep.subr.mxu0 0.0
    %2833 = vmatpush1.msra.mxu0 0.0
    %2834 = vmatprep.subr.mxu0 0.0
    %2835 = vmatpush1.msra.mxu0 0.0
    %2836 = vmatprep.subr.mxu0 0.0
    %2837 = vmatpush1.msra.mxu0 0.0
    %2838 = vmatprep.subr.mxu0 0.0
    %2839 = vmatpush1.msra.mxu0 0.0
    %2840 = vmatprep.subr.mxu0 0.0
    %2841 = vmatpush1.msra.mxu0 0.0
    %2842 = vmatprep.subr.mxu0 0.0
    %2843 = vmatpush1.msra.mxu0 0.0
    %2844 = vmatprep.subr.mxu0 0.0
    %2845 = vmatpush1.msra.mxu0 0.0
    %2846 = vmatprep.mubr.f32.mxu0 0.0
    %2847 = vmatmul.mubr.f32.gmra.mrb[0].mxu0 %v1581
    %v2848 = vpop.f32.mrb[0].mxu0
    %v2849 = vadd.f32 %v1562, %v2848
    %v2850 = vpop.f32.mrb[0].mxu0
    %2851 = vmatprep.mubr.f32.mxu0 0.0
    %2852 = vmatmul.mubr.f32.gmra.mrb[0].mxu0 %v1584
    %v2853 = vpop.f32.mrb[0].mxu0
    %v2854 = vadd.f32 %v1567, %v2853
    %v2855 = vpop.f32.mrb[0].mxu0
    %2856 = vmatprep.mubr.f32.mxu0 0.0
    %2857 = vmatmul.mubr.f32.gmra.mrb[0].mxu0 %v1587
    %v2858 = vpop.f32.mrb[0].mxu0
    %v2859 = vadd.f32 %v1572, %v2858
    %v2860 = vpop.f32.mrb[0].mxu0
    %2861 = vmatprep.mubr.f32.mxu0 0.0
    %2862 = vmatmul.mubr.f32.gmra.mrb[0].mxu0 %v1590
    %v2863 = vpop.f32.mrb[0].mxu0
    %v2864 = vadd.f32 %v1577, %v2863
    %v2865 = vpop.f32.mrb[0].mxu0
    %2866 = vdwg.mxu0
    %2867 = vmatprep.subr.mxu0 0.0
    %2868 = vmatpush1.msra.mxu0 %v1547
    %2869 = vmatprep.subr.mxu0 0.0
    %2870 = vmatpush1.msra.mxu0 %v1548
    %2871 = vmatprep.subr.mxu0 0.0
    %2872 = vmatpush1.msra.mxu0 %v1549
    %2873 = vmatprep.subr.mxu0 0.0
    %2874 = vmatpush1.msra.mxu0 %v1550
    %2875 = vmatprep.subr.mxu0 0.0
    %2876 = vmatpush1.msra.mxu0 0.0
    %2877 = vmatprep.subr.mxu0 0.0
    %2878 = vmatpush1.msra.mxu0 0.0
    %2879 = vmatprep.subr.mxu0 0.0
    %2880 = vmatpush1.msra.mxu0 0.0
    %2881 = vmatprep.subr.mxu0 0.0
    %2882 = vmatpush1.msra.mxu0 0.0
    %2883 = vmatprep.subr.mxu0 0.0
    %2884 = vmatpush1.msra.mxu0 0.0
    %2885 = vmatprep.subr.mxu0 0.0
    %2886 = vmatpush1.msra.mxu0 0.0
    %2887 = vmatprep.subr.mxu0 0.0
    %2888 = vmatpush1.msra.mxu0 0.0
    %2889 = vmatprep.subr.mxu0 0.0
    %2890 = vmatpush1.msra.mxu0 0.0
    %2891 = vmatprep.subr.mxu0 0.0
    %2892 = vmatpush1.msra.mxu0 0.0
    %2893 = vmatprep.subr.mxu0 0.0
    %2894 = vmatpush1.msra.mxu0 0.0
    %2895 = vmatprep.subr.mxu0 0.0
    %2896 = vmatpush1.msra.mxu0 0.0
    %2897 = vmatprep.subr.mxu0 0.0
    %2898 = vmatpush1.msra.mxu0 0.0
    %2899 = vmatprep.subr.mxu0 0.0
    %2900 = vmatpush1.msra.mxu0 0.0
    %2901 = vmatprep.subr.mxu0 0.0
    %2902 = vmatpush1.msra.mxu0 0.0
    %2903 = vmatprep.subr.mxu0 0.0
    %2904 = vmatpush1.msra.mxu0 0.0
    %2905 = vmatprep.subr.mxu0 0.0
    %2906 = vmatpush1.msra.mxu0 0.0
    %2907 = vmatprep.subr.mxu0 0.0
    %2908 = vmatpush1.msra.mxu0 0.0
    %2909 = vmatprep.subr.mxu0 0.0
    %2910 = vmatpush1.msra.mxu0 0.0
    %2911 = vmatprep.subr.mxu0 0.0
    %2912 = vmatpush1.msra.mxu0 0.0
    %2913 = vmatprep.subr.mxu0 0.0
    %2914 = vmatpush1.msra.mxu0 0.0
    %2915 = vmatprep.subr.mxu0 0.0
    %2916 = vmatpush1.msra.mxu0 0.0
    %2917 = vmatprep.subr.mxu0 0.0
    %2918 = vmatpush1.msra.mxu0 0.0
    %2919 = vmatprep.subr.mxu0 0.0
    %2920 = vmatpush1.msra.mxu0 0.0
    %2921 = vmatprep.subr.mxu0 0.0
    %2922 = vmatpush1.msra.mxu0 0.0
    %2923 = vmatprep.subr.mxu0 0.0
    %2924 = vmatpush1.msra.mxu0 0.0
    %2925 = vmatprep.subr.mxu0 0.0
    %2926 = vmatpush1.msra.mxu0 0.0
    %2927 = vmatprep.subr.mxu0 0.0
    %2928 = vmatpush1.msra.mxu0 0.0
    %2929 = vmatprep.subr.mxu0 0.0
    %2930 = vmatpush1.msra.mxu0 0.0
    %2931 = vmatprep.mubr.f32.mxu0 0.0
    %2932 = vmatmul.mubr.f32.gmra.mrb[0].mxu0 %v1581
    %v2933 = vpop.f32.mrb[0].mxu0
    %v2934 = vadd.f32 %v1562, %v2933
    %v2935 = vpop.f32.mrb[0].mxu0
    %2936 = vmatprep.mubr.f32.mxu0 0.0
    %2937 = vmatmul.mubr.f32.gmra.mrb[0].mxu0 %v1584
    %v2938 = vpop.f32.mrb[0].mxu0
    %v2939 = vadd.f32 %v1567, %v2938
    %v2940 = vpop.f32.mrb[0].mxu0
    %2941 = vmatprep.mubr.f32.mxu0 0.0
    %2942 = vmatmul.mubr.f32.gmra.mrb[0].mxu0 %v1587
    %v2943 = vpop.f32.mrb[0].mxu0
    %v2944 = vadd.f32 %v1572, %v2943
    %v2945 = vpop.f32.mrb[0].mxu0
    %2946 = vmatprep.mubr.f32.mxu0 0.0
    %2947 = vmatmul.mubr.f32.gmra.mrb[0].mxu0 %v1590
    %v2948 = vpop.f32.mrb[0].mxu0
    %v2949 = vadd.f32 %v1577, %v2948
    %v2950 = vpop.f32.mrb[0].mxu0
    %2951 = vdwg.mxu0
    %v2952 = vadd.f32 %v1659, %v1487
    %v2953 = vadd.f32 %v1664, %v1488
    %v2954 = vadd.f32 %v1669, %v1489
    %v2955 = vadd.f32 %v1674, %v1490
    %v2956 = vadd.f32 %v1744, %v1491
    %v2957 = vadd.f32 %v1749, %v1492
    %v2958 = vadd.f32 %v1754, %v1493
    %v2959 = vadd.f32 %v1759, %v1494
    %v2960 = vadd.f32 %v1829, %v1495
    %v2961 = vadd.f32 %v1834, %v1496
    %v2962 = vadd.f32 %v1839, %v1497
    %v2963 = vadd.f32 %v1844, %v1498
    %v2964 = vadd.f32 %v1914, %v1499
    %v2965 = vadd.f32 %v1919, %v1500
    %v2966 = vadd.f32 %v1924, %v1501
    %v2967 = vadd.f32 %v1929, %v1502
    %v2968 = vadd.f32 %v1999, %v1503
    %v2969 = vadd.f32 %v2004, %v1504
    %v2970 = vadd.f32 %v2009, %v1505
    %v2971 = vadd.f32 %v2014, %v1506
    %v2972 = vadd.f32 %v2084, %v1507
    %v2973 = vadd.f32 %v2089, %v1508
    %v2974 = vadd.f32 %v2094, %v1509
    %v2975 = vadd.f32 %v2099, %v1510
    %v2976 = vadd.f32 %v2169, %v1511
    %v2977 = vadd.f32 %v2174, %v1512
    %v2978 = vadd.f32 %v2179, %v1513
    %v2979 = vadd.f32 %v2184, %v1514
    %v2980 = vadd.f32 %v2254, %v1515
    %v2981 = vadd.f32 %v2259, %v1516
    %v2982 = vadd.f32 %v2264, %v1517
    %v2983 = vadd.f32 %v2269, %v1518
    %v2984 = vadd.f32 %v2339, %v1519
    %v2985 = vadd.f32 %v2344, %v1520
    %v2986 = vadd.f32 %v2349, %v1521
    %v2987 = vadd.f32 %v2354, %v1522
    %v2988 = vadd.f32 %v2424, %v1523
    %v2989 = vadd.f32 %v2429, %v1524
    %v2990 = vadd.f32 %v2434, %v1525
    %v2991 = vadd.f32 %v2439, %v1526
    %v2992 = vadd.f32 %v2509, %v1527
    %v2993 = vadd.f32 %v2514, %v1528
    %v2994 = vadd.f32 %v2519, %v1529
    %v2995 = vadd.f32 %v2524, %v1530
    %v2996 = vadd.f32 %v2594, %v1531
    %v2997 = vadd.f32 %v2599, %v1532
    %v2998 = vadd.f32 %v2604, %v1533
    %v2999 = vadd.f32 %v2609, %v1534
    %v3000 = vadd.f32 %v2679, %v1535
    %v3001 = vadd.f32 %v2684, %v1536
    %v3002 = vadd.f32 %v2689, %v1537
    %v3003 = vadd.f32 %v2694, %v1538
    %v3004 = vadd.f32 %v2764, %v1539
    %v3005 = vadd.f32 %v2769, %v1540
    %v3006 = vadd.f32 %v2774, %v1541
    %v3007 = vadd.f32 %v2779, %v1542
    %v3008 = vadd.f32 %v2849, %v1543
    %v3009 = vadd.f32 %v2854, %v1544
    %v3010 = vadd.f32 %v2859, %v1545
    %v3011 = vadd.f32 %v2864, %v1546
    %v3012 = vadd.f32 %v2934, %v1547
    %v3013 = vadd.f32 %v2939, %v1548
    %v3014 = vadd.f32 %v2944, %v1549
    %v3015 = vadd.f32 %v2949, %v1550
    %v3016 = vmax.f32 %v2952, 0.0
    %v3017 = vmax.f32 %v2953, 0.0
    %v3018 = vmax.f32 %v2954, 0.0
    %v3019 = vmax.f32 %v2955, 0.0
    %v3020 = vmax.f32 %v2956, 0.0
    %v3021 = vmax.f32 %v2957, 0.0
    %v3022 = vmax.f32 %v2958, 0.0
    %v3023 = vmax.f32 %v2959, 0.0
    %v3024 = vmax.f32 %v2960, 0.0
    %v3025 = vmax.f32 %v2961, 0.0
    %v3026 = vmax.f32 %v2962, 0.0
    %v3027 = vmax.f32 %v2963, 0.0
    %v3028 = vmax.f32 %v2964, 0.0
    %v3029 = vmax.f32 %v2965, 0.0
    %v3030 = vmax.f32 %v2966, 0.0
    %v3031 = vmax.f32 %v2967, 0.0
    %v3032 = vmax.f32 %v2968, 0.0
    %v3033 = vmax.f32 %v2969, 0.0
    %v3034 = vmax.f32 %v2970, 0.0
    %v3035 = vmax.f32 %v2971, 0.0
    %v3036 = vmax.f32 %v2972, 0.0
    %v3037 = vmax.f32 %v2973, 0.0
    %v3038 = vmax.f32 %v2974, 0.0
    %v3039 = vmax.f32 %v2975, 0.0
    %v3040 = vmax.f32 %v2976, 0.0
    %v3041 = vmax.f32 %v2977, 0.0
    %v3042 = vmax.f32 %v2978, 0.0
    %v3043 = vmax.f32 %v2979, 0.0
    %v3044 = vmax.f32 %v2980, 0.0
    %v3045 = vmax.f32 %v2981, 0.0
    %v3046 = vmax.f32 %v2982, 0.0
    %v3047 = vmax.f32 %v2983, 0.0
    %v3048 = vmax.f32 %v2984, 0.0
    %v3049 = vmax.f32 %v2985, 0.0
    %v3050 = vmax.f32 %v2986, 0.0
    %v3051 = vmax.f32 %v2987, 0.0
    %v3052 = vmax.f32 %v2988, 0.0
    %v3053 = vmax.f32 %v2989, 0.0
    %v3054 = vmax.f32 %v2990, 0.0
    %v3055 = vmax.f32 %v2991, 0.0
    %v3056 = vmax.f32 %v2992, 0.0
    %v3057 = vmax.f32 %v2993, 0.0
    %v3058 = vmax.f32 %v2994, 0.0
    %v3059 = vmax.f32 %v2995, 0.0
    %v3060 = vmax.f32 %v2996, 0.0
    %v3061 = vmax.f32 %v2997, 0.0
    %v3062 = vmax.f32 %v2998, 0.0
    %v3063 = vmax.f32 %v2999, 0.0
    %v3064 = vmax.f32 %v3000, 0.0
    %v3065 = vmax.f32 %v3001, 0.0
    %v3066 = vmax.f32 %v3002, 0.0
    %v3067 = vmax.f32 %v3003, 0.0
    %v3068 = vmax.f32 %v3004, 0.0
    %v3069 = vmax.f32 %v3005, 0.0
    %v3070 = vmax.f32 %v3006, 0.0
    %v3071 = vmax.f32 %v3007, 0.0
    %v3072 = vmax.f32 %v3008, 0.0
    %v3073 = vmax.f32 %v3009, 0.0
    %v3074 = vmax.f32 %v3010, 0.0
    %v3075 = vmax.f32 %v3011, 0.0
    %v3076 = vmax.f32 %v3012, 0.0
    %v3077 = vmax.f32 %v3013, 0.0
    %v3078 = vmax.f32 %v3014, 0.0
    %v3079 = vmax.f32 %v3015, 0.0
    %vm3080 = vcmask 523264
    %v3081 = vsel %vm3080, %v3016, 0.0
    %3082 = vadd.xlane.f32.xlu0 %v3081
    %v3083 = vpop.xlane.xlu0 %3082
    %v3084 = vsel %vm3080, %v3017, 0.0
    %3085 = vadd.xlane.f32.xlu0 %v3084
    %v3086 = vpop.xlane.xlu0 %3085
    %v3087 = vsel %vm3080, %v3018, 0.0
    %3088 = vadd.xlane.f32.xlu0 %v3087
    %v3089 = vpop.xlane.xlu0 %3088
    %v3090 = vsel %vm3080, %v3019, 0.0
    %3091 = vadd.xlane.f32.xlu0 %v3090
    %v3092 = vpop.xlane.xlu0 %3091
    %v3093 = vsel %vm3080, %v3020, 0.0
    %3094 = vadd.xlane.f32.xlu0 %v3093
    %v3095 = vpop.xlane.xlu0 %3094
    %v3096 = vsel %vm3080, %v3021, 0.0
    %3097 = vadd.xlane.f32.xlu0 %v3096
    %v3098 = vpop.xlane.xlu0 %3097
    %v3099 = vsel %vm3080, %v3022, 0.0
    %3100 = vadd.xlane.f32.xlu0 %v3099
    %v3101 = vpop.xlane.xlu0 %3100
    %v3102 = vsel %vm3080, %v3023, 0.0
    %3103 = vadd.xlane.f32.xlu0 %v3102
    %v3104 = vpop.xlane.xlu0 %3103
    %v3105 = vsel %vm3080, %v3024, 0.0
    %3106 = vadd.xlane.f32.xlu0 %v3105
    %v3107 = vpop.xlane.xlu0 %3106
    %v3108 = vsel %vm3080, %v3025, 0.0
    %3109 = vadd.xlane.f32.xlu0 %v3108
    %v3110 = vpop.xlane.xlu0 %3109
    %v3111 = vsel %vm3080, %v3026, 0.0
    %3112 = vadd.xlane.f32.xlu0 %v3111
    %v3113 = vpop.xlane.xlu0 %3112
    %v3114 = vsel %vm3080, %v3027, 0.0
    %3115 = vadd.xlane.f32.xlu0 %v3114
    %v3116 = vpop.xlane.xlu0 %3115
    %v3117 = vsel %vm3080, %v3028, 0.0
    %3118 = vadd.xlane.f32.xlu0 %v3117
    %v3119 = vpop.xlane.xlu0 %3118
    %v3120 = vsel %vm3080, %v3029, 0.0
    %3121 = vadd.xlane.f32.xlu0 %v3120
    %v3122 = vpop.xlane.xlu0 %3121
    %v3123 = vsel %vm3080, %v3030, 0.0
    %3124 = vadd.xlane.f32.xlu0 %v3123
    %v3125 = vpop.xlane.xlu0 %3124
    %v3126 = vsel %vm3080, %v3031, 0.0
    %3127 = vadd.xlane.f32.xlu0 %v3126
    %v3128 = vpop.xlane.xlu0 %3127
    %v3129 = vsel %vm3080, %v3032, 0.0
    %3130 = vadd.xlane.f32.xlu0 %v3129
    %v3131 = vpop.xlane.xlu0 %3130
    %v3132 = vsel %vm3080, %v3033, 0.0
    %3133 = vadd.xlane.f32.xlu0 %v3132
    %v3134 = vpop.xlane.xlu0 %3133
    %v3135 = vsel %vm3080, %v3034, 0.0
    %3136 = vadd.xlane.f32.xlu0 %v3135
    %v3137 = vpop.xlane.xlu0 %3136
    %v3138 = vsel %vm3080, %v3035, 0.0
    %3139 = vadd.xlane.f32.xlu0 %v3138
    %v3140 = vpop.xlane.xlu0 %3139
    %v3141 = vsel %vm3080, %v3036, 0.0
    %3142 = vadd.xlane.f32.xlu0 %v3141
    %v3143 = vpop.xlane.xlu0 %3142
    %v3144 = vsel %vm3080, %v3037, 0.0
    %3145 = vadd.xlane.f32.xlu0 %v3144
    %v3146 = vpop.xlane.xlu0 %3145
    %v3147 = vsel %vm3080, %v3038, 0.0
    %3148 = vadd.xlane.f32.xlu0 %v3147
    %v3149 = vpop.xlane.xlu0 %3148
    %v3150 = vsel %vm3080, %v3039, 0.0
    %3151 = vadd.xlane.f32.xlu0 %v3150
    %v3152 = vpop.xlane.xlu0 %3151
    %v3153 = vsel %vm3080, %v3040, 0.0
    %3154 = vadd.xlane.f32.xlu0 %v3153
    %v3155 = vpop.xlane.xlu0 %3154
    %v3156 = vsel %vm3080, %v3041, 0.0
    %3157 = vadd.xlane.f32.xlu0 %v3156
    %v3158 = vpop.xlane.xlu0 %3157
    %v3159 = vsel %vm3080, %v3042, 0.0
    %3160 = vadd.xlane.f32.xlu0 %v3159
    %v3161 = vpop.xlane.xlu0 %3160
    %v3162 = vsel %vm3080, %v3043, 0.0
    %3163 = vadd.xlane.f32.xlu0 %v3162
    %v3164 = vpop.xlane.xlu0 %3163
    %v3165 = vsel %vm3080, %v3044, 0.0
    %3166 = vadd.xlane.f32.xlu0 %v3165
    %v3167 = vpop.xlane.xlu0 %3166
    %v3168 = vsel %vm3080, %v3045, 0.0
    %3169 = vadd.xlane.f32.xlu0 %v3168
    %v3170 = vpop.xlane.xlu0 %3169
    %v3171 = vsel %vm3080, %v3046, 0.0
    %3172 = vadd.xlane.f32.xlu0 %v3171
    %v3173 = vpop.xlane.xlu0 %3172
    %v3174 = vsel %vm3080, %v3047, 0.0
    %3175 = vadd.xlane.f32.xlu0 %v3174
    %v3176 = vpop.xlane.xlu0 %3175
    %v3177 = vsel %vm3080, %v3048, 0.0
    %3178 = vadd.xlane.f32.xlu0 %v3177
    %v3179 = vpop.xlane.xlu0 %3178
    %v3180 = vsel %vm3080, %v3049, 0.0
    %3181 = vadd.xlane.f32.xlu0 %v3180
    %v3182 = vpop.xlane.xlu0 %3181
    %v3183 = vsel %vm3080, %v3050, 0.0
    %3184 = vadd.xlane.f32.xlu0 %v3183
    %v3185 = vpop.xlane.xlu0 %3184
    %v3186 = vsel %vm3080, %v3051, 0.0
    %3187 = vadd.xlane.f32.xlu0 %v3186
    %v3188 = vpop.xlane.xlu0 %3187
    %v3189 = vsel %vm3080, %v3052, 0.0
    %3190 = vadd.xlane.f32.xlu0 %v3189
    %v3191 = vpop.xlane.xlu0 %3190
    %v3192 = vsel %vm3080, %v3053, 0.0
    %3193 = vadd.xlane.f32.xlu0 %v3192
    %v3194 = vpop.xlane.xlu0 %3193
    %v3195 = vsel %vm3080, %v3054, 0.0
    %3196 = vadd.xlane.f32.xlu0 %v3195
    %v3197 = vpop.xlane.xlu0 %3196
    %v3198 = vsel %vm3080, %v3055, 0.0
    %3199 = vadd.xlane.f32.xlu0 %v3198
    %v3200 = vpop.xlane.xlu0 %3199
    %v3201 = vsel %vm3080, %v3056, 0.0
    %3202 = vadd.xlane.f32.xlu0 %v3201
    %v3203 = vpop.xlane.xlu0 %3202
    %v3204 = vsel %vm3080, %v3057, 0.0
    %3205 = vadd.xlane.f32.xlu0 %v3204
    %v3206 = vpop.xlane.xlu0 %3205
    %v3207 = vsel %vm3080, %v3058, 0.0
    %3208 = vadd.xlane.f32.xlu0 %v3207
    %v3209 = vpop.xlane.xlu0 %3208
    %v3210 = vsel %vm3080, %v3059, 0.0
    %3211 = vadd.xlane.f32.xlu0 %v3210
    %v3212 = vpop.xlane.xlu0 %3211
    %v3213 = vsel %vm3080, %v3060, 0.0
    %3214 = vadd.xlane.f32.xlu0 %v3213
    %v3215 = vpop.xlane.xlu0 %3214
    %v3216 = vsel %vm3080, %v3061, 0.0
    %3217 = vadd.xlane.f32.xlu0 %v3216
    %v3218 = vpop.xlane.xlu0 %3217
    %v3219 = vsel %vm3080, %v3062, 0.0
    %3220 = vadd.xlane.f32.xlu0 %v3219
    %v3221 = vpop.xlane.xlu0 %3220
    %v3222 = vsel %vm3080, %v3063, 0.0
    %3223 = vadd.xlane.f32.xlu0 %v3222
    %v3224 = vpop.xlane.xlu0 %3223
    %v3225 = vsel %vm3080, %v3064, 0.0
    %3226 = vadd.xlane.f32.xlu0 %v3225
    %v3227 = vpop.xlane.xlu0 %3226
    %v3228 = vsel %vm3080, %v3065, 0.0
    %3229 = vadd.xlane.f32.xlu0 %v3228
    %v3230 = vpop.xlane.xlu0 %3229
    %v3231 = vsel %vm3080, %v3066, 0.0
    %3232 = vadd.xlane.f32.xlu0 %v3231
    %v3233 = vpop.xlane.xlu0 %3232
    %v3234 = vsel %vm3080, %v3067, 0.0
    %3235 = vadd.xlane.f32.xlu0 %v3234
    %v3236 = vpop.xlane.xlu0 %3235
    %v3237 = vsel %vm3080, %v3068, 0.0
    %3238 = vadd.xlane.f32.xlu0 %v3237
    %v3239 = vpop.xlane.xlu0 %3238
    %v3240 = vsel %vm3080, %v3069, 0.0
    %3241 = vadd.xlane.f32.xlu0 %v3240
    %v3242 = vpop.xlane.xlu0 %3241
    %v3243 = vsel %vm3080, %v3070, 0.0
    %3244 = vadd.xlane.f32.xlu0 %v3243
    %v3245 = vpop.xlane.xlu0 %3244
    %v3246 = vsel %vm3080, %v3071, 0.0
    %3247 = vadd.xlane.f32.xlu0 %v3246
    %v3248 = vpop.xlane.xlu0 %3247
    %v3249 = vsel %vm3080, %v3072, 0.0
    %3250 = vadd.xlane.f32.xlu0 %v3249
    %v3251 = vpop.xlane.xlu0 %3250
    %v3252 = vsel %vm3080, %v3073, 0.0
    %3253 = vadd.xlane.f32.xlu0 %v3252
    %v3254 = vpop.xlane.xlu0 %3253
    %v3255 = vsel %vm3080, %v3074, 0.0
    %3256 = vadd.xlane.f32.xlu0 %v3255
    %v3257 = vpop.xlane.xlu0 %3256
    %v3258 = vsel %vm3080, %v3075, 0.0
    %3259 = vadd.xlane.f32.xlu0 %v3258
    %v3260 = vpop.xlane.xlu0 %3259
    %v3261 = vsel %vm3080, %v3076, 0.0
    %3262 = vadd.xlane.f32.xlu0 %v3261
    %v3263 = vpop.xlane.xlu0 %3262
    %v3264 = vsel %vm3080, %v3077, 0.0
    %3265 = vadd.xlane.f32.xlu0 %v3264
    %v3266 = vpop.xlane.xlu0 %3265
    %v3267 = vsel %vm3080, %v3078, 0.0
    %3268 = vadd.xlane.f32.xlu0 %v3267
    %v3269 = vpop.xlane.xlu0 %3268
    %v3270 = vsel %vm3080, %v3079, 0.0
    %3271 = vadd.xlane.f32.xlu0 %v3270
    %v3272 = vpop.xlane.xlu0 %3271
    %v3273 = vmul.f32 %v3083, 0.015625
    %v3274 = vmul.f32 %v3086, 0.015625
    %v3275 = vmul.f32 %v3089, 0.015625
    %v3276 = vmul.f32 %v3092, 0.015625
    %v3277 = vmul.f32 %v3095, 0.015625
    %v3278 = vmul.f32 %v3098, 0.015625
    %v3279 = vmul.f32 %v3101, 0.015625
    %v3280 = vmul.f32 %v3104, 0.015625
    %v3281 = vmul.f32 %v3107, 0.015625
    %v3282 = vmul.f32 %v3110, 0.015625
    %v3283 = vmul.f32 %v3113, 0.015625
    %v3284 = vmul.f32 %v3116, 0.015625
    %v3285 = vmul.f32 %v3119, 0.015625
    %v3286 = vmul.f32 %v3122, 0.015625
    %v3287 = vmul.f32 %v3125, 0.015625
    %v3288 = vmul.f32 %v3128, 0.015625
    %v3289 = vmul.f32 %v3131, 0.015625
    %v3290 = vmul.f32 %v3134, 0.015625
    %v3291 = vmul.f32 %v3137, 0.015625
    %v3292 = vmul.f32 %v3140, 0.015625
    %v3293 = vmul.f32 %v3143, 0.015625
    %v3294 = vmul.f32 %v3146, 0.015625
    %v3295 = vmul.f32 %v3149, 0.015625
    %v3296 = vmul.f32 %v3152, 0.015625
    %v3297 = vmul.f32 %v3155, 0.015625
    %v3298 = vmul.f32 %v3158, 0.015625
    %v3299 = vmul.f32 %v3161, 0.015625
    %v3300 = vmul.f32 %v3164, 0.015625
    %v3301 = vmul.f32 %v3167, 0.015625
    %v3302 = vmul.f32 %v3170, 0.015625
    %v3303 = vmul.f32 %v3173, 0.015625
    %v3304 = vmul.f32 %v3176, 0.015625
    %v3305 = vmul.f32 %v3179, 0.015625
    %v3306 = vmul.f32 %v3182, 0.015625
    %v3307 = vmul.f32 %v3185, 0.015625
    %v3308 = vmul.f32 %v3188, 0.015625
    %v3309 = vmul.f32 %v3191, 0.015625
    %v3310 = vmul.f32 %v3194, 0.015625
    %v3311 = vmul.f32 %v3197, 0.015625
    %v3312 = vmul.f32 %v3200, 0.015625
    %v3313 = vmul.f32 %v3203, 0.015625
    %v3314 = vmul.f32 %v3206, 0.015625
    %v3315 = vmul.f32 %v3209, 0.015625
    %v3316 = vmul.f32 %v3212, 0.015625
    %v3317 = vmul.f32 %v3215, 0.015625
    %v3318 = vmul.f32 %v3218, 0.015625
    %v3319 = vmul.f32 %v3221, 0.015625
    %v3320 = vmul.f32 %v3224, 0.015625
    %v3321 = vmul.f32 %v3227, 0.015625
    %v3322 = vmul.f32 %v3230, 0.015625
    %v3323 = vmul.f32 %v3233, 0.015625
    %v3324 = vmul.f32 %v3236, 0.015625
    %v3325 = vmul.f32 %v3239, 0.015625
    %v3326 = vmul.f32 %v3242, 0.015625
    %v3327 = vmul.f32 %v3245, 0.015625
    %v3328 = vmul.f32 %v3248, 0.015625
    %v3329 = vmul.f32 %v3251, 0.015625
    %v3330 = vmul.f32 %v3254, 0.015625
    %v3331 = vmul.f32 %v3257, 0.015625
    %v3332 = vmul.f32 %v3260, 0.015625
    %v3333 = vmul.f32 %v3263, 0.015625
    %v3334 = vmul.f32 %v3266, 0.015625
    %v3335 = vmul.f32 %v3269, 0.015625
    %v3336 = vmul.f32 %v3272, 0.015625
    %v3401 = vlaneseq
    %v3402 = vand.u32 %v3401, 127
    %v3403 = vlaneseq
    %v3404 = vshrl.u32 %v3403, 7
    %v3405 = vsub.s32 %v3402, %v3404
    %v3406 = vrot.slane %v3273, %v3405
    %v3407 = vadd.s32 %v3402, 4294967288
    %v3408 = vlaneseq
    %v3409 = vshrl.u32 %v3408, 7
    %v3410 = vsub.s32 %v3407, %v3409
    %v3411 = vrot.slane %v3274, %v3410
    %vm3412 = vcmask 130112
    %v3413 = vsel %vm3412, %v3411, %v3406
    %v3414 = vadd.s32 %v3402, 4294967280
    %v3415 = vlaneseq
    %v3416 = vshrl.u32 %v3415, 7
    %v3417 = vsub.s32 %v3414, %v3416
    %v3418 = vrot.slane %v3275, %v3417
    %vm3419 = vcmask 195712
    %v3420 = vsel %vm3419, %v3418, %v3413
    %v3421 = vadd.s32 %v3402, 4294967272
    %v3422 = vlaneseq
    %v3423 = vshrl.u32 %v3422, 7
    %v3424 = vsub.s32 %v3421, %v3423
    %v3425 = vrot.slane %v3276, %v3424
    %vm3426 = vcmask 261312
    %v3427 = vsel %vm3426, %v3425, %v3420
    %v3428 = vlaneseq
    %v3429 = vshrl.u32 %v3428, 7
    %v3430 = vsub.s32 %v3402, %v3429
    %v3431 = vrot.slane %v3277, %v3430
    %v3432 = vlaneseq
    %v3433 = vshrl.u32 %v3432, 7
    %v3434 = vsub.s32 %v3407, %v3433
    %v3435 = vrot.slane %v3278, %v3434
    %v3436 = vsel %vm3412, %v3435, %v3431
    %v3437 = vlaneseq
    %v3438 = vshrl.u32 %v3437, 7
    %v3439 = vsub.s32 %v3414, %v3438
    %v3440 = vrot.slane %v3279, %v3439
    %v3441 = vsel %vm3419, %v3440, %v3436
    %v3442 = vlaneseq
    %v3443 = vshrl.u32 %v3442, 7
    %v3444 = vsub.s32 %v3421, %v3443
    %v3445 = vrot.slane %v3280, %v3444
    %v3446 = vsel %vm3426, %v3445, %v3441
    %v3447 = vlaneseq
    %v3448 = vshrl.u32 %v3447, 7
    %v3449 = vsub.s32 %v3402, %v3448
    %v3450 = vrot.slane %v3281, %v3449
    %v3451 = vlaneseq
    %v3452 = vshrl.u32 %v3451, 7
    %v3453 = vsub.s32 %v3407, %v3452
    %v3454 = vrot.slane %v3282, %v3453
    %v3455 = vsel %vm3412, %v3454, %v3450
    %v3456 = vlaneseq
    %v3457 = vshrl.u32 %v3456, 7
    %v3458 = vsub.s32 %v3414, %v3457
    %v3459 = vrot.slane %v3283, %v3458
    %v3460 = vsel %vm3419, %v3459, %v3455
    %v3461 = vlaneseq
    %v3462 = vshrl.u32 %v3461, 7
    %v3463 = vsub.s32 %v3421, %v3462
    %v3464 = vrot.slane %v3284, %v3463
    %v3465 = vsel %vm3426, %v3464, %v3460
    %v3466 = vlaneseq
    %v3467 = vshrl.u32 %v3466, 7
    %v3468 = vsub.s32 %v3402, %v3467
    %v3469 = vrot.slane %v3285, %v3468
    %v3470 = vlaneseq
    %v3471 = vshrl.u32 %v3470, 7
    %v3472 = vsub.s32 %v3407, %v3471
    %v3473 = vrot.slane %v3286, %v3472
    %v3474 = vsel %vm3412, %v3473, %v3469
    %v3475 = vlaneseq
    %v3476 = vshrl.u32 %v3475, 7
    %v3477 = vsub.s32 %v3414, %v3476
    %v3478 = vrot.slane %v3287, %v3477
    %v3479 = vsel %vm3419, %v3478, %v3474
    %v3480 = vlaneseq
    %v3481 = vshrl.u32 %v3480, 7
    %v3482 = vsub.s32 %v3421, %v3481
    %v3483 = vrot.slane %v3288, %v3482
    %v3484 = vsel %vm3426, %v3483, %v3479
    %v3485 = vlaneseq
    %v3486 = vshrl.u32 %v3485, 7
    %v3487 = vsub.s32 %v3402, %v3486
    %v3488 = vrot.slane %v3289, %v3487
    %v3489 = vlaneseq
    %v3490 = vshrl.u32 %v3489, 7
    %v3491 = vsub.s32 %v3407, %v3490
    %v3492 = vrot.slane %v3290, %v3491
    %v3493 = vsel %vm3412, %v3492, %v3488
    %v3494 = vlaneseq
    %v3495 = vshrl.u32 %v3494, 7
    %v3496 = vsub.s32 %v3414, %v3495
    %v3497 = vrot.slane %v3291, %v3496
    %v3498 = vsel %vm3419, %v3497, %v3493
    %v3499 = vlaneseq
    %v3500 = vshrl.u32 %v3499, 7
    %v3501 = vsub.s32 %v3421, %v3500
    %v3502 = vrot.slane %v3292, %v3501
    %v3503 = vsel %vm3426, %v3502, %v3498
    %v3504 = vlaneseq
    %v3505 = vshrl.u32 %v3504, 7
    %v3506 = vsub.s32 %v3402, %v3505
    %v3507 = vrot.slane %v3293, %v3506
    %v3508 = vlaneseq
    %v3509 = vshrl.u32 %v3508, 7
    %v3510 = vsub.s32 %v3407, %v3509
    %v3511 = vrot.slane %v3294, %v3510
    %v3512 = vsel %vm3412, %v3511, %v3507
    %v3513 = vlaneseq
    %v3514 = vshrl.u32 %v3513, 7
    %v3515 = vsub.s32 %v3414, %v3514
    %v3516 = vrot.slane %v3295, %v3515
    %v3517 = vsel %vm3419, %v3516, %v3512
    %v3518 = vlaneseq
    %v3519 = vshrl.u32 %v3518, 7
    %v3520 = vsub.s32 %v3421, %v3519
    %v3521 = vrot.slane %v3296, %v3520
    %v3522 = vsel %vm3426, %v3521, %v3517
    %v3523 = vlaneseq
    %v3524 = vshrl.u32 %v3523, 7
    %v3525 = vsub.s32 %v3402, %v3524
    %v3526 = vrot.slane %v3297, %v3525
    %v3527 = vlaneseq
    %v3528 = vshrl.u32 %v3527, 7
    %v3529 = vsub.s32 %v3407, %v3528
    %v3530 = vrot.slane %v3298, %v3529
    %v3531 = vsel %vm3412, %v3530, %v3526
    %v3532 = vlaneseq
    %v3533 = vshrl.u32 %v3532, 7
    %v3534 = vsub.s32 %v3414, %v3533
    %v3535 = vrot.slane %v3299, %v3534
    %v3536 = vsel %vm3419, %v3535, %v3531
    %v3537 = vlaneseq
    %v3538 = vshrl.u32 %v3537, 7
    %v3539 = vsub.s32 %v3421, %v3538
    %v3540 = vrot.slane %v3300, %v3539
    %v3541 = vsel %vm3426, %v3540, %v3536
    %v3542 = vlaneseq
    %v3543 = vshrl.u32 %v3542, 7
    %v3544 = vsub.s32 %v3402, %v3543
    %v3545 = vrot.slane %v3301, %v3544
    %v3546 = vlaneseq
    %v3547 = vshrl.u32 %v3546, 7
    %v3548 = vsub.s32 %v3407, %v3547
    %v3549 = vrot.slane %v3302, %v3548
    %v3550 = vsel %vm3412, %v3549, %v3545
    %v3551 = vlaneseq
    %v3552 = vshrl.u32 %v3551, 7
    %v3553 = vsub.s32 %v3414, %v3552
    %v3554 = vrot.slane %v3303, %v3553
    %v3555 = vsel %vm3419, %v3554, %v3550
    %v3556 = vlaneseq
    %v3557 = vshrl.u32 %v3556, 7
    %v3558 = vsub.s32 %v3421, %v3557
    %v3559 = vrot.slane %v3304, %v3558
    %v3560 = vsel %vm3426, %v3559, %v3555
    %v3561 = vlaneseq
    %v3562 = vshrl.u32 %v3561, 7
    %v3563 = vsub.s32 %v3402, %v3562
    %v3564 = vrot.slane %v3305, %v3563
    %v3565 = vlaneseq
    %v3566 = vshrl.u32 %v3565, 7
    %v3567 = vsub.s32 %v3407, %v3566
    %v3568 = vrot.slane %v3306, %v3567
    %v3569 = vsel %vm3412, %v3568, %v3564
    %v3570 = vlaneseq
    %v3571 = vshrl.u32 %v3570, 7
    %v3572 = vsub.s32 %v3414, %v3571
    %v3573 = vrot.slane %v3307, %v3572
    %v3574 = vsel %vm3419, %v3573, %v3569
    %v3575 = vlaneseq
    %v3576 = vshrl.u32 %v3575, 7
    %v3577 = vsub.s32 %v3421, %v3576
    %v3578 = vrot.slane %v3308, %v3577
    %v3579 = vsel %vm3426, %v3578, %v3574
    %v3580 = vlaneseq
    %v3581 = vshrl.u32 %v3580, 7
    %v3582 = vsub.s32 %v3402, %v3581
    %v3583 = vrot.slane %v3309, %v3582
    %v3584 = vlaneseq
    %v3585 = vshrl.u32 %v3584, 7
    %v3586 = vsub.s32 %v3407, %v3585
    %v3587 = vrot.slane %v3310, %v3586
    %v3588 = vsel %vm3412, %v3587, %v3583
    %v3589 = vlaneseq
    %v3590 = vshrl.u32 %v3589, 7
    %v3591 = vsub.s32 %v3414, %v3590
    %v3592 = vrot.slane %v3311, %v3591
    %v3593 = vsel %vm3419, %v3592, %v3588
    %v3594 = vlaneseq
    %v3595 = vshrl.u32 %v3594, 7
    %v3596 = vsub.s32 %v3421, %v3595
    %v3597 = vrot.slane %v3312, %v3596
    %v3598 = vsel %vm3426, %v3597, %v3593
    %v3599 = vlaneseq
    %v3600 = vshrl.u32 %v3599, 7
    %v3601 = vsub.s32 %v3402, %v3600
    %v3602 = vrot.slane %v3313, %v3601
    %v3603 = vlaneseq
    %v3604 = vshrl.u32 %v3603, 7
    %v3605 = vsub.s32 %v3407, %v3604
    %v3606 = vrot.slane %v3314, %v3605
    %v3607 = vsel %vm3412, %v3606, %v3602
    %v3608 = vlaneseq
    %v3609 = vshrl.u32 %v3608, 7
    %v3610 = vsub.s32 %v3414, %v3609
    %v3611 = vrot.slane %v3315, %v3610
    %v3612 = vsel %vm3419, %v3611, %v3607
    %v3613 = vlaneseq
    %v3614 = vshrl.u32 %v3613, 7
    %v3615 = vsub.s32 %v3421, %v3614
    %v3616 = vrot.slane %v3316, %v3615
    %v3617 = vsel %vm3426, %v3616, %v3612
    %v3618 = vlaneseq
    %v3619 = vshrl.u32 %v3618, 7
    %v3620 = vsub.s32 %v3402, %v3619
    %v3621 = vrot.slane %v3317, %v3620
    %v3622 = vlaneseq
    %v3623 = vshrl.u32 %v3622, 7
    %v3624 = vsub.s32 %v3407, %v3623
    %v3625 = vrot.slane %v3318, %v3624
    %v3626 = vsel %vm3412, %v3625, %v3621
    %v3627 = vlaneseq
    %v3628 = vshrl.u32 %v3627, 7
    %v3629 = vsub.s32 %v3414, %v3628
    %v3630 = vrot.slane %v3319, %v3629
    %v3631 = vsel %vm3419, %v3630, %v3626
    %v3632 = vlaneseq
    %v3633 = vshrl.u32 %v3632, 7
    %v3634 = vsub.s32 %v3421, %v3633
    %v3635 = vrot.slane %v3320, %v3634
    %v3636 = vsel %vm3426, %v3635, %v3631
    %v3637 = vlaneseq
    %v3638 = vshrl.u32 %v3637, 7
    %v3639 = vsub.s32 %v3402, %v3638
    %v3640 = vrot.slane %v3321, %v3639
    %v3641 = vlaneseq
    %v3642 = vshrl.u32 %v3641, 7
    %v3643 = vsub.s32 %v3407, %v3642
    %v3644 = vrot.slane %v3322, %v3643
    %v3645 = vsel %vm3412, %v3644, %v3640
    %v3646 = vlaneseq
    %v3647 = vshrl.u32 %v3646, 7
    %v3648 = vsub.s32 %v3414, %v3647
    %v3649 = vrot.slane %v3323, %v3648
    %v3650 = vsel %vm3419, %v3649, %v3645
    %v3651 = vlaneseq
    %v3652 = vshrl.u32 %v3651, 7
    %v3653 = vsub.s32 %v3421, %v3652
    %v3654 = vrot.slane %v3324, %v3653
    %v3655 = vsel %vm3426, %v3654, %v3650
    %v3656 = vlaneseq
    %v3657 = vshrl.u32 %v3656, 7
    %v3658 = vsub.s32 %v3402, %v3657
    %v3659 = vrot.slane %v3325, %v3658
    %v3660 = vlaneseq
    %v3661 = vshrl.u32 %v3660, 7
    %v3662 = vsub.s32 %v3407, %v3661
    %v3663 = vrot.slane %v3326, %v3662
    %v3664 = vsel %vm3412, %v3663, %v3659
    %v3665 = vlaneseq
    %v3666 = vshrl.u32 %v3665, 7
    %v3667 = vsub.s32 %v3414, %v3666
    %v3668 = vrot.slane %v3327, %v3667
    %v3669 = vsel %vm3419, %v3668, %v3664
    %v3670 = vlaneseq
    %v3671 = vshrl.u32 %v3670, 7
    %v3672 = vsub.s32 %v3421, %v3671
    %v3673 = vrot.slane %v3328, %v3672
    %v3674 = vsel %vm3426, %v3673, %v3669
    %v3675 = vlaneseq
    %v3676 = vshrl.u32 %v3675, 7
    %v3677 = vsub.s32 %v3402, %v3676
    %v3678 = vrot.slane %v3329, %v3677
    %v3679 = vlaneseq
    %v3680 = vshrl.u32 %v3679, 7
    %v3681 = vsub.s32 %v3407, %v3680
    %v3682 = vrot.slane %v3330, %v3681
    %v3683 = vsel %vm3412, %v3682, %v3678
    %v3684 = vlaneseq
    %v3685 = vshrl.u32 %v3684, 7
    %v3686 = vsub.s32 %v3414, %v3685
    %v3687 = vrot.slane %v3331, %v3686
    %v3688 = vsel %vm3419, %v3687, %v3683
    %v3689 = vlaneseq
    %v3690 = vshrl.u32 %v3689, 7
    %v3691 = vsub.s32 %v3421, %v3690
    %v3692 = vrot.slane %v3332, %v3691
    %v3693 = vsel %vm3426, %v3692, %v3688
    %v3694 = vlaneseq
    %v3695 = vshrl.u32 %v3694, 7
    %v3696 = vsub.s32 %v3402, %v3695
    %v3697 = vrot.slane %v3333, %v3696
    %v3698 = vlaneseq
    %v3699 = vshrl.u32 %v3698, 7
    %v3700 = vsub.s32 %v3407, %v3699
    %v3701 = vrot.slane %v3334, %v3700
    %v3702 = vsel %vm3412, %v3701, %v3697
    %v3703 = vlaneseq
    %v3704 = vshrl.u32 %v3703, 7
    %v3705 = vsub.s32 %v3414, %v3704
    %v3706 = vrot.slane %v3335, %v3705
    %v3707 = vsel %vm3419, %v3706, %v3702
    %v3708 = vlaneseq
    %v3709 = vshrl.u32 %v3708, 7
    %v3710 = vsub.s32 %v3421, %v3709
    %v3711 = vrot.slane %v3336, %v3710
    %v3712 = vsel %vm3426, %v3711, %v3707
    %vm3713 = vcmask 1041409
    %v3714 = vsel %vm3713, %v3446, %v3427
    %vm3715 = vcmask 1042434
    %v3716 = vsel %vm3715, %v3465, %v3714
    %vm3717 = vcmask 1043459
    %v3718 = vsel %vm3717, %v3484, %v3716
    %vm3719 = vcmask 1044484
    %v3720 = vsel %vm3719, %v3503, %v3718
    %vm3721 = vcmask 1045509
    %v3722 = vsel %vm3721, %v3522, %v3720
    %vm3723 = vcmask 1046534
    %v3724 = vsel %vm3723, %v3541, %v3722
    %vm3725 = vcmask 1047559
    %v3726 = vsel %vm3725, %v3560, %v3724
    %v3727 = vsel %vm3713, %v3598, %v3579
    %v3728 = vsel %vm3715, %v3617, %v3727
    %v3729 = vsel %vm3717, %v3636, %v3728
    %v3730 = vsel %vm3719, %v3655, %v3729
    %v3731 = vsel %vm3721, %v3674, %v3730
    %v3732 = vsel %vm3723, %v3693, %v3731
    %v3733 = vsel %vm3725, %v3712, %v3732
    %3736 = vst.msk [vmem:[#allocation2] sm:$0xff] %vm1579, %v3726
    %3737 = vst.msk [vmem:[#allocation2 + $0x8] sm:$0xff] %vm1579, %v3733
    // Predicated region
    $region22: #{tpu_custom_call.1} parent=1 // pred_check
      _
    $region23: #{tpu_custom_call.1} parent=1 // pred_check_branch
      %3739 = sbr.rel (0) target = $region25
    $region24: #{tpu_custom_call.1} parent=1 // pred_region
      %s3741 = ssub.s32 256, 256
      %3742 = vsyncadd [#allocation3], %s3741
      %s3743 = sshll.u32 [#allocation2], 4
      %s3744 = int_to_ptr.vmem [resolvable:$true] %s3743
      %3749 = dma.vmem_to_hbm [thread:$0]  %s3744, 256, %s5, [#allocation3], 128, 128, 8
    $region25: #{tpu_custom_call.1} parent=1 // pred_fallthru
      _
    // Predicated region
    $region26: #{tpu_custom_call.1} parent=1 // pred_check
      _
    $region27: #{tpu_custom_call.1} parent=1 // pred_check_branch
      %3751 = sbr.rel (0) target = $region29
    $region28: #{tpu_custom_call.1} parent=1 // pred_region
      %3752 = dma.done [#allocation3], 256
    $region29: #{tpu_custom_call.1} parent=1 // pred_fallthru
      _
    %3753 = vsyncpa [#allocation3], 1

</llo_original>
